<compile_context>
chip_gen: v7x
topology: tpu7x:2x2x1
jax: 0.10.0
libtpu: 0.0.40
codegen_flags: <defaults>
</compile_context>

<pallas_src>
import functools

import jax
import jax.numpy as jnp
from jax.experimental import pallas as pl
from jax.experimental.pallas import tpu as pltpu


def build_interp_matrix(out_size: int, in_size: int) -> jnp.ndarray:
    """Dense 1-D bilinear interpolation matrix, align_corners=True semantics."""
    if out_size == 1 or in_size == 1:
        a = jnp.zeros((out_size, in_size), jnp.float32)
        return a.at[:, 0].set(1.0)
    src = jnp.arange(out_size, dtype=jnp.float32) * (in_size - 1) / (out_size - 1)
    i0 = jnp.clip(jnp.floor(src).astype(jnp.int32), 0, in_size - 1)
    i1 = jnp.clip(i0 + 1, 0, in_size - 1)
    w1 = src - i0.astype(jnp.float32)
    w0 = 1.0 - w1
    a = (w0[:, None] * jax.nn.one_hot(i0, in_size, dtype=jnp.float32)
         + w1[:, None] * jax.nn.one_hot(i1, in_size, dtype=jnp.float32))
    return a.astype(jnp.float32)


def _up_sampling_kernel(xf_ref, w_ref, b_ref, ah_ref, awt_ref, o_ref):
    # xf_ref : (1, Cin, (H+3)*(W+2))  zero-padded, spatially-flattened NCHW input
    # w_ref  : (9, Cout, Cin)         BN-folded conv weights, tap-major (k = dy*3 + dx)
    # b_ref  : (Cout, 1)              BN-folded bias
    # ah_ref : (Ho, H)                height interpolation matrix (align_corners=True)
    # awt_ref: (W+2, Wo)              width interpolation matrix^T; last two rows are zero
    #                                 so the conv's W..W+1 pad columns contribute nothing
    # o_ref  : (1, Cout, Ho, Wo)      NCHW output tile
    cout = w_ref.shape[1]
    Ho, H = ah_ref.shape
    Wp, Wo = awt_ref.shape
    L = H * Wp

    # --- 3x3 conv (+ folded BN bias) + ReLU, channel-major / lane-dense ---------------
    # Each tap is a contiguous lane-offset window of the flattened padded input, so the
    # nine accumulating (Cout, Cin) @ (Cin, L) matmuls need no per-tap relayout copies.
    acc = jnp.zeros((cout, L), jnp.float32)
    for k in range(9):
        off = (k // 3) * Wp + (k % 3)
        window = xf_ref[0, :, off:off + L]                        # (Cin, L)
        acc = acc + jnp.dot(w_ref[k], window, preferred_element_type=jnp.float32)
    z = jnp.maximum(acc + b_ref[...], 0.0)                        # (Cout, L)

    # --- bilinear x2 upsample (align_corners=True), separable -------------------------
    # width pass: one small (Cout, Wp) @ (Wp, Wo) matmul per conv output row
    awt = awt_ref[...]
    wrows = []
    for i in range(H):
        wrows.append(jnp.dot(z[:, i * Wp:(i + 1) * Wp], awt,
                             preferred_element_type=jnp.float32))  # (Cout, Wo)
    yw = jnp.stack(wrows, axis=0)                                  # (H, Cout, Wo)

    # height pass: (Ho, H) @ (H, Wo) per output channel, written straight into NCHW
    ah = ah_ref[...]
    for c in range(cout):
        o_ref[0, c] = jnp.dot(ah, yw[:, c, :], preferred_element_type=jnp.float32)


@functools.partial(jax.jit, static_argnames=("multiple", "eps"))
def up_sampling_forward(x_nchw, conv_w, conv_b, gamma, beta, run_mean, run_var,
                        multiple=2, eps=1e-5):
    N, Cin, H, W = x_nchw.shape
    Cout = conv_w.shape[0]
    Ho, Wo = H * multiple, W * multiple
    Wp = W + 2
    Pext = (H + 3) * Wp

    # Fold eval-mode BatchNorm into conv weight / bias.
    scale = gamma / jnp.sqrt(run_var + eps)                            # (Cout,)
    w_fold = conv_w.astype(jnp.float32) * scale[:, None, None, None]   # (Cout, Cin, 3, 3)
    w_taps = jnp.transpose(w_fold, (2, 3, 0, 1)).reshape(9, Cout, Cin)
    b_fold = ((conv_b - run_mean) * scale + beta).reshape(Cout, 1).astype(jnp.float32)

    # NCHW end-to-end: pad H by (1,2) / W by (1,1) and flatten spatial dims so the 3x3
    # taps become contiguous lane-offset windows (the extra bottom row only feeds the
    # dropped pad columns).
    x_pad = jnp.pad(x_nchw.astype(jnp.float32), ((0, 0), (0, 0), (1, 2), (1, 1)))
    xf = x_pad.reshape(N, Cin, Pext)

    # Separable interpolation matrices (tiny, VMEM-resident).
    a_h = build_interp_matrix(Ho, H)                                   # (Ho, H)
    a_wt = jnp.pad(build_interp_matrix(Wo, W).T, ((0, 2), (0, 0)))     # (Wp, Wo)

    grid_spec = pltpu.PrefetchScalarGridSpec(
        num_scalar_prefetch=0,
        grid=(N,),
        in_specs=[
            pl.BlockSpec((1, Cin, Pext), lambda b: (b, 0, 0)),
            pl.BlockSpec((9, Cout, Cin), lambda b: (0, 0, 0)),
            pl.BlockSpec((Cout, 1), lambda b: (0, 0)),
            pl.BlockSpec((Ho, H), lambda b: (0, 0)),
            pl.BlockSpec((Wp, Wo), lambda b: (0, 0)),
        ],
        out_specs=pl.BlockSpec((1, Cout, Ho, Wo), lambda b: (b, 0, 0, 0)),
    )

    return pl.pallas_call(
        _up_sampling_kernel,
        out_shape=jax.ShapeDtypeStruct((N, Cout, Ho, Wo), jnp.float32),
        grid_spec=grid_spec,
        compiler_params=pltpu.CompilerParams(dimension_semantics=("parallel",)),
    )(xf, w_taps, b_fold, a_h, a_wt)


def up_sampling_reference(x_nchw, conv_w, conv_b, gamma, beta, run_mean, run_var,
                          multiple=2, eps=1e-5):
    """Pure-JAX reference for correctness checking."""
    y = jax.lax.conv_general_dilated(
        x_nchw, conv_w, window_strides=(1, 1), padding=((1, 1), (1, 1)),
        dimension_numbers=("NCHW", "OIHW", "NCHW"))
    y = y + conv_b[None, :, None, None]
    y = (y - run_mean[None, :, None, None]) / jnp.sqrt(run_var[None, :, None, None] + eps)
    y = y * gamma[None, :, None, None] + beta[None, :, None, None]
    y = jnp.maximum(y, 0.0)
    H, W = y.shape[2], y.shape[3]
    a_h = build_interp_matrix(H * multiple, H)
    a_w = build_interp_matrix(W * multiple, W)
    y = jnp.einsum("oh,nchw->ncow", a_h, y)
    y = jnp.einsum("pw,ncow->ncop", a_w, y)
    return y


if __name__ == "__main__":
    key = jax.random.PRNGKey(0)
    k_x, k_w, k_b, k_g, k_be, k_m, k_v = jax.random.split(key, 7)

    N, Cin, H, W = 2, 4, 16, 16
    Cout = 8
    multiple = 2

    x = jax.random.normal(k_x, (N, Cin, H, W), jnp.float32)
    conv_w = jax.random.normal(k_w, (Cout, Cin, 3, 3), jnp.float32) * 0.2
    conv_b = jax.random.normal(k_b, (Cout,), jnp.float32) * 0.1
    gamma = jax.random.uniform(k_g, (Cout,), jnp.float32, 0.5, 1.5)
    beta = jax.random.normal(k_be, (Cout,), jnp.float32) * 0.1
    run_mean = jax.random.normal(k_m, (Cout,), jnp.float32) * 0.1
    run_var = jax.random.uniform(k_v, (Cout,), jnp.float32, 0.5, 1.5)

    out = up_sampling_forward(x, conv_w, conv_b, gamma, beta, run_mean, run_var,
                              multiple=multiple)
    out = jax.block_until_ready(out)

    ref = up_sampling_reference(x, conv_w, conv_b, gamma, beta, run_mean, run_var,
                                multiple=multiple)
    ref = jax.block_until_ready(ref)

    assert out.shape == (N, Cout, H * multiple, W * multiple), out.shape
    assert jnp.allclose(out, ref, rtol=1e-4, atol=1e-4), float(jnp.max(jnp.abs(out - ref)))

    print("KERNEL_OK")
</pallas_src>

<mosaic_0001>
module attributes {stable_mosaic.version = 11 : i64} {
  func.func @_up_sampling_kernel(%arg0: i32, %arg1: memref<1x4x342xf32, #tpu.memory_space<vmem>>, %arg2: memref<9x8x4xf32, #tpu.memory_space<vmem>>, %arg3: memref<8x1xf32, #tpu.memory_space<vmem>>, %arg4: memref<32x16xf32, #tpu.memory_space<vmem>>, %arg5: memref<18x32xf32, #tpu.memory_space<vmem>>, %arg6: memref<1x8x32x32xf32, #tpu.memory_space<vmem>>) attributes {dimension_semantics = [#tpu.dimension_semantics<parallel>], iteration_bounds = array<i64: 2>, scalar_prefetch = 0 : i64, scratch_operands = 0 : i64, tpu.core_type = #tpu.core_type<tc>, window_params = [{transform_indices = @transform_0, window_bounds = array<i64: 1, 4, 342>}, {pipeline_mode = #tpu.pipeline_mode<synchronous>, transform_indices = @transform_1, window_bounds = array<i64: 9, 8, 4>}, {pipeline_mode = #tpu.pipeline_mode<synchronous>, transform_indices = @transform_2, window_bounds = array<i64: 8, 1>}, {pipeline_mode = #tpu.pipeline_mode<synchronous>, transform_indices = @transform_3, window_bounds = array<i64: 32, 16>}, {pipeline_mode = #tpu.pipeline_mode<synchronous>, transform_indices = @transform_4, window_bounds = array<i64: 18, 32>}, {transform_indices = @transform_5, window_bounds = array<i64: 1, 8, 32, 32>}]} {
    %cst = arith.constant 0.000000e+00 : f32
    %0 = vector.broadcast %cst : f32 to vector<8x288xf32>
    %c0 = arith.constant 0 : index
    %c0_0 = arith.constant 0 : index
    %c0_1 = arith.constant 0 : index
    %1 = vector.load %arg1[%c0, %c0_0, %c0_1] : memref<1x4x342xf32, #tpu.memory_space<vmem>>, vector<1x4x288xf32>
    %2 = vector.shape_cast %1 : vector<1x4x288xf32> to vector<4x288xf32>
    %c0_2 = arith.constant 0 : index
    %c0_3 = arith.constant 0 : index
    %c0_4 = arith.constant 0 : index
    %3 = vector.load %arg2[%c0_2, %c0_3, %c0_4] : memref<9x8x4xf32, #tpu.memory_space<vmem>>, vector<1x8x4xf32>
    %4 = vector.shape_cast %3 : vector<1x8x4xf32> to vector<8x4xf32>
    %cst_5 = arith.constant dense<0.000000e+00> : vector<8x288xf32>
    %5 = tpu.matmul %4, %2, %cst_5 {dimension_numbers = #tpu.dot_dimension_numbers<[1], [0], [0], [1], [0, 0, 1, 1], [], []>} : vector<8x4xf32>, vector<4x288xf32>, vector<8x288xf32> -> vector<8x288xf32>
    %6 = arith.addf %0, %5 : vector<8x288xf32>
    %c0_6 = arith.constant 0 : index
    %c0_7 = arith.constant 0 : index
    %c1 = arith.constant 1 : index
    %7 = vector.load %arg1[%c0_6, %c0_7, %c1] : memref<1x4x342xf32, #tpu.memory_space<vmem>>, vector<1x4x288xf32>
    %8 = vector.shape_cast %7 : vector<1x4x288xf32> to vector<4x288xf32>
    %c1_8 = arith.constant 1 : index
    %c0_9 = arith.constant 0 : index
    %c0_10 = arith.constant 0 : index
    %9 = vector.load %arg2[%c1_8, %c0_9, %c0_10] : memref<9x8x4xf32, #tpu.memory_space<vmem>>, vector<1x8x4xf32>
    %10 = vector.shape_cast %9 : vector<1x8x4xf32> to vector<8x4xf32>
    %cst_11 = arith.constant dense<0.000000e+00> : vector<8x288xf32>
    %11 = tpu.matmul %10, %8, %cst_11 {dimension_numbers = #tpu.dot_dimension_numbers<[1], [0], [0], [1], [0, 0, 1, 1], [], []>} : vector<8x4xf32>, vector<4x288xf32>, vector<8x288xf32> -> vector<8x288xf32>
    %12 = arith.addf %6, %11 : vector<8x288xf32>
    %c0_12 = arith.constant 0 : index
    %c0_13 = arith.constant 0 : index
    %c2 = arith.constant 2 : index
    %13 = vector.load %arg1[%c0_12, %c0_13, %c2] : memref<1x4x342xf32, #tpu.memory_space<vmem>>, vector<1x4x288xf32>
    %14 = vector.shape_cast %13 : vector<1x4x288xf32> to vector<4x288xf32>
    %c2_14 = arith.constant 2 : index
    %c0_15 = arith.constant 0 : index
    %c0_16 = arith.constant 0 : index
    %15 = vector.load %arg2[%c2_14, %c0_15, %c0_16] : memref<9x8x4xf32, #tpu.memory_space<vmem>>, vector<1x8x4xf32>
    %16 = vector.shape_cast %15 : vector<1x8x4xf32> to vector<8x4xf32>
    %cst_17 = arith.constant dense<0.000000e+00> : vector<8x288xf32>
    %17 = tpu.matmul %16, %14, %cst_17 {dimension_numbers = #tpu.dot_dimension_numbers<[1], [0], [0], [1], [0, 0, 1, 1], [], []>} : vector<8x4xf32>, vector<4x288xf32>, vector<8x288xf32> -> vector<8x288xf32>
    %18 = arith.addf %12, %17 : vector<8x288xf32>
    %c0_18 = arith.constant 0 : index
    %c0_19 = arith.constant 0 : index
    %c18 = arith.constant 18 : index
    %19 = vector.load %arg1[%c0_18, %c0_19, %c18] : memref<1x4x342xf32, #tpu.memory_space<vmem>>, vector<1x4x288xf32>
    %20 = vector.shape_cast %19 : vector<1x4x288xf32> to vector<4x288xf32>
    %c3 = arith.constant 3 : index
    %c0_20 = arith.constant 0 : index
    %c0_21 = arith.constant 0 : index
    %21 = vector.load %arg2[%c3, %c0_20, %c0_21] : memref<9x8x4xf32, #tpu.memory_space<vmem>>, vector<1x8x4xf32>
    %22 = vector.shape_cast %21 : vector<1x8x4xf32> to vector<8x4xf32>
    %cst_22 = arith.constant dense<0.000000e+00> : vector<8x288xf32>
    %23 = tpu.matmul %22, %20, %cst_22 {dimension_numbers = #tpu.dot_dimension_numbers<[1], [0], [0], [1], [0, 0, 1, 1], [], []>} : vector<8x4xf32>, vector<4x288xf32>, vector<8x288xf32> -> vector<8x288xf32>
    %24 = arith.addf %18, %23 : vector<8x288xf32>
    %c0_23 = arith.constant 0 : index
    %c0_24 = arith.constant 0 : index
    %c19 = arith.constant 19 : index
    %25 = vector.load %arg1[%c0_23, %c0_24, %c19] : memref<1x4x342xf32, #tpu.memory_space<vmem>>, vector<1x4x288xf32>
    %26 = vector.shape_cast %25 : vector<1x4x288xf32> to vector<4x288xf32>
    %c4 = arith.constant 4 : index
    %c0_25 = arith.constant 0 : index
    %c0_26 = arith.constant 0 : index
    %27 = vector.load %arg2[%c4, %c0_25, %c0_26] : memref<9x8x4xf32, #tpu.memory_space<vmem>>, vector<1x8x4xf32>
    %28 = vector.shape_cast %27 : vector<1x8x4xf32> to vector<8x4xf32>
    %cst_27 = arith.constant dense<0.000000e+00> : vector<8x288xf32>
    %29 = tpu.matmul %28, %26, %cst_27 {dimension_numbers = #tpu.dot_dimension_numbers<[1], [0], [0], [1], [0, 0, 1, 1], [], []>} : vector<8x4xf32>, vector<4x288xf32>, vector<8x288xf32> -> vector<8x288xf32>
    %30 = arith.addf %24, %29 : vector<8x288xf32>
    %c0_28 = arith.constant 0 : index
    %c0_29 = arith.constant 0 : index
    %c20 = arith.constant 20 : index
    %31 = vector.load %arg1[%c0_28, %c0_29, %c20] : memref<1x4x342xf32, #tpu.memory_space<vmem>>, vector<1x4x288xf32>
    %32 = vector.shape_cast %31 : vector<1x4x288xf32> to vector<4x288xf32>
    %c5 = arith.constant 5 : index
    %c0_30 = arith.constant 0 : index
    %c0_31 = arith.constant 0 : index
    %33 = vector.load %arg2[%c5, %c0_30, %c0_31] : memref<9x8x4xf32, #tpu.memory_space<vmem>>, vector<1x8x4xf32>
    %34 = vector.shape_cast %33 : vector<1x8x4xf32> to vector<8x4xf32>
    %cst_32 = arith.constant dense<0.000000e+00> : vector<8x288xf32>
    %35 = tpu.matmul %34, %32, %cst_32 {dimension_numbers = #tpu.dot_dimension_numbers<[1], [0], [0], [1], [0, 0, 1, 1], [], []>} : vector<8x4xf32>, vector<4x288xf32>, vector<8x288xf32> -> vector<8x288xf32>
    %36 = arith.addf %30, %35 : vector<8x288xf32>
    %c0_33 = arith.constant 0 : index
    %c0_34 = arith.constant 0 : index
    %c36 = arith.constant 36 : index
    %37 = vector.load %arg1[%c0_33, %c0_34, %c36] : memref<1x4x342xf32, #tpu.memory_space<vmem>>, vector<1x4x288xf32>
    %38 = vector.shape_cast %37 : vector<1x4x288xf32> to vector<4x288xf32>
    %c6 = arith.constant 6 : index
    %c0_35 = arith.constant 0 : index
    %c0_36 = arith.constant 0 : index
    %39 = vector.load %arg2[%c6, %c0_35, %c0_36] : memref<9x8x4xf32, #tpu.memory_space<vmem>>, vector<1x8x4xf32>
    %40 = vector.shape_cast %39 : vector<1x8x4xf32> to vector<8x4xf32>
    %cst_37 = arith.constant dense<0.000000e+00> : vector<8x288xf32>
    %41 = tpu.matmul %40, %38, %cst_37 {dimension_numbers = #tpu.dot_dimension_numbers<[1], [0], [0], [1], [0, 0, 1, 1], [], []>} : vector<8x4xf32>, vector<4x288xf32>, vector<8x288xf32> -> vector<8x288xf32>
    %42 = arith.addf %36, %41 : vector<8x288xf32>
    %c0_38 = arith.constant 0 : index
    %c0_39 = arith.constant 0 : index
    %c37 = arith.constant 37 : index
    %43 = vector.load %arg1[%c0_38, %c0_39, %c37] : memref<1x4x342xf32, #tpu.memory_space<vmem>>, vector<1x4x288xf32>
    %44 = vector.shape_cast %43 : vector<1x4x288xf32> to vector<4x288xf32>
    %c7 = arith.constant 7 : index
    %c0_40 = arith.constant 0 : index
    %c0_41 = arith.constant 0 : index
    %45 = vector.load %arg2[%c7, %c0_40, %c0_41] : memref<9x8x4xf32, #tpu.memory_space<vmem>>, vector<1x8x4xf32>
    %46 = vector.shape_cast %45 : vector<1x8x4xf32> to vector<8x4xf32>
    %cst_42 = arith.constant dense<0.000000e+00> : vector<8x288xf32>
    %47 = tpu.matmul %46, %44, %cst_42 {dimension_numbers = #tpu.dot_dimension_numbers<[1], [0], [0], [1], [0, 0, 1, 1], [], []>} : vector<8x4xf32>, vector<4x288xf32>, vector<8x288xf32> -> vector<8x288xf32>
    %48 = arith.addf %42, %47 : vector<8x288xf32>
    %c0_43 = arith.constant 0 : index
    %c0_44 = arith.constant 0 : index
    %c38 = arith.constant 38 : index
    %49 = vector.load %arg1[%c0_43, %c0_44, %c38] : memref<1x4x342xf32, #tpu.memory_space<vmem>>, vector<1x4x288xf32>
    %50 = vector.shape_cast %49 : vector<1x4x288xf32> to vector<4x288xf32>
    %c8 = arith.constant 8 : index
    %c0_45 = arith.constant 0 : index
    %c0_46 = arith.constant 0 : index
    %51 = vector.load %arg2[%c8, %c0_45, %c0_46] : memref<9x8x4xf32, #tpu.memory_space<vmem>>, vector<1x8x4xf32>
    %52 = vector.shape_cast %51 : vector<1x8x4xf32> to vector<8x4xf32>
    %cst_47 = arith.constant dense<0.000000e+00> : vector<8x288xf32>
    %53 = tpu.matmul %52, %50, %cst_47 {dimension_numbers = #tpu.dot_dimension_numbers<[1], [0], [0], [1], [0, 0, 1, 1], [], []>} : vector<8x4xf32>, vector<4x288xf32>, vector<8x288xf32> -> vector<8x288xf32>
    %54 = arith.addf %48, %53 : vector<8x288xf32>
    %c0_48 = arith.constant 0 : index
    %c0_49 = arith.constant 0 : index
    %55 = vector.load %arg3[%c0_48, %c0_49] : memref<8x1xf32, #tpu.memory_space<vmem>>, vector<8x1xf32>
    %56 = vector.broadcast %55 : vector<8x1xf32> to vector<8x288xf32>
    %57 = arith.addf %54, %56 : vector<8x288xf32>
    %cst_50 = arith.constant 0.000000e+00 : f32
    %58 = vector.broadcast %cst_50 : f32 to vector<8x288xf32>
    %59 = arith.maximumf %57, %58 : vector<8x288xf32>
    %c0_51 = arith.constant 0 : index
    %c0_52 = arith.constant 0 : index
    %60 = vector.load %arg5[%c0_51, %c0_52] : memref<18x32xf32, #tpu.memory_space<vmem>>, vector<18x32xf32>
    %61 = vector.extract_strided_slice %59 {offsets = [0, 0], sizes = [8, 18], strides = [1, 1]} : vector<8x288xf32> to vector<8x18xf32>
    %cst_53 = arith.constant dense<0.000000e+00> : vector<8x32xf32>
    %62 = tpu.matmul %61, %60, %cst_53 {dimension_numbers = #tpu.dot_dimension_numbers<[1], [0], [0], [1], [0, 0, 1, 1], [], []>} : vector<8x18xf32>, vector<18x32xf32>, vector<8x32xf32> -> vector<8x32xf32>
    %63 = vector.extract_strided_slice %59 {offsets = [0, 18], sizes = [8, 18], strides = [1, 1]} : vector<8x288xf32> to vector<8x18xf32>
    %cst_54 = arith.constant dense<0.000000e+00> : vector<8x32xf32>
    %64 = tpu.matmul %63, %60, %cst_54 {dimension_numbers = #tpu.dot_dimension_numbers<[1], [0], [0], [1], [0, 0, 1, 1], [], []>} : vector<8x18xf32>, vector<18x32xf32>, vector<8x32xf32> -> vector<8x32xf32>
    %65 = vector.extract_strided_slice %59 {offsets = [0, 36], sizes = [8, 18], strides = [1, 1]} : vector<8x288xf32> to vector<8x18xf32>
    %cst_55 = arith.constant dense<0.000000e+00> : vector<8x32xf32>
    %66 = tpu.matmul %65, %60, %cst_55 {dimension_numbers = #tpu.dot_dimension_numbers<[1], [0], [0], [1], [0, 0, 1, 1], [], []>} : vector<8x18xf32>, vector<18x32xf32>, vector<8x32xf32> -> vector<8x32xf32>
    %67 = vector.extract_strided_slice %59 {offsets = [0, 54], sizes = [8, 18], strides = [1, 1]} : vector<8x288xf32> to vector<8x18xf32>
    %cst_56 = arith.constant dense<0.000000e+00> : vector<8x32xf32>
    %68 = tpu.matmul %67, %60, %cst_56 {dimension_numbers = #tpu.dot_dimension_numbers<[1], [0], [0], [1], [0, 0, 1, 1], [], []>} : vector<8x18xf32>, vector<18x32xf32>, vector<8x32xf32> -> vector<8x32xf32>
    %69 = vector.extract_strided_slice %59 {offsets = [0, 72], sizes = [8, 18], strides = [1, 1]} : vector<8x288xf32> to vector<8x18xf32>
    %cst_57 = arith.constant dense<0.000000e+00> : vector<8x32xf32>
    %70 = tpu.matmul %69, %60, %cst_57 {dimension_numbers = #tpu.dot_dimension_numbers<[1], [0], [0], [1], [0, 0, 1, 1], [], []>} : vector<8x18xf32>, vector<18x32xf32>, vector<8x32xf32> -> vector<8x32xf32>
    %71 = vector.extract_strided_slice %59 {offsets = [0, 90], sizes = [8, 18], strides = [1, 1]} : vector<8x288xf32> to vector<8x18xf32>
    %cst_58 = arith.constant dense<0.000000e+00> : vector<8x32xf32>
    %72 = tpu.matmul %71, %60, %cst_58 {dimension_numbers = #tpu.dot_dimension_numbers<[1], [0], [0], [1], [0, 0, 1, 1], [], []>} : vector<8x18xf32>, vector<18x32xf32>, vector<8x32xf32> -> vector<8x32xf32>
    %73 = vector.extract_strided_slice %59 {offsets = [0, 108], sizes = [8, 18], strides = [1, 1]} : vector<8x288xf32> to vector<8x18xf32>
    %cst_59 = arith.constant dense<0.000000e+00> : vector<8x32xf32>
    %74 = tpu.matmul %73, %60, %cst_59 {dimension_numbers = #tpu.dot_dimension_numbers<[1], [0], [0], [1], [0, 0, 1, 1], [], []>} : vector<8x18xf32>, vector<18x32xf32>, vector<8x32xf32> -> vector<8x32xf32>
    %75 = vector.extract_strided_slice %59 {offsets = [0, 126], sizes = [8, 18], strides = [1, 1]} : vector<8x288xf32> to vector<8x18xf32>
    %cst_60 = arith.constant dense<0.000000e+00> : vector<8x32xf32>
    %76 = tpu.matmul %75, %60, %cst_60 {dimension_numbers = #tpu.dot_dimension_numbers<[1], [0], [0], [1], [0, 0, 1, 1], [], []>} : vector<8x18xf32>, vector<18x32xf32>, vector<8x32xf32> -> vector<8x32xf32>
    %77 = vector.extract_strided_slice %59 {offsets = [0, 144], sizes = [8, 18], strides = [1, 1]} : vector<8x288xf32> to vector<8x18xf32>
    %cst_61 = arith.constant dense<0.000000e+00> : vector<8x32xf32>
    %78 = tpu.matmul %77, %60, %cst_61 {dimension_numbers = #tpu.dot_dimension_numbers<[1], [0], [0], [1], [0, 0, 1, 1], [], []>} : vector<8x18xf32>, vector<18x32xf32>, vector<8x32xf32> -> vector<8x32xf32>
    %79 = vector.extract_strided_slice %59 {offsets = [0, 162], sizes = [8, 18], strides = [1, 1]} : vector<8x288xf32> to vector<8x18xf32>
    %cst_62 = arith.constant dense<0.000000e+00> : vector<8x32xf32>
    %80 = tpu.matmul %79, %60, %cst_62 {dimension_numbers = #tpu.dot_dimension_numbers<[1], [0], [0], [1], [0, 0, 1, 1], [], []>} : vector<8x18xf32>, vector<18x32xf32>, vector<8x32xf32> -> vector<8x32xf32>
    %81 = vector.extract_strided_slice %59 {offsets = [0, 180], sizes = [8, 18], strides = [1, 1]} : vector<8x288xf32> to vector<8x18xf32>
    %cst_63 = arith.constant dense<0.000000e+00> : vector<8x32xf32>
    %82 = tpu.matmul %81, %60, %cst_63 {dimension_numbers = #tpu.dot_dimension_numbers<[1], [0], [0], [1], [0, 0, 1, 1], [], []>} : vector<8x18xf32>, vector<18x32xf32>, vector<8x32xf32> -> vector<8x32xf32>
    %83 = vector.extract_strided_slice %59 {offsets = [0, 198], sizes = [8, 18], strides = [1, 1]} : vector<8x288xf32> to vector<8x18xf32>
    %cst_64 = arith.constant dense<0.000000e+00> : vector<8x32xf32>
    %84 = tpu.matmul %83, %60, %cst_64 {dimension_numbers = #tpu.dot_dimension_numbers<[1], [0], [0], [1], [0, 0, 1, 1], [], []>} : vector<8x18xf32>, vector<18x32xf32>, vector<8x32xf32> -> vector<8x32xf32>
    %85 = vector.extract_strided_slice %59 {offsets = [0, 216], sizes = [8, 18], strides = [1, 1]} : vector<8x288xf32> to vector<8x18xf32>
    %cst_65 = arith.constant dense<0.000000e+00> : vector<8x32xf32>
    %86 = tpu.matmul %85, %60, %cst_65 {dimension_numbers = #tpu.dot_dimension_numbers<[1], [0], [0], [1], [0, 0, 1, 1], [], []>} : vector<8x18xf32>, vector<18x32xf32>, vector<8x32xf32> -> vector<8x32xf32>
    %87 = vector.extract_strided_slice %59 {offsets = [0, 234], sizes = [8, 18], strides = [1, 1]} : vector<8x288xf32> to vector<8x18xf32>
    %cst_66 = arith.constant dense<0.000000e+00> : vector<8x32xf32>
    %88 = tpu.matmul %87, %60, %cst_66 {dimension_numbers = #tpu.dot_dimension_numbers<[1], [0], [0], [1], [0, 0, 1, 1], [], []>} : vector<8x18xf32>, vector<18x32xf32>, vector<8x32xf32> -> vector<8x32xf32>
    %89 = vector.extract_strided_slice %59 {offsets = [0, 252], sizes = [8, 18], strides = [1, 1]} : vector<8x288xf32> to vector<8x18xf32>
    %cst_67 = arith.constant dense<0.000000e+00> : vector<8x32xf32>
    %90 = tpu.matmul %89, %60, %cst_67 {dimension_numbers = #tpu.dot_dimension_numbers<[1], [0], [0], [1], [0, 0, 1, 1], [], []>} : vector<8x18xf32>, vector<18x32xf32>, vector<8x32xf32> -> vector<8x32xf32>
    %91 = vector.extract_strided_slice %59 {offsets = [0, 270], sizes = [8, 18], strides = [1, 1]} : vector<8x288xf32> to vector<8x18xf32>
    %cst_68 = arith.constant dense<0.000000e+00> : vector<8x32xf32>
    %92 = tpu.matmul %91, %60, %cst_68 {dimension_numbers = #tpu.dot_dimension_numbers<[1], [0], [0], [1], [0, 0, 1, 1], [], []>} : vector<8x18xf32>, vector<18x32xf32>, vector<8x32xf32> -> vector<8x32xf32>
    %93 = vector.shape_cast %62 : vector<8x32xf32> to vector<1x8x32xf32>
    %94 = vector.shape_cast %64 : vector<8x32xf32> to vector<1x8x32xf32>
    %95 = vector.shape_cast %66 : vector<8x32xf32> to vector<1x8x32xf32>
    %96 = vector.shape_cast %68 : vector<8x32xf32> to vector<1x8x32xf32>
    %97 = vector.shape_cast %70 : vector<8x32xf32> to vector<1x8x32xf32>
    %98 = vector.shape_cast %72 : vector<8x32xf32> to vector<1x8x32xf32>
    %99 = vector.shape_cast %74 : vector<8x32xf32> to vector<1x8x32xf32>
    %100 = vector.shape_cast %76 : vector<8x32xf32> to vector<1x8x32xf32>
    %101 = vector.shape_cast %78 : vector<8x32xf32> to vector<1x8x32xf32>
    %102 = vector.shape_cast %80 : vector<8x32xf32> to vector<1x8x32xf32>
    %103 = vector.shape_cast %82 : vector<8x32xf32> to vector<1x8x32xf32>
    %104 = vector.shape_cast %84 : vector<8x32xf32> to vector<1x8x32xf32>
    %105 = vector.shape_cast %86 : vector<8x32xf32> to vector<1x8x32xf32>
    %106 = vector.shape_cast %88 : vector<8x32xf32> to vector<1x8x32xf32>
    %107 = vector.shape_cast %90 : vector<8x32xf32> to vector<1x8x32xf32>
    %108 = vector.shape_cast %92 : vector<8x32xf32> to vector<1x8x32xf32>
    %109 = tpu.concatenate %93, %94, %95, %96, %97, %98, %99, %100, %101, %102, %103, %104, %105, %106, %107, %108 in 0 : vector<1x8x32xf32>, vector<1x8x32xf32>, vector<1x8x32xf32>, vector<1x8x32xf32>, vector<1x8x32xf32>, vector<1x8x32xf32>, vector<1x8x32xf32>, vector<1x8x32xf32>, vector<1x8x32xf32>, vector<1x8x32xf32>, vector<1x8x32xf32>, vector<1x8x32xf32>, vector<1x8x32xf32>, vector<1x8x32xf32>, vector<1x8x32xf32>, vector<1x8x32xf32> -> vector<16x8x32xf32>
    %c0_69 = arith.constant 0 : index
    %c0_70 = arith.constant 0 : index
    %110 = vector.load %arg4[%c0_69, %c0_70] : memref<32x16xf32, #tpu.memory_space<vmem>>, vector<32x16xf32>
    %111 = vector.extract_strided_slice %109 {offsets = [0, 0, 0], sizes = [16, 1, 32], strides = [1, 1, 1]} : vector<16x8x32xf32> to vector<16x1x32xf32>
    %112 = vector.shape_cast %111 : vector<16x1x32xf32> to vector<16x32xf32>
    %cst_71 = arith.constant dense<0.000000e+00> : vector<32x32xf32>
    %113 = tpu.matmul %110, %112, %cst_71 {dimension_numbers = #tpu.dot_dimension_numbers<[1], [0], [0], [1], [0, 0, 1, 1], [], []>} : vector<32x16xf32>, vector<16x32xf32>, vector<32x32xf32> -> vector<32x32xf32>
    %c0_72 = arith.constant 0 : index
    %c0_73 = arith.constant 0 : index
    %c0_74 = arith.constant 0 : index
    %c0_75 = arith.constant 0 : index
    %114 = vector.load %arg6[%c0_72, %c0_73, %c0_74, %c0_75] : memref<1x8x32x32xf32, #tpu.memory_space<vmem>>, vector<1x1x32x32xf32>
    %115 = vector.shape_cast %114 : vector<1x1x32x32xf32> to vector<32x32xf32>
    %116 = vector.shape_cast %113 : vector<32x32xf32> to vector<1x1x32x32xf32>
    tpu.vector_store %arg6[%c0_72, %c0_73, %c0_74, %c0_75], %116 {strides = array<i32>} : memref<1x8x32x32xf32, #tpu.memory_space<vmem>>, vector<1x1x32x32xf32>,
    %117 = vector.extract_strided_slice %109 {offsets = [0, 1, 0], sizes = [16, 1, 32], strides = [1, 1, 1]} : vector<16x8x32xf32> to vector<16x1x32xf32>
    %118 = vector.shape_cast %117 : vector<16x1x32xf32> to vector<16x32xf32>
    %cst_76 = arith.constant dense<0.000000e+00> : vector<32x32xf32>
    %119 = tpu.matmul %110, %118, %cst_76 {dimension_numbers = #tpu.dot_dimension_numbers<[1], [0], [0], [1], [0, 0, 1, 1], [], []>} : vector<32x16xf32>, vector<16x32xf32>, vector<32x32xf32> -> vector<32x32xf32>
    %c0_77 = arith.constant 0 : index
    %c1_78 = arith.constant 1 : index
    %c0_79 = arith.constant 0 : index
    %c0_80 = arith.constant 0 : index
    %120 = vector.load %arg6[%c0_77, %c1_78, %c0_79, %c0_80] : memref<1x8x32x32xf32, #tpu.memory_space<vmem>>, vector<1x1x32x32xf32>
    %121 = vector.shape_cast %120 : vector<1x1x32x32xf32> to vector<32x32xf32>
    %122 = vector.shape_cast %119 : vector<32x32xf32> to vector<1x1x32x32xf32>
    tpu.vector_store %arg6[%c0_77, %c1_78, %c0_79, %c0_80], %122 {strides = array<i32>} : memref<1x8x32x32xf32, #tpu.memory_space<vmem>>, vector<1x1x32x32xf32>,
    %123 = vector.extract_strided_slice %109 {offsets = [0, 2, 0], sizes = [16, 1, 32], strides = [1, 1, 1]} : vector<16x8x32xf32> to vector<16x1x32xf32>
    %124 = vector.shape_cast %123 : vector<16x1x32xf32> to vector<16x32xf32>
    %cst_81 = arith.constant dense<0.000000e+00> : vector<32x32xf32>
    %125 = tpu.matmul %110, %124, %cst_81 {dimension_numbers = #tpu.dot_dimension_numbers<[1], [0], [0], [1], [0, 0, 1, 1], [], []>} : vector<32x16xf32>, vector<16x32xf32>, vector<32x32xf32> -> vector<32x32xf32>
    %c0_82 = arith.constant 0 : index
    %c2_83 = arith.constant 2 : index
    %c0_84 = arith.constant 0 : index
    %c0_85 = arith.constant 0 : index
    %126 = vector.load %arg6[%c0_82, %c2_83, %c0_84, %c0_85] : memref<1x8x32x32xf32, #tpu.memory_space<vmem>>, vector<1x1x32x32xf32>
    %127 = vector.shape_cast %126 : vector<1x1x32x32xf32> to vector<32x32xf32>
    %128 = vector.shape_cast %125 : vector<32x32xf32> to vector<1x1x32x32xf32>
    tpu.vector_store %arg6[%c0_82, %c2_83, %c0_84, %c0_85], %128 {strides = array<i32>} : memref<1x8x32x32xf32, #tpu.memory_space<vmem>>, vector<1x1x32x32xf32>,
    %129 = vector.extract_strided_slice %109 {offsets = [0, 3, 0], sizes = [16, 1, 32], strides = [1, 1, 1]} : vector<16x8x32xf32> to vector<16x1x32xf32>
    %130 = vector.shape_cast %129 : vector<16x1x32xf32> to vector<16x32xf32>
    %cst_86 = arith.constant dense<0.000000e+00> : vector<32x32xf32>
    %131 = tpu.matmul %110, %130, %cst_86 {dimension_numbers = #tpu.dot_dimension_numbers<[1], [0], [0], [1], [0, 0, 1, 1], [], []>} : vector<32x16xf32>, vector<16x32xf32>, vector<32x32xf32> -> vector<32x32xf32>
    %c0_87 = arith.constant 0 : index
    %c3_88 = arith.constant 3 : index
    %c0_89 = arith.constant 0 : index
    %c0_90 = arith.constant 0 : index
    %132 = vector.load %arg6[%c0_87, %c3_88, %c0_89, %c0_90] : memref<1x8x32x32xf32, #tpu.memory_space<vmem>>, vector<1x1x32x32xf32>
    %133 = vector.shape_cast %132 : vector<1x1x32x32xf32> to vector<32x32xf32>
    %134 = vector.shape_cast %131 : vector<32x32xf32> to vector<1x1x32x32xf32>
    tpu.vector_store %arg6[%c0_87, %c3_88, %c0_89, %c0_90], %134 {strides = array<i32>} : memref<1x8x32x32xf32, #tpu.memory_space<vmem>>, vector<1x1x32x32xf32>,
    %135 = vector.extract_strided_slice %109 {offsets = [0, 4, 0], sizes = [16, 1, 32], strides = [1, 1, 1]} : vector<16x8x32xf32> to vector<16x1x32xf32>
    %136 = vector.shape_cast %135 : vector<16x1x32xf32> to vector<16x32xf32>
    %cst_91 = arith.constant dense<0.000000e+00> : vector<32x32xf32>
    %137 = tpu.matmul %110, %136, %cst_91 {dimension_numbers = #tpu.dot_dimension_numbers<[1], [0], [0], [1], [0, 0, 1, 1], [], []>} : vector<32x16xf32>, vector<16x32xf32>, vector<32x32xf32> -> vector<32x32xf32>
    %c0_92 = arith.constant 0 : index
    %c4_93 = arith.constant 4 : index
    %c0_94 = arith.constant 0 : index
    %c0_95 = arith.constant 0 : index
    %138 = vector.load %arg6[%c0_92, %c4_93, %c0_94, %c0_95] : memref<1x8x32x32xf32, #tpu.memory_space<vmem>>, vector<1x1x32x32xf32>
    %139 = vector.shape_cast %138 : vector<1x1x32x32xf32> to vector<32x32xf32>
    %140 = vector.shape_cast %137 : vector<32x32xf32> to vector<1x1x32x32xf32>
    tpu.vector_store %arg6[%c0_92, %c4_93, %c0_94, %c0_95], %140 {strides = array<i32>} : memref<1x8x32x32xf32, #tpu.memory_space<vmem>>, vector<1x1x32x32xf32>,
    %141 = vector.extract_strided_slice %109 {offsets = [0, 5, 0], sizes = [16, 1, 32], strides = [1, 1, 1]} : vector<16x8x32xf32> to vector<16x1x32xf32>
    %142 = vector.shape_cast %141 : vector<16x1x32xf32> to vector<16x32xf32>
    %cst_96 = arith.constant dense<0.000000e+00> : vector<32x32xf32>
    %143 = tpu.matmul %110, %142, %cst_96 {dimension_numbers = #tpu.dot_dimension_numbers<[1], [0], [0], [1], [0, 0, 1, 1], [], []>} : vector<32x16xf32>, vector<16x32xf32>, vector<32x32xf32> -> vector<32x32xf32>
    %c0_97 = arith.constant 0 : index
    %c5_98 = arith.constant 5 : index
    %c0_99 = arith.constant 0 : index
    %c0_100 = arith.constant 0 : index
    %144 = vector.load %arg6[%c0_97, %c5_98, %c0_99, %c0_100] : memref<1x8x32x32xf32, #tpu.memory_space<vmem>>, vector<1x1x32x32xf32>
    %145 = vector.shape_cast %144 : vector<1x1x32x32xf32> to vector<32x32xf32>
    %146 = vector.shape_cast %143 : vector<32x32xf32> to vector<1x1x32x32xf32>
    tpu.vector_store %arg6[%c0_97, %c5_98, %c0_99, %c0_100], %146 {strides = array<i32>} : memref<1x8x32x32xf32, #tpu.memory_space<vmem>>, vector<1x1x32x32xf32>,
    %147 = vector.extract_strided_slice %109 {offsets = [0, 6, 0], sizes = [16, 1, 32], strides = [1, 1, 1]} : vector<16x8x32xf32> to vector<16x1x32xf32>
    %148 = vector.shape_cast %147 : vector<16x1x32xf32> to vector<16x32xf32>
    %cst_101 = arith.constant dense<0.000000e+00> : vector<32x32xf32>
    %149 = tpu.matmul %110, %148, %cst_101 {dimension_numbers = #tpu.dot_dimension_numbers<[1], [0], [0], [1], [0, 0, 1, 1], [], []>} : vector<32x16xf32>, vector<16x32xf32>, vector<32x32xf32> -> vector<32x32xf32>
    %c0_102 = arith.constant 0 : index
    %c6_103 = arith.constant 6 : index
    %c0_104 = arith.constant 0 : index
    %c0_105 = arith.constant 0 : index
    %150 = vector.load %arg6[%c0_102, %c6_103, %c0_104, %c0_105] : memref<1x8x32x32xf32, #tpu.memory_space<vmem>>, vector<1x1x32x32xf32>
    %151 = vector.shape_cast %150 : vector<1x1x32x32xf32> to vector<32x32xf32>
    %152 = vector.shape_cast %149 : vector<32x32xf32> to vector<1x1x32x32xf32>
    tpu.vector_store %arg6[%c0_102, %c6_103, %c0_104, %c0_105], %152 {strides = array<i32>} : memref<1x8x32x32xf32, #tpu.memory_space<vmem>>, vector<1x1x32x32xf32>,
    %153 = vector.extract_strided_slice %109 {offsets = [0, 7, 0], sizes = [16, 1, 32], strides = [1, 1, 1]} : vector<16x8x32xf32> to vector<16x1x32xf32>
    %154 = vector.shape_cast %153 : vector<16x1x32xf32> to vector<16x32xf32>
    %cst_106 = arith.constant dense<0.000000e+00> : vector<32x32xf32>
    %155 = tpu.matmul %110, %154, %cst_106 {dimension_numbers = #tpu.dot_dimension_numbers<[1], [0], [0], [1], [0, 0, 1, 1], [], []>} : vector<32x16xf32>, vector<16x32xf32>, vector<32x32xf32> -> vector<32x32xf32>
    %c0_107 = arith.constant 0 : index
    %c7_108 = arith.constant 7 : index
    %c0_109 = arith.constant 0 : index
    %c0_110 = arith.constant 0 : index
    %156 = vector.load %arg6[%c0_107, %c7_108, %c0_109, %c0_110] : memref<1x8x32x32xf32, #tpu.memory_space<vmem>>, vector<1x1x32x32xf32>
    %157 = vector.shape_cast %156 : vector<1x1x32x32xf32> to vector<32x32xf32>
    %158 = vector.shape_cast %155 : vector<32x32xf32> to vector<1x1x32x32xf32>
    tpu.vector_store %arg6[%c0_107, %c7_108, %c0_109, %c0_110], %158 {strides = array<i32>} : memref<1x8x32x32xf32, #tpu.memory_space<vmem>>, vector<1x1x32x32xf32>,
    return
  }
  func.func @transform_0(%arg0: i32) -> (i32, i32, i32) {
    %c0_i32 = arith.constant 0 : i32
    %c0_i32_0 = arith.constant 0 : i32
    %c0_i32_1 = arith.constant 0 : i32
    return %arg0, %c0_i32, %c0_i32_0 : i32, i32, i32
  }
  func.func @transform_1(%arg0: i32) -> (i32, i32, i32) {
    %c0_i32 = arith.constant 0 : i32
    %c0_i32_0 = arith.constant 0 : i32
    %c0_i32_1 = arith.constant 0 : i32
    %c0_i32_2 = arith.constant 0 : i32
    return %c0_i32, %c0_i32_0, %c0_i32_1 : i32, i32, i32
  }
  func.func @transform_2(%arg0: i32) -> (i32, i32) {
    %c0_i32 = arith.constant 0 : i32
    %c0_i32_0 = arith.constant 0 : i32
    %c0_i32_1 = arith.constant 0 : i32
    return %c0_i32, %c0_i32_0 : i32, i32
  }
  func.func @transform_3(%arg0: i32) -> (i32, i32) {
    %c0_i32 = arith.constant 0 : i32
    %c0_i32_0 = arith.constant 0 : i32
    %c0_i32_1 = arith.constant 0 : i32
    return %c0_i32, %c0_i32_0 : i32, i32
  }
  func.func @transform_4(%arg0: i32) -> (i32, i32) {
    %c0_i32 = arith.constant 0 : i32
    %c0_i32_0 = arith.constant 0 : i32
    %c0_i32_1 = arith.constant 0 : i32
    return %c0_i32, %c0_i32_0 : i32, i32
  }
  func.func @transform_5(%arg0: i32) -> (i32, i32, i32, i32) {
    %c0_i32 = arith.constant 0 : i32
    %c0_i32_0 = arith.constant 0 : i32
    %c0_i32_1 = arith.constant 0 : i32
    %c0_i32_2 = arith.constant 0 : i32
    return %arg0, %c0_i32, %c0_i32_0, %c0_i32_1 : i32, i32, i32, i32
  }
}

</mosaic_0001>

<llo_original>
// kernel: up_sampling_forward.1
$region0: #{up_sampling_forward.1}
  #allocation0 [shape = 'u32[]', space=smem, size = 0x4, offset = 0x4, fixed_abs, tag = 'smem constant byte address 0x4 - core index']
  #allocation1 [shape = 'u32[144,128]{1,0:T(1,128)}', space=vmem, size = 0x12000, scoped, tag = 'internal scratch']
  %s0 = inlined_call_operand.vmem [shape: f32[2,4,342], index: 0, kind: input, shape index: {}]
  %s1 = inlined_call_operand.vmem [shape: f32[9,8,4], index: 1, kind: input, shape index: {}]
  %s2 = inlined_call_operand.vmem [shape: f32[8,1], index: 2, kind: input, shape index: {}]
  %s3 = inlined_call_operand.vmem [shape: f32[32,16], index: 3, kind: input, shape index: {}]
  %s4 = inlined_call_operand.vmem [shape: f32[18,32], index: 4, kind: input, shape index: {}]
  %s5 = inlined_call_operand.hbm [shape: f32[2,8,32,32], index: 5, kind: output, shape index: {}]
  %s6 = sld [smem:[#allocation0]]
  $region53: #{up_sampling_forward.1} parent=0
    _
  %s8 = ssub.s32 1, %s6
  %s9 = scalar_select 0, %s8, %s6
  $region1: #{up_sampling_forward.1} parent=0
    #allocation2 [shape = 'u8[262144]{0}', space=vmem, size = 0x40000, scoped, tag = 'output window, operand 0']
    #allocation3 [shape = 's32[2]{0}', space=sflag, size = 0x8, scoped, tag = 'scoped memory for up_sampling_forward.1']
    %10 = vsyncpa [#allocation3], 0
    %s11 = scalar_lea.sflag [#allocation3], 1
    %12 = vsyncpa %s11, 0
    loop: start=0, step=1, limit=4
    $region2: #{up_sampling_forward.1} parent=1 // loop_pre_header
      _
    $region3: #{up_sampling_forward.1} parent=1 // loop_header
      %s14 = sphi 0, %s18
      %p15 = scmp.ge.s32.totalorder %s14, 4
      %s24 = sphi 0, %s26
      %s27 = sphi 0, %s24
      %s28 = sphi 0, %s27
      %s44 = sphi 0, %s28
      %s48 = sphi 0, %s48
      %s50 = sphi 0, %s48
      %s51 = sphi 0, %s50
      %s65 = sphi 0, %s51
      %s69 = sphi 0, %s69
      %s71 = sphi 0, %s69
      %s72 = sphi 0, %s71
      %s86 = sphi 0, %s72
      %s90 = sphi 0, %s90
      %s92 = sphi 0, %s90
      %s93 = sphi 0, %s92
      %s107 = sphi 0, %s93
      %s111 = sphi 0, %s111
      %s113 = sphi 0, %s111
      %s114 = sphi 0, %s113
      %s128 = sphi 0, %s114
      %s134 = sphi 0, %s136
      %s137 = sphi 0, %s134
      %s138 = sphi 0, %s137
      %s154 = sphi 0, %s138
    $region4: #{up_sampling_forward.1} parent=1 // loop_header_branch
      %17 = sbr.rel (%p15) target = $region8
    $region5: #{up_sampling_forward.1} parent=1 // loop_body
      %s19 = ssub.s32 %s14, 1
      %s20 = ssub.s32 %s14, 2
      %s21 = sadd.s32 %s14, 1
      %s22 = ssub.s32 %s14, %s21
      %p23 = scmp.eq.s32.totalorder %s22, 0
      %s25 = sadd.s32 %s24, 1
      %s26 = scalar_select %p23, %s24, %s25
      %p29 = pneg %p23
      %p30 = scmp.eq.s32.totalorder %s14, 1
      %p31 = por %p29, %p30
      %p32 = scmp.ne.s32.totalorder %s24, %s27
      %p33 = scmp.eq.s32.totalorder %s14, 0
      %p34 = por %p32, %p33
      %p35 = scmp.ne.s32.totalorder %s24, %s27
      %p36 = scmp.eq.s32.totalorder %s19, 1
      %p37 = por %p35, %p36
      %p38 = scmp.ne.s32.totalorder %s27, %s28
      %p39 = scmp.eq.s32.totalorder %s19, 0
      %p40 = por %p38, %p39
      %p41 = scmp.ne.s32.totalorder %s27, %s28
      %p42 = scmp.eq.s32.totalorder %s20, 1
      %p43 = por %p41, %p42
      %p45 = scmp.ne.s32.totalorder %s28, %s44
      %p46 = scmp.eq.s32.totalorder %s20, 0
      %p47 = por %p45, %p46
      %s49 = sadd.s32 %s48, 1
      %p52 = scmp.eq.s32.totalorder %s14, 1
      %p53 = scmp.ne.s32.totalorder %s48, %s50
      %p54 = scmp.eq.s32.totalorder %s14, 0
      %p55 = por %p53, %p54
      %p56 = scmp.ne.s32.totalorder %s48, %s50
      %p57 = scmp.eq.s32.totalorder %s19, 1
      %p58 = por %p56, %p57
      %p59 = scmp.ne.s32.totalorder %s50, %s51
      %p60 = scmp.eq.s32.totalorder %s19, 0
      %p61 = por %p59, %p60
      %p62 = scmp.ne.s32.totalorder %s50, %s51
      %p63 = scmp.eq.s32.totalorder %s20, 1
      %p64 = por %p62, %p63
      %p66 = scmp.ne.s32.totalorder %s51, %s65
      %p67 = scmp.eq.s32.totalorder %s20, 0
      %p68 = por %p66, %p67
      %s70 = sadd.s32 %s69, 1
      %p73 = scmp.eq.s32.totalorder %s14, 1
      %p74 = scmp.ne.s32.totalorder %s69, %s71
      %p75 = scmp.eq.s32.totalorder %s14, 0
      %p76 = por %p74, %p75
      %p77 = scmp.ne.s32.totalorder %s69, %s71
      %p78 = scmp.eq.s32.totalorder %s19, 1
      %p79 = por %p77, %p78
      %p80 = scmp.ne.s32.totalorder %s71, %s72
      %p81 = scmp.eq.s32.totalorder %s19, 0
      %p82 = por %p80, %p81
      %p83 = scmp.ne.s32.totalorder %s71, %s72
      %p84 = scmp.eq.s32.totalorder %s20, 1
      %p85 = por %p83, %p84
      %p87 = scmp.ne.s32.totalorder %s72, %s86
      %p88 = scmp.eq.s32.totalorder %s20, 0
      %p89 = por %p87, %p88
      %s91 = sadd.s32 %s90, 1
      %p94 = scmp.eq.s32.totalorder %s14, 1
      %p95 = scmp.ne.s32.totalorder %s90, %s92
      %p96 = scmp.eq.s32.totalorder %s14, 0
      %p97 = por %p95, %p96
      %p98 = scmp.ne.s32.totalorder %s90, %s92
      %p99 = scmp.eq.s32.totalorder %s19, 1
      %p100 = por %p98, %p99
      %p101 = scmp.ne.s32.totalorder %s92, %s93
      %p102 = scmp.eq.s32.totalorder %s19, 0
      %p103 = por %p101, %p102
      %p104 = scmp.ne.s32.totalorder %s92, %s93
      %p105 = scmp.eq.s32.totalorder %s20, 1
      %p106 = por %p104, %p105
      %p108 = scmp.ne.s32.totalorder %s93, %s107
      %p109 = scmp.eq.s32.totalorder %s20, 0
      %p110 = por %p108, %p109
      %s112 = sadd.s32 %s111, 1
      %p115 = scmp.eq.s32.totalorder %s14, 1
      %p116 = scmp.ne.s32.totalorder %s111, %s113
      %p117 = scmp.eq.s32.totalorder %s14, 0
      %p118 = por %p116, %p117
      %p119 = scmp.ne.s32.totalorder %s111, %s113
      %p120 = scmp.eq.s32.totalorder %s19, 1
      %p121 = por %p119, %p120
      %p122 = scmp.ne.s32.totalorder %s113, %s114
      %p123 = scmp.eq.s32.totalorder %s19, 0
      %p124 = por %p122, %p123
      %p125 = scmp.ne.s32.totalorder %s113, %s114
      %p126 = scmp.eq.s32.totalorder %s20, 1
      %p127 = por %p125, %p126
      %p129 = scmp.ne.s32.totalorder %s114, %s128
      %p130 = scmp.eq.s32.totalorder %s20, 0
      %p131 = por %p129, %p130
      %s132 = ssub.s32 %s14, %s21
      %p133 = scmp.eq.s32.totalorder %s132, 0
      %s135 = sadd.s32 %s134, 1
      %s136 = scalar_select %p133, %s134, %s135
      %p139 = pneg %p133
      %p140 = scmp.eq.s32.totalorder %s14, 1
      %p141 = por %p139, %p140
      %p142 = scmp.ne.s32.totalorder %s134, %s137
      %p143 = scmp.eq.s32.totalorder %s14, 0
      %p144 = por %p142, %p143
      %p145 = scmp.ne.s32.totalorder %s134, %s137
      %p146 = scmp.eq.s32.totalorder %s19, 1
      %p147 = por %p145, %p146
      %p148 = scmp.ne.s32.totalorder %s137, %s138
      %p149 = scmp.eq.s32.totalorder %s19, 0
      %p150 = por %p148, %p149
      %p151 = scmp.ne.s32.totalorder %s137, %s138
      %p152 = scmp.eq.s32.totalorder %s20, 1
      %p153 = por %p151, %p152
      %p155 = scmp.ne.s32.totalorder %s138, %s154
      %p156 = scmp.eq.s32.totalorder %s20, 0
      %p157 = por %p155, %p156
      %p158 = scmp.le.s32.totalorder 1, %s14
      %p159 = scmp.lt.s32.totalorder %s14, 3
      %p160 = pnand %p158, %p159
      %p161 = pneg %p160
      // Predicated region
      $region9: #{up_sampling_forward.1} parent=5 // pred_check
        _
      $region10: #{up_sampling_forward.1} parent=5 // pred_check_branch
        %163 = sbr.rel (%p160) target = $region12
      $region11: #{up_sampling_forward.1} parent=5 // pred_region
        %s164 = ssub.s32 %s14, 1
        // Predicated region
        $region13: #{up_sampling_forward.1} parent=11 // pred_check
          %p165 = pneg %p61
        $region14: #{up_sampling_forward.1} parent=11 // pred_check_branch
          %167 = sbr.rel (%p165) target = $region16
        $region15: #{up_sampling_forward.1} parent=11 // pred_region
          _
        $region16: #{up_sampling_forward.1} parent=11 // pred_fallthru
          _
        // Predicated region
        $region17: #{up_sampling_forward.1} parent=11 // pred_check
          %p168 = pneg %p82
        $region18: #{up_sampling_forward.1} parent=11 // pred_check_branch
          %170 = sbr.rel (%p168) target = $region20
        $region19: #{up_sampling_forward.1} parent=11 // pred_region
          _
        $region20: #{up_sampling_forward.1} parent=11 // pred_fallthru
          _
        // Predicated region
        $region21: #{up_sampling_forward.1} parent=11 // pred_check
          %p171 = pneg %p103
        $region22: #{up_sampling_forward.1} parent=11 // pred_check_branch
          %173 = sbr.rel (%p171) target = $region24
        $region23: #{up_sampling_forward.1} parent=11 // pred_region
          _
        $region24: #{up_sampling_forward.1} parent=11 // pred_fallthru
          _
        // Predicated region
        $region25: #{up_sampling_forward.1} parent=11 // pred_check
          %p174 = pneg %p124
        $region26: #{up_sampling_forward.1} parent=11 // pred_check_branch
          %176 = sbr.rel (%p174) target = $region28
        $region27: #{up_sampling_forward.1} parent=11 // pred_region
          _
        $region28: #{up_sampling_forward.1} parent=11 // pred_fallthru
          _
      $region12: #{up_sampling_forward.1} parent=5 // pred_fallthru
        _
      %p177 = scmp.lt.s32.totalorder %s14, 2
      // Predicated region
      $region29: #{up_sampling_forward.1} parent=5 // pred_check
        %p178 = pneg %p177
      $region30: #{up_sampling_forward.1} parent=5 // pred_check_branch
        %180 = sbr.rel (%p178) target = $region32
      $region31: #{up_sampling_forward.1} parent=5 // pred_region
        // Predicated region
        $region33: #{up_sampling_forward.1} parent=31 // pred_check
          %p181 = pneg %p34
        $region34: #{up_sampling_forward.1} parent=31 // pred_check_branch
          %183 = sbr.rel (%p181) target = $region36
        $region35: #{up_sampling_forward.1} parent=31 // pred_region
          %p184 = scmp.lt.s32.totalorder %s14, 1
          %s185 = scalar_select %p184, %s14, 1
          %s186 = smul.addr %s185, 3
          %s187 = smul.addr %s186, 4
          %s188 = scalar_lea.vmem %s0, %s187
        $region36: #{up_sampling_forward.1} parent=31 // pred_fallthru
          _
      $region32: #{up_sampling_forward.1} parent=5 // pred_fallthru
        _
      %p189 = scmp.le.s32.totalorder 1, %s14
      %p190 = scmp.lt.s32.totalorder %s14, 3
      %p191 = pnand %p189, %p190
      %p192 = pneg %p191
      // Predicated region
      $region37: #{up_sampling_forward.1} parent=5 // pred_check
        _
      $region38: #{up_sampling_forward.1} parent=5 // pred_check_branch
        %194 = sbr.rel (%p191) target = $region40
      $region39: #{up_sampling_forward.1} parent=5 // pred_region
        %s195 = ssub.s32 %s14, 1
        %p196 = scmp.lt.s32.totalorder %s19, 1
        %s197 = scalar_select %p196, %s19, 1
        %s198 = smul.addr %s197, 3
        %s199 = smul.addr %s198, 4
        %s200 = scalar_lea.vmem %s0, %s199
        %p201 = pneg %p40
        %p202 = pneg %p37
        %p203 = pneg %p61
        %p204 = pneg %p58
        %p205 = pneg %p82
        %p206 = pneg %p79
        %p207 = pneg %p103
        %p208 = pneg %p100
        %p209 = pneg %p124
        %p210 = pneg %p121
        %p211 = pneg %p150
        %p212 = pneg %p147
        %s213 = sand.u32 %s137, 1
        %s214 = scalar_lea.sflag [#allocation3], %s213
        %s215 = sand.u32 %s137, 1
        %s216 = smul.addr %s215, 256
        %s217 = scalar_lea.vmem [#allocation2], %s216
        %p218 = scmp.lt.s32.totalorder %s19, 1
        %s219 = scalar_select %p218, %s19, 1
        %s220 = smul.addr %s219, 3
        %s221 = smul.addr %s220, 4
        %s222 = scalar_lea.vmem %s0, %s221
        %v223 = vld [vmem:[%s222] sm:$0xff]
        %v224 = vld [vmem:[%s222 + $0x8] sm:$0xf]
        %v225 = vld [vmem:[%s1] sm:$0xff]
        %s226 = scalar_lea.vmem %s1, 8
        %v227 = vld [vmem:[%s226] sm:$0xff]
        %v230 = vcombine.high %v223, %v223
        %231 = vrot.lane.b32.xlu0 %v223, 127
        %v232 = vpop.permute.xlu0 %231
        %233 = vrot.lane.b32.xlu0 %v230, 127
        %v234 = vpop.permute.xlu0 %233
        %235 = vrot.lane.b32.xlu0 %v224, 127
        %v236 = vpop.permute.xlu0 %235
        %vm237 = vcmask 1039360
        %v238 = vsel %vm237, %v232, %v234
        %v239 = vsel %vm237, %v234, %v236
        %vm240 = vcmask 31744
        %v242 = vsel %vm240, %v227, 0
        %vm244 = vcmask 1043456
        %v245 = vsel %vm244, %v238, 0
        %v247 = vsel %vm244, %v239, 0
        %v249 = vsel %vm244, %v236, 0
        %251 = vmatprep.subr.mxu0 %v247
        %252 = vmatpush1.msra.mxu0 %v245
        %253 = vmatprep.subr.mxu0 0.0
        %254 = vmatpush1.msra.mxu0 0.0
        %255 = vmatprep.subr.mxu0 0.0
        %256 = vmatpush1.msra.mxu0 0.0
        %257 = vmatprep.subr.mxu0 0.0
        %258 = vmatpush1.msra.mxu0 0.0
        %259 = vmatprep.subr.mxu0 0.0
        %260 = vmatpush1.msra.mxu0 0.0
        %261 = vmatprep.subr.mxu0 0.0
        %262 = vmatpush1.msra.mxu0 0.0
        %263 = vmatprep.subr.mxu0 0.0
        %264 = vmatpush1.msra.mxu0 0.0
        %265 = vmatprep.subr.mxu0 0.0
        %266 = vmatpush1.msra.mxu0 0.0
        %267 = vmatprep.subr.mxu0 0.0
        %268 = vmatpush1.msra.mxu0 0.0
        %269 = vmatprep.subr.mxu0 0.0
        %270 = vmatpush1.msra.mxu0 0.0
        %271 = vmatprep.subr.mxu0 0.0
        %272 = vmatpush1.msra.mxu0 0.0
        %273 = vmatprep.subr.mxu0 0.0
        %274 = vmatpush1.msra.mxu0 0.0
        %275 = vmatprep.subr.mxu0 0.0
        %276 = vmatpush1.msra.mxu0 0.0
        %277 = vmatprep.subr.mxu0 0.0
        %278 = vmatpush1.msra.mxu0 0.0
        %279 = vmatprep.subr.mxu0 0.0
        %280 = vmatpush1.msra.mxu0 0.0
        %281 = vmatprep.subr.mxu0 0.0
        %282 = vmatpush1.msra.mxu0 0.0
        %283 = vmatprep.subr.mxu0 0.0
        %284 = vmatpush1.msra.mxu0 0.0
        %285 = vmatprep.subr.mxu0 0.0
        %286 = vmatpush1.msra.mxu0 0.0
        %287 = vmatprep.subr.mxu0 0.0
        %288 = vmatpush1.msra.mxu0 0.0
        %289 = vmatprep.subr.mxu0 0.0
        %290 = vmatpush1.msra.mxu0 0.0
        %291 = vmatprep.subr.mxu0 0.0
        %292 = vmatpush1.msra.mxu0 0.0
        %293 = vmatprep.subr.mxu0 0.0
        %294 = vmatpush1.msra.mxu0 0.0
        %295 = vmatprep.subr.mxu0 0.0
        %296 = vmatpush1.msra.mxu0 0.0
        %297 = vmatprep.subr.mxu0 0.0
        %298 = vmatpush1.msra.mxu0 0.0
        %299 = vmatprep.subr.mxu0 0.0
        %300 = vmatpush1.msra.mxu0 0.0
        %301 = vmatprep.subr.mxu0 0.0
        %302 = vmatpush1.msra.mxu0 0.0
        %303 = vmatprep.subr.mxu0 0.0
        %304 = vmatpush1.msra.mxu0 0.0
        %305 = vmatprep.subr.mxu0 0.0
        %306 = vmatpush1.msra.mxu0 0.0
        %307 = vmatprep.subr.mxu0 0.0
        %308 = vmatpush1.msra.mxu0 0.0
        %309 = vmatprep.subr.mxu0 0.0
        %310 = vmatpush1.msra.mxu0 0.0
        %311 = vmatprep.subr.mxu0 0.0
        %312 = vmatpush1.msra.mxu0 0.0
        %313 = vmatprep.subr.mxu0 0.0
        %314 = vmatpush1.msra.mxu0 0.0
        %315 = vmatprep.mubr.f32.mxu0 0.0
        %316 = vmatmul.mubr.f32.gmra.mrb[0].mxu0 %v242
        %v317 = vpop.f32.mrb[0].mxu0
        %v318 = vadd.f32 0.0, %v317
        %v319 = vpop.f32.mrb[0].mxu0
        %v320 = vadd.f32 0.0, %v319
        %321 = vdwg.mxu0
        %322 = vmatprep.subr.mxu0 0.0
        %323 = vmatpush1.msra.mxu0 %v249
        %324 = vmatprep.subr.mxu0 0.0
        %325 = vmatpush1.msra.mxu0 0.0
        %326 = vmatprep.subr.mxu0 0.0
        %327 = vmatpush1.msra.mxu0 0.0
        %328 = vmatprep.subr.mxu0 0.0
        %329 = vmatpush1.msra.mxu0 0.0
        %330 = vmatprep.subr.mxu0 0.0
        %331 = vmatpush1.msra.mxu0 0.0
        %332 = vmatprep.subr.mxu0 0.0
        %333 = vmatpush1.msra.mxu0 0.0
        %334 = vmatprep.subr.mxu0 0.0
        %335 = vmatpush1.msra.mxu0 0.0
        %336 = vmatprep.subr.mxu0 0.0
        %337 = vmatpush1.msra.mxu0 0.0
        %338 = vmatprep.subr.mxu0 0.0
        %339 = vmatpush1.msra.mxu0 0.0
        %340 = vmatprep.subr.mxu0 0.0
        %341 = vmatpush1.msra.mxu0 0.0
        %342 = vmatprep.subr.mxu0 0.0
        %343 = vmatpush1.msra.mxu0 0.0
        %344 = vmatprep.subr.mxu0 0.0
        %345 = vmatpush1.msra.mxu0 0.0
        %346 = vmatprep.subr.mxu0 0.0
        %347 = vmatpush1.msra.mxu0 0.0
        %348 = vmatprep.subr.mxu0 0.0
        %349 = vmatpush1.msra.mxu0 0.0
        %350 = vmatprep.subr.mxu0 0.0
        %351 = vmatpush1.msra.mxu0 0.0
        %352 = vmatprep.subr.mxu0 0.0
        %353 = vmatpush1.msra.mxu0 0.0
        %354 = vmatprep.subr.mxu0 0.0
        %355 = vmatpush1.msra.mxu0 0.0
        %356 = vmatprep.subr.mxu0 0.0
        %357 = vmatpush1.msra.mxu0 0.0
        %358 = vmatprep.subr.mxu0 0.0
        %359 = vmatpush1.msra.mxu0 0.0
        %360 = vmatprep.subr.mxu0 0.0
        %361 = vmatpush1.msra.mxu0 0.0
        %362 = vmatprep.subr.mxu0 0.0
        %363 = vmatpush1.msra.mxu0 0.0
        %364 = vmatprep.subr.mxu0 0.0
        %365 = vmatpush1.msra.mxu0 0.0
        %366 = vmatprep.subr.mxu0 0.0
        %367 = vmatpush1.msra.mxu0 0.0
        %368 = vmatprep.subr.mxu0 0.0
        %369 = vmatpush1.msra.mxu0 0.0
        %370 = vmatprep.subr.mxu0 0.0
        %371 = vmatpush1.msra.mxu0 0.0
        %372 = vmatprep.subr.mxu0 0.0
        %373 = vmatpush1.msra.mxu0 0.0
        %374 = vmatprep.subr.mxu0 0.0
        %375 = vmatpush1.msra.mxu0 0.0
        %376 = vmatprep.subr.mxu0 0.0
        %377 = vmatpush1.msra.mxu0 0.0
        %378 = vmatprep.subr.mxu0 0.0
        %379 = vmatpush1.msra.mxu0 0.0
        %380 = vmatprep.subr.mxu0 0.0
        %381 = vmatpush1.msra.mxu0 0.0
        %382 = vmatprep.subr.mxu0 0.0
        %383 = vmatpush1.msra.mxu0 0.0
        %384 = vmatprep.subr.mxu0 0.0
        %385 = vmatpush1.msra.mxu0 0.0
        %386 = vmatprep.mubr.f32.mxu0 0.0
        %387 = vmatmul.mubr.f32.gmra.mrb[0].mxu0 %v242
        %v388 = vpop.f32.mrb[0].mxu0
        %v389 = vadd.f32 0.0, %v388
        %v390 = vpop.f32.mrb[0].mxu0
        %391 = vdwg.mxu0
        %v393 = vsel %vm240, %v225, 0
        %v395 = vsel %vm244, %v223, 0
        %v397 = vsel %vm244, %v230, 0
        %v399 = vsel %vm244, %v224, 0
        %401 = vmatprep.subr.mxu0 %v397
        %402 = vmatpush1.msra.mxu0 %v395
        %403 = vmatprep.subr.mxu0 0.0
        %404 = vmatpush1.msra.mxu0 0.0
        %405 = vmatprep.subr.mxu0 0.0
        %406 = vmatpush1.msra.mxu0 0.0
        %407 = vmatprep.subr.mxu0 0.0
        %408 = vmatpush1.msra.mxu0 0.0
        %409 = vmatprep.subr.mxu0 0.0
        %410 = vmatpush1.msra.mxu0 0.0
        %411 = vmatprep.subr.mxu0 0.0
        %412 = vmatpush1.msra.mxu0 0.0
        %413 = vmatprep.subr.mxu0 0.0
        %414 = vmatpush1.msra.mxu0 0.0
        %415 = vmatprep.subr.mxu0 0.0
        %416 = vmatpush1.msra.mxu0 0.0
        %417 = vmatprep.subr.mxu0 0.0
        %418 = vmatpush1.msra.mxu0 0.0
        %419 = vmatprep.subr.mxu0 0.0
        %420 = vmatpush1.msra.mxu0 0.0
        %421 = vmatprep.subr.mxu0 0.0
        %422 = vmatpush1.msra.mxu0 0.0
        %423 = vmatprep.subr.mxu0 0.0
        %424 = vmatpush1.msra.mxu0 0.0
        %425 = vmatprep.subr.mxu0 0.0
        %426 = vmatpush1.msra.mxu0 0.0
        %427 = vmatprep.subr.mxu0 0.0
        %428 = vmatpush1.msra.mxu0 0.0
        %429 = vmatprep.subr.mxu0 0.0
        %430 = vmatpush1.msra.mxu0 0.0
        %431 = vmatprep.subr.mxu0 0.0
        %432 = vmatpush1.msra.mxu0 0.0
        %433 = vmatprep.subr.mxu0 0.0
        %434 = vmatpush1.msra.mxu0 0.0
        %435 = vmatprep.subr.mxu0 0.0
        %436 = vmatpush1.msra.mxu0 0.0
        %437 = vmatprep.subr.mxu0 0.0
        %438 = vmatpush1.msra.mxu0 0.0
        %439 = vmatprep.subr.mxu0 0.0
        %440 = vmatpush1.msra.mxu0 0.0
        %441 = vmatprep.subr.mxu0 0.0
        %442 = vmatpush1.msra.mxu0 0.0
        %443 = vmatprep.subr.mxu0 0.0
        %444 = vmatpush1.msra.mxu0 0.0
        %445 = vmatprep.subr.mxu0 0.0
        %446 = vmatpush1.msra.mxu0 0.0
        %447 = vmatprep.subr.mxu0 0.0
        %448 = vmatpush1.msra.mxu0 0.0
        %449 = vmatprep.subr.mxu0 0.0
        %450 = vmatpush1.msra.mxu0 0.0
        %451 = vmatprep.subr.mxu0 0.0
        %452 = vmatpush1.msra.mxu0 0.0
        %453 = vmatprep.subr.mxu0 0.0
        %454 = vmatpush1.msra.mxu0 0.0
        %455 = vmatprep.subr.mxu0 0.0
        %456 = vmatpush1.msra.mxu0 0.0
        %457 = vmatprep.subr.mxu0 0.0
        %458 = vmatpush1.msra.mxu0 0.0
        %459 = vmatprep.subr.mxu0 0.0
        %460 = vmatpush1.msra.mxu0 0.0
        %461 = vmatprep.subr.mxu0 0.0
        %462 = vmatpush1.msra.mxu0 0.0
        %463 = vmatprep.subr.mxu0 0.0
        %464 = vmatpush1.msra.mxu0 0.0
        %465 = vmatprep.mubr.f32.mxu0 0.0
        %466 = vmatmul.mubr.f32.gmra.mrb[0].mxu0 %v393
        %v467 = vpop.f32.mrb[0].mxu0
        %v468 = vadd.f32 %v318, %v467
        %v469 = vpop.f32.mrb[0].mxu0
        %v470 = vadd.f32 %v320, %v469
        %471 = vdwg.mxu0
        %472 = vmatprep.subr.mxu0 0.0
        %473 = vmatpush1.msra.mxu0 %v399
        %474 = vmatprep.subr.mxu0 0.0
        %475 = vmatpush1.msra.mxu0 0.0
        %476 = vmatprep.subr.mxu0 0.0
        %477 = vmatpush1.msra.mxu0 0.0
        %478 = vmatprep.subr.mxu0 0.0
        %479 = vmatpush1.msra.mxu0 0.0
        %480 = vmatprep.subr.mxu0 0.0
        %481 = vmatpush1.msra.mxu0 0.0
        %482 = vmatprep.subr.mxu0 0.0
        %483 = vmatpush1.msra.mxu0 0.0
        %484 = vmatprep.subr.mxu0 0.0
        %485 = vmatpush1.msra.mxu0 0.0
        %486 = vmatprep.subr.mxu0 0.0
        %487 = vmatpush1.msra.mxu0 0.0
        %488 = vmatprep.subr.mxu0 0.0
        %489 = vmatpush1.msra.mxu0 0.0
        %490 = vmatprep.subr.mxu0 0.0
        %491 = vmatpush1.msra.mxu0 0.0
        %492 = vmatprep.subr.mxu0 0.0
        %493 = vmatpush1.msra.mxu0 0.0
        %494 = vmatprep.subr.mxu0 0.0
        %495 = vmatpush1.msra.mxu0 0.0
        %496 = vmatprep.subr.mxu0 0.0
        %497 = vmatpush1.msra.mxu0 0.0
        %498 = vmatprep.subr.mxu0 0.0
        %499 = vmatpush1.msra.mxu0 0.0
        %500 = vmatprep.subr.mxu0 0.0
        %501 = vmatpush1.msra.mxu0 0.0
        %502 = vmatprep.subr.mxu0 0.0
        %503 = vmatpush1.msra.mxu0 0.0
        %504 = vmatprep.subr.mxu0 0.0
        %505 = vmatpush1.msra.mxu0 0.0
        %506 = vmatprep.subr.mxu0 0.0
        %507 = vmatpush1.msra.mxu0 0.0
        %508 = vmatprep.subr.mxu0 0.0
        %509 = vmatpush1.msra.mxu0 0.0
        %510 = vmatprep.subr.mxu0 0.0
        %511 = vmatpush1.msra.mxu0 0.0
        %512 = vmatprep.subr.mxu0 0.0
        %513 = vmatpush1.msra.mxu0 0.0
        %514 = vmatprep.subr.mxu0 0.0
        %515 = vmatpush1.msra.mxu0 0.0
        %516 = vmatprep.subr.mxu0 0.0
        %517 = vmatpush1.msra.mxu0 0.0
        %518 = vmatprep.subr.mxu0 0.0
        %519 = vmatpush1.msra.mxu0 0.0
        %520 = vmatprep.subr.mxu0 0.0
        %521 = vmatpush1.msra.mxu0 0.0
        %522 = vmatprep.subr.mxu0 0.0
        %523 = vmatpush1.msra.mxu0 0.0
        %524 = vmatprep.subr.mxu0 0.0
        %525 = vmatpush1.msra.mxu0 0.0
        %526 = vmatprep.subr.mxu0 0.0
        %527 = vmatpush1.msra.mxu0 0.0
        %528 = vmatprep.subr.mxu0 0.0
        %529 = vmatpush1.msra.mxu0 0.0
        %530 = vmatprep.subr.mxu0 0.0
        %531 = vmatpush1.msra.mxu0 0.0
        %532 = vmatprep.subr.mxu0 0.0
        %533 = vmatpush1.msra.mxu0 0.0
        %534 = vmatprep.subr.mxu0 0.0
        %535 = vmatpush1.msra.mxu0 0.0
        %536 = vmatprep.mubr.f32.mxu0 0.0
        %537 = vmatmul.mubr.f32.gmra.mrb[0].mxu0 %v393
        %v538 = vpop.f32.mrb[0].mxu0
        %v539 = vadd.f32 %v389, %v538
        %v540 = vpop.f32.mrb[0].mxu0
        %541 = vdwg.mxu0
        %v542 = vld [vmem:[%s222] sm:$0xff]
        %v543 = vld [vmem:[%s222 + $0x8] sm:$0xf]
        %s544 = scalar_lea.vmem %s1, 16
        %v545 = vld [vmem:[%s544] sm:$0xff]
        %v548 = vcombine.high %v542, %v542
        %549 = vrot.lane.b32.xlu0 %v542, 126
        %v550 = vpop.permute.xlu0 %549
        %551 = vrot.lane.b32.xlu0 %v548, 126
        %v552 = vpop.permute.xlu0 %551
        %553 = vrot.lane.b32.xlu0 %v543, 126
        %v554 = vpop.permute.xlu0 %553
        %vm555 = vcmask 1031168
        %v556 = vsel %vm555, %v550, %v552
        %v557 = vsel %vm555, %v552, %v554
        %v559 = vsel %vm240, %v545, 0
        %v561 = vsel %vm244, %v556, 0
        %v563 = vsel %vm244, %v557, 0
        %v565 = vsel %vm244, %v554, 0
        %567 = vmatprep.subr.mxu0 %v563
        %568 = vmatpush1.msra.mxu0 %v561
        %569 = vmatprep.subr.mxu0 0.0
        %570 = vmatpush1.msra.mxu0 0.0
        %571 = vmatprep.subr.mxu0 0.0
        %572 = vmatpush1.msra.mxu0 0.0
        %573 = vmatprep.subr.mxu0 0.0
        %574 = vmatpush1.msra.mxu0 0.0
        %575 = vmatprep.subr.mxu0 0.0
        %576 = vmatpush1.msra.mxu0 0.0
        %577 = vmatprep.subr.mxu0 0.0
        %578 = vmatpush1.msra.mxu0 0.0
        %579 = vmatprep.subr.mxu0 0.0
        %580 = vmatpush1.msra.mxu0 0.0
        %581 = vmatprep.subr.mxu0 0.0
        %582 = vmatpush1.msra.mxu0 0.0
        %583 = vmatprep.subr.mxu0 0.0
        %584 = vmatpush1.msra.mxu0 0.0
        %585 = vmatprep.subr.mxu0 0.0
        %586 = vmatpush1.msra.mxu0 0.0
        %587 = vmatprep.subr.mxu0 0.0
        %588 = vmatpush1.msra.mxu0 0.0
        %589 = vmatprep.subr.mxu0 0.0
        %590 = vmatpush1.msra.mxu0 0.0
        %591 = vmatprep.subr.mxu0 0.0
        %592 = vmatpush1.msra.mxu0 0.0
        %593 = vmatprep.subr.mxu0 0.0
        %594 = vmatpush1.msra.mxu0 0.0
        %595 = vmatprep.subr.mxu0 0.0
        %596 = vmatpush1.msra.mxu0 0.0
        %597 = vmatprep.subr.mxu0 0.0
        %598 = vmatpush1.msra.mxu0 0.0
        %599 = vmatprep.subr.mxu0 0.0
        %600 = vmatpush1.msra.mxu0 0.0
        %601 = vmatprep.subr.mxu0 0.0
        %602 = vmatpush1.msra.mxu0 0.0
        %603 = vmatprep.subr.mxu0 0.0
        %604 = vmatpush1.msra.mxu0 0.0
        %605 = vmatprep.subr.mxu0 0.0
        %606 = vmatpush1.msra.mxu0 0.0
        %607 = vmatprep.subr.mxu0 0.0
        %608 = vmatpush1.msra.mxu0 0.0
        %609 = vmatprep.subr.mxu0 0.0
        %610 = vmatpush1.msra.mxu0 0.0
        %611 = vmatprep.subr.mxu0 0.0
        %612 = vmatpush1.msra.mxu0 0.0
        %613 = vmatprep.subr.mxu0 0.0
        %614 = vmatpush1.msra.mxu0 0.0
        %615 = vmatprep.subr.mxu0 0.0
        %616 = vmatpush1.msra.mxu0 0.0
        %617 = vmatprep.subr.mxu0 0.0
        %618 = vmatpush1.msra.mxu0 0.0
        %619 = vmatprep.subr.mxu0 0.0
        %620 = vmatpush1.msra.mxu0 0.0
        %621 = vmatprep.subr.mxu0 0.0
        %622 = vmatpush1.msra.mxu0 0.0
        %623 = vmatprep.subr.mxu0 0.0
        %624 = vmatpush1.msra.mxu0 0.0
        %625 = vmatprep.subr.mxu0 0.0
        %626 = vmatpush1.msra.mxu0 0.0
        %627 = vmatprep.subr.mxu0 0.0
        %628 = vmatpush1.msra.mxu0 0.0
        %629 = vmatprep.subr.mxu0 0.0
        %630 = vmatpush1.msra.mxu0 0.0
        %631 = vmatprep.mubr.f32.mxu0 0.0
        %632 = vmatmul.mubr.f32.gmra.mrb[0].mxu0 %v559
        %v633 = vpop.f32.mrb[0].mxu0
        %v634 = vadd.f32 0.0, %v633
        %v635 = vpop.f32.mrb[0].mxu0
        %v636 = vadd.f32 0.0, %v635
        %637 = vdwg.mxu0
        %638 = vmatprep.subr.mxu0 0.0
        %639 = vmatpush1.msra.mxu0 %v565
        %640 = vmatprep.subr.mxu0 0.0
        %641 = vmatpush1.msra.mxu0 0.0
        %642 = vmatprep.subr.mxu0 0.0
        %643 = vmatpush1.msra.mxu0 0.0
        %644 = vmatprep.subr.mxu0 0.0
        %645 = vmatpush1.msra.mxu0 0.0
        %646 = vmatprep.subr.mxu0 0.0
        %647 = vmatpush1.msra.mxu0 0.0
        %648 = vmatprep.subr.mxu0 0.0
        %649 = vmatpush1.msra.mxu0 0.0
        %650 = vmatprep.subr.mxu0 0.0
        %651 = vmatpush1.msra.mxu0 0.0
        %652 = vmatprep.subr.mxu0 0.0
        %653 = vmatpush1.msra.mxu0 0.0
        %654 = vmatprep.subr.mxu0 0.0
        %655 = vmatpush1.msra.mxu0 0.0
        %656 = vmatprep.subr.mxu0 0.0
        %657 = vmatpush1.msra.mxu0 0.0
        %658 = vmatprep.subr.mxu0 0.0
        %659 = vmatpush1.msra.mxu0 0.0
        %660 = vmatprep.subr.mxu0 0.0
        %661 = vmatpush1.msra.mxu0 0.0
        %662 = vmatprep.subr.mxu0 0.0
        %663 = vmatpush1.msra.mxu0 0.0
        %664 = vmatprep.subr.mxu0 0.0
        %665 = vmatpush1.msra.mxu0 0.0
        %666 = vmatprep.subr.mxu0 0.0
        %667 = vmatpush1.msra.mxu0 0.0
        %668 = vmatprep.subr.mxu0 0.0
        %669 = vmatpush1.msra.mxu0 0.0
        %670 = vmatprep.subr.mxu0 0.0
        %671 = vmatpush1.msra.mxu0 0.0
        %672 = vmatprep.subr.mxu0 0.0
        %673 = vmatpush1.msra.mxu0 0.0
        %674 = vmatprep.subr.mxu0 0.0
        %675 = vmatpush1.msra.mxu0 0.0
        %676 = vmatprep.subr.mxu0 0.0
        %677 = vmatpush1.msra.mxu0 0.0
        %678 = vmatprep.subr.mxu0 0.0
        %679 = vmatpush1.msra.mxu0 0.0
        %680 = vmatprep.subr.mxu0 0.0
        %681 = vmatpush1.msra.mxu0 0.0
        %682 = vmatprep.subr.mxu0 0.0
        %683 = vmatpush1.msra.mxu0 0.0
        %684 = vmatprep.subr.mxu0 0.0
        %685 = vmatpush1.msra.mxu0 0.0
        %686 = vmatprep.subr.mxu0 0.0
        %687 = vmatpush1.msra.mxu0 0.0
        %688 = vmatprep.subr.mxu0 0.0
        %689 = vmatpush1.msra.mxu0 0.0
        %690 = vmatprep.subr.mxu0 0.0
        %691 = vmatpush1.msra.mxu0 0.0
        %692 = vmatprep.subr.mxu0 0.0
        %693 = vmatpush1.msra.mxu0 0.0
        %694 = vmatprep.subr.mxu0 0.0
        %695 = vmatpush1.msra.mxu0 0.0
        %696 = vmatprep.subr.mxu0 0.0
        %697 = vmatpush1.msra.mxu0 0.0
        %698 = vmatprep.subr.mxu0 0.0
        %699 = vmatpush1.msra.mxu0 0.0
        %700 = vmatprep.subr.mxu0 0.0
        %701 = vmatpush1.msra.mxu0 0.0
        %702 = vmatprep.mubr.f32.mxu0 0.0
        %703 = vmatmul.mubr.f32.gmra.mrb[0].mxu0 %v559
        %v704 = vpop.f32.mrb[0].mxu0
        %v705 = vadd.f32 0.0, %v704
        %v706 = vpop.f32.mrb[0].mxu0
        %707 = vdwg.mxu0
        %v708 = vadd.f32 %v468, %v634
        %v709 = vadd.f32 %v470, %v636
        %v710 = vadd.f32 %v539, %v705
        %v711 = vld [vmem:[%s222] sm:$0xff]
        %v712 = vld [vmem:[%s222 + $0x8] sm:$0xf]
        %s713 = scalar_lea.vmem %s1, 24
        %v714 = vld [vmem:[%s713] sm:$0xff]
        %v717 = vcombine.high %v711, %v711
        %718 = vrot.lane.b32.xlu0 %v711, 110
        %v719 = vpop.permute.xlu0 %718
        %720 = vrot.lane.b32.xlu0 %v717, 110
        %v721 = vpop.permute.xlu0 %720
        %722 = vrot.lane.b32.xlu0 %v712, 110
        %v723 = vpop.permute.xlu0 %722
        %vm724 = vcmask 900096
        %v725 = vsel %vm724, %v719, %v721
        %v726 = vsel %vm724, %v721, %v723
        %v728 = vsel %vm240, %v714, 0
        %v730 = vsel %vm244, %v725, 0
        %v732 = vsel %vm244, %v726, 0
        %v734 = vsel %vm244, %v723, 0
        %736 = vmatprep.subr.mxu0 %v732
        %737 = vmatpush1.msra.mxu0 %v730
        %738 = vmatprep.subr.mxu0 0.0
        %739 = vmatpush1.msra.mxu0 0.0
        %740 = vmatprep.subr.mxu0 0.0
        %741 = vmatpush1.msra.mxu0 0.0
        %742 = vmatprep.subr.mxu0 0.0
        %743 = vmatpush1.msra.mxu0 0.0
        %744 = vmatprep.subr.mxu0 0.0
        %745 = vmatpush1.msra.mxu0 0.0
        %746 = vmatprep.subr.mxu0 0.0
        %747 = vmatpush1.msra.mxu0 0.0
        %748 = vmatprep.subr.mxu0 0.0
        %749 = vmatpush1.msra.mxu0 0.0
        %750 = vmatprep.subr.mxu0 0.0
        %751 = vmatpush1.msra.mxu0 0.0
        %752 = vmatprep.subr.mxu0 0.0
        %753 = vmatpush1.msra.mxu0 0.0
        %754 = vmatprep.subr.mxu0 0.0
        %755 = vmatpush1.msra.mxu0 0.0
        %756 = vmatprep.subr.mxu0 0.0
        %757 = vmatpush1.msra.mxu0 0.0
        %758 = vmatprep.subr.mxu0 0.0
        %759 = vmatpush1.msra.mxu0 0.0
        %760 = vmatprep.subr.mxu0 0.0
        %761 = vmatpush1.msra.mxu0 0.0
        %762 = vmatprep.subr.mxu0 0.0
        %763 = vmatpush1.msra.mxu0 0.0
        %764 = vmatprep.subr.mxu0 0.0
        %765 = vmatpush1.msra.mxu0 0.0
        %766 = vmatprep.subr.mxu0 0.0
        %767 = vmatpush1.msra.mxu0 0.0
        %768 = vmatprep.subr.mxu0 0.0
        %769 = vmatpush1.msra.mxu0 0.0
        %770 = vmatprep.subr.mxu0 0.0
        %771 = vmatpush1.msra.mxu0 0.0
        %772 = vmatprep.subr.mxu0 0.0
        %773 = vmatpush1.msra.mxu0 0.0
        %774 = vmatprep.subr.mxu0 0.0
        %775 = vmatpush1.msra.mxu0 0.0
        %776 = vmatprep.subr.mxu0 0.0
        %777 = vmatpush1.msra.mxu0 0.0
        %778 = vmatprep.subr.mxu0 0.0
        %779 = vmatpush1.msra.mxu0 0.0
        %780 = vmatprep.subr.mxu0 0.0
        %781 = vmatpush1.msra.mxu0 0.0
        %782 = vmatprep.subr.mxu0 0.0
        %783 = vmatpush1.msra.mxu0 0.0
        %784 = vmatprep.subr.mxu0 0.0
        %785 = vmatpush1.msra.mxu0 0.0
        %786 = vmatprep.subr.mxu0 0.0
        %787 = vmatpush1.msra.mxu0 0.0
        %788 = vmatprep.subr.mxu0 0.0
        %789 = vmatpush1.msra.mxu0 0.0
        %790 = vmatprep.subr.mxu0 0.0
        %791 = vmatpush1.msra.mxu0 0.0
        %792 = vmatprep.subr.mxu0 0.0
        %793 = vmatpush1.msra.mxu0 0.0
        %794 = vmatprep.subr.mxu0 0.0
        %795 = vmatpush1.msra.mxu0 0.0
        %796 = vmatprep.subr.mxu0 0.0
        %797 = vmatpush1.msra.mxu0 0.0
        %798 = vmatprep.subr.mxu0 0.0
        %799 = vmatpush1.msra.mxu0 0.0
        %800 = vmatprep.mubr.f32.mxu0 0.0
        %801 = vmatmul.mubr.f32.gmra.mrb[0].mxu0 %v728
        %v802 = vpop.f32.mrb[0].mxu0
        %v803 = vadd.f32 0.0, %v802
        %v804 = vpop.f32.mrb[0].mxu0
        %v805 = vadd.f32 0.0, %v804
        %806 = vdwg.mxu0
        %807 = vmatprep.subr.mxu0 0.0
        %808 = vmatpush1.msra.mxu0 %v734
        %809 = vmatprep.subr.mxu0 0.0
        %810 = vmatpush1.msra.mxu0 0.0
        %811 = vmatprep.subr.mxu0 0.0
        %812 = vmatpush1.msra.mxu0 0.0
        %813 = vmatprep.subr.mxu0 0.0
        %814 = vmatpush1.msra.mxu0 0.0
        %815 = vmatprep.subr.mxu0 0.0
        %816 = vmatpush1.msra.mxu0 0.0
        %817 = vmatprep.subr.mxu0 0.0
        %818 = vmatpush1.msra.mxu0 0.0
        %819 = vmatprep.subr.mxu0 0.0
        %820 = vmatpush1.msra.mxu0 0.0
        %821 = vmatprep.subr.mxu0 0.0
        %822 = vmatpush1.msra.mxu0 0.0
        %823 = vmatprep.subr.mxu0 0.0
        %824 = vmatpush1.msra.mxu0 0.0
        %825 = vmatprep.subr.mxu0 0.0
        %826 = vmatpush1.msra.mxu0 0.0
        %827 = vmatprep.subr.mxu0 0.0
        %828 = vmatpush1.msra.mxu0 0.0
        %829 = vmatprep.subr.mxu0 0.0
        %830 = vmatpush1.msra.mxu0 0.0
        %831 = vmatprep.subr.mxu0 0.0
        %832 = vmatpush1.msra.mxu0 0.0
        %833 = vmatprep.subr.mxu0 0.0
        %834 = vmatpush1.msra.mxu0 0.0
        %835 = vmatprep.subr.mxu0 0.0
        %836 = vmatpush1.msra.mxu0 0.0
        %837 = vmatprep.subr.mxu0 0.0
        %838 = vmatpush1.msra.mxu0 0.0
        %839 = vmatprep.subr.mxu0 0.0
        %840 = vmatpush1.msra.mxu0 0.0
        %841 = vmatprep.subr.mxu0 0.0
        %842 = vmatpush1.msra.mxu0 0.0
        %843 = vmatprep.subr.mxu0 0.0
        %844 = vmatpush1.msra.mxu0 0.0
        %845 = vmatprep.subr.mxu0 0.0
        %846 = vmatpush1.msra.mxu0 0.0
        %847 = vmatprep.subr.mxu0 0.0
        %848 = vmatpush1.msra.mxu0 0.0
        %849 = vmatprep.subr.mxu0 0.0
        %850 = vmatpush1.msra.mxu0 0.0
        %851 = vmatprep.subr.mxu0 0.0
        %852 = vmatpush1.msra.mxu0 0.0
        %853 = vmatprep.subr.mxu0 0.0
        %854 = vmatpush1.msra.mxu0 0.0
        %855 = vmatprep.subr.mxu0 0.0
        %856 = vmatpush1.msra.mxu0 0.0
        %857 = vmatprep.subr.mxu0 0.0
        %858 = vmatpush1.msra.mxu0 0.0
        %859 = vmatprep.subr.mxu0 0.0
        %860 = vmatpush1.msra.mxu0 0.0
        %861 = vmatprep.subr.mxu0 0.0
        %862 = vmatpush1.msra.mxu0 0.0
        %863 = vmatprep.subr.mxu0 0.0
        %864 = vmatpush1.msra.mxu0 0.0
        %865 = vmatprep.subr.mxu0 0.0
        %866 = vmatpush1.msra.mxu0 0.0
        %867 = vmatprep.subr.mxu0 0.0
        %868 = vmatpush1.msra.mxu0 0.0
        %869 = vmatprep.subr.mxu0 0.0
        %870 = vmatpush1.msra.mxu0 0.0
        %871 = vmatprep.mubr.f32.mxu0 0.0
        %872 = vmatmul.mubr.f32.gmra.mrb[0].mxu0 %v728
        %v873 = vpop.f32.mrb[0].mxu0
        %v874 = vadd.f32 0.0, %v873
        %v875 = vpop.f32.mrb[0].mxu0
        %876 = vdwg.mxu0
        %v877 = vadd.f32 %v708, %v803
        %v878 = vadd.f32 %v709, %v805
        %v879 = vadd.f32 %v710, %v874
        %v880 = vld [vmem:[%s222] sm:$0xff]
        %v881 = vld [vmem:[%s222 + $0x8] sm:$0xf]
        %s882 = scalar_lea.vmem %s1, 32
        %v883 = vld [vmem:[%s882] sm:$0xff]
        %v886 = vcombine.high %v880, %v880
        %887 = vrot.lane.b32.xlu0 %v880, 109
        %v888 = vpop.permute.xlu0 %887
        %889 = vrot.lane.b32.xlu0 %v886, 109
        %v890 = vpop.permute.xlu0 %889
        %891 = vrot.lane.b32.xlu0 %v881, 109
        %v892 = vpop.permute.xlu0 %891
        %vm893 = vcmask 891904
        %v894 = vsel %vm893, %v888, %v890
        %v895 = vsel %vm893, %v890, %v892
        %v897 = vsel %vm240, %v883, 0
        %v899 = vsel %vm244, %v894, 0
        %v901 = vsel %vm244, %v895, 0
        %v903 = vsel %vm244, %v892, 0
        %905 = vmatprep.subr.mxu0 %v901
        %906 = vmatpush1.msra.mxu0 %v899
        %907 = vmatprep.subr.mxu0 0.0
        %908 = vmatpush1.msra.mxu0 0.0
        %909 = vmatprep.subr.mxu0 0.0
        %910 = vmatpush1.msra.mxu0 0.0
        %911 = vmatprep.subr.mxu0 0.0
        %912 = vmatpush1.msra.mxu0 0.0
        %913 = vmatprep.subr.mxu0 0.0
        %914 = vmatpush1.msra.mxu0 0.0
        %915 = vmatprep.subr.mxu0 0.0
        %916 = vmatpush1.msra.mxu0 0.0
        %917 = vmatprep.subr.mxu0 0.0
        %918 = vmatpush1.msra.mxu0 0.0
        %919 = vmatprep.subr.mxu0 0.0
        %920 = vmatpush1.msra.mxu0 0.0
        %921 = vmatprep.subr.mxu0 0.0
        %922 = vmatpush1.msra.mxu0 0.0
        %923 = vmatprep.subr.mxu0 0.0
        %924 = vmatpush1.msra.mxu0 0.0
        %925 = vmatprep.subr.mxu0 0.0
        %926 = vmatpush1.msra.mxu0 0.0
        %927 = vmatprep.subr.mxu0 0.0
        %928 = vmatpush1.msra.mxu0 0.0
        %929 = vmatprep.subr.mxu0 0.0
        %930 = vmatpush1.msra.mxu0 0.0
        %931 = vmatprep.subr.mxu0 0.0
        %932 = vmatpush1.msra.mxu0 0.0
        %933 = vmatprep.subr.mxu0 0.0
        %934 = vmatpush1.msra.mxu0 0.0
        %935 = vmatprep.subr.mxu0 0.0
        %936 = vmatpush1.msra.mxu0 0.0
        %937 = vmatprep.subr.mxu0 0.0
        %938 = vmatpush1.msra.mxu0 0.0
        %939 = vmatprep.subr.mxu0 0.0
        %940 = vmatpush1.msra.mxu0 0.0
        %941 = vmatprep.subr.mxu0 0.0
        %942 = vmatpush1.msra.mxu0 0.0
        %943 = vmatprep.subr.mxu0 0.0
        %944 = vmatpush1.msra.mxu0 0.0
        %945 = vmatprep.subr.mxu0 0.0
        %946 = vmatpush1.msra.mxu0 0.0
        %947 = vmatprep.subr.mxu0 0.0
        %948 = vmatpush1.msra.mxu0 0.0
        %949 = vmatprep.subr.mxu0 0.0
        %950 = vmatpush1.msra.mxu0 0.0
        %951 = vmatprep.subr.mxu0 0.0
        %952 = vmatpush1.msra.mxu0 0.0
        %953 = vmatprep.subr.mxu0 0.0
        %954 = vmatpush1.msra.mxu0 0.0
        %955 = vmatprep.subr.mxu0 0.0
        %956 = vmatpush1.msra.mxu0 0.0
        %957 = vmatprep.subr.mxu0 0.0
        %958 = vmatpush1.msra.mxu0 0.0
        %959 = vmatprep.subr.mxu0 0.0
        %960 = vmatpush1.msra.mxu0 0.0
        %961 = vmatprep.subr.mxu0 0.0
        %962 = vmatpush1.msra.mxu0 0.0
        %963 = vmatprep.subr.mxu0 0.0
        %964 = vmatpush1.msra.mxu0 0.0
        %965 = vmatprep.subr.mxu0 0.0
        %966 = vmatpush1.msra.mxu0 0.0
        %967 = vmatprep.subr.mxu0 0.0
        %968 = vmatpush1.msra.mxu0 0.0
        %969 = vmatprep.mubr.f32.mxu0 0.0
        %970 = vmatmul.mubr.f32.gmra.mrb[0].mxu0 %v897
        %v971 = vpop.f32.mrb[0].mxu0
        %v972 = vadd.f32 0.0, %v971
        %v973 = vpop.f32.mrb[0].mxu0
        %v974 = vadd.f32 0.0, %v973
        %975 = vdwg.mxu0
        %976 = vmatprep.subr.mxu0 0.0
        %977 = vmatpush1.msra.mxu0 %v903
        %978 = vmatprep.subr.mxu0 0.0
        %979 = vmatpush1.msra.mxu0 0.0
        %980 = vmatprep.subr.mxu0 0.0
        %981 = vmatpush1.msra.mxu0 0.0
        %982 = vmatprep.subr.mxu0 0.0
        %983 = vmatpush1.msra.mxu0 0.0
        %984 = vmatprep.subr.mxu0 0.0
        %985 = vmatpush1.msra.mxu0 0.0
        %986 = vmatprep.subr.mxu0 0.0
        %987 = vmatpush1.msra.mxu0 0.0
        %988 = vmatprep.subr.mxu0 0.0
        %989 = vmatpush1.msra.mxu0 0.0
        %990 = vmatprep.subr.mxu0 0.0
        %991 = vmatpush1.msra.mxu0 0.0
        %992 = vmatprep.subr.mxu0 0.0
        %993 = vmatpush1.msra.mxu0 0.0
        %994 = vmatprep.subr.mxu0 0.0
        %995 = vmatpush1.msra.mxu0 0.0
        %996 = vmatprep.subr.mxu0 0.0
        %997 = vmatpush1.msra.mxu0 0.0
        %998 = vmatprep.subr.mxu0 0.0
        %999 = vmatpush1.msra.mxu0 0.0
        %1000 = vmatprep.subr.mxu0 0.0
        %1001 = vmatpush1.msra.mxu0 0.0
        %1002 = vmatprep.subr.mxu0 0.0
        %1003 = vmatpush1.msra.mxu0 0.0
        %1004 = vmatprep.subr.mxu0 0.0
        %1005 = vmatpush1.msra.mxu0 0.0
        %1006 = vmatprep.subr.mxu0 0.0
        %1007 = vmatpush1.msra.mxu0 0.0
        %1008 = vmatprep.subr.mxu0 0.0
        %1009 = vmatpush1.msra.mxu0 0.0
        %1010 = vmatprep.subr.mxu0 0.0
        %1011 = vmatpush1.msra.mxu0 0.0
        %1012 = vmatprep.subr.mxu0 0.0
        %1013 = vmatpush1.msra.mxu0 0.0
        %1014 = vmatprep.subr.mxu0 0.0
        %1015 = vmatpush1.msra.mxu0 0.0
        %1016 = vmatprep.subr.mxu0 0.0
        %1017 = vmatpush1.msra.mxu0 0.0
        %1018 = vmatprep.subr.mxu0 0.0
        %1019 = vmatpush1.msra.mxu0 0.0
        %1020 = vmatprep.subr.mxu0 0.0
        %1021 = vmatpush1.msra.mxu0 0.0
        %1022 = vmatprep.subr.mxu0 0.0
        %1023 = vmatpush1.msra.mxu0 0.0
        %1024 = vmatprep.subr.mxu0 0.0
        %1025 = vmatpush1.msra.mxu0 0.0
        %1026 = vmatprep.subr.mxu0 0.0
        %1027 = vmatpush1.msra.mxu0 0.0
        %1028 = vmatprep.subr.mxu0 0.0
        %1029 = vmatpush1.msra.mxu0 0.0
        %1030 = vmatprep.subr.mxu0 0.0
        %1031 = vmatpush1.msra.mxu0 0.0
        %1032 = vmatprep.subr.mxu0 0.0
        %1033 = vmatpush1.msra.mxu0 0.0
        %1034 = vmatprep.subr.mxu0 0.0
        %1035 = vmatpush1.msra.mxu0 0.0
        %1036 = vmatprep.subr.mxu0 0.0
        %1037 = vmatpush1.msra.mxu0 0.0
        %1038 = vmatprep.subr.mxu0 0.0
        %1039 = vmatpush1.msra.mxu0 0.0
        %1040 = vmatprep.mubr.f32.mxu0 0.0
        %1041 = vmatmul.mubr.f32.gmra.mrb[0].mxu0 %v897
        %v1042 = vpop.f32.mrb[0].mxu0
        %v1043 = vadd.f32 0.0, %v1042
        %v1044 = vpop.f32.mrb[0].mxu0
        %1045 = vdwg.mxu0
        %v1046 = vadd.f32 %v877, %v972
        %v1047 = vadd.f32 %v878, %v974
        %v1048 = vadd.f32 %v879, %v1043
        %v1049 = vld [vmem:[%s222] sm:$0xff]
        %v1050 = vld [vmem:[%s222 + $0x8] sm:$0xf]
        %s1051 = scalar_lea.vmem %s1, 40
        %v1052 = vld [vmem:[%s1051] sm:$0xff]
        %v1055 = vcombine.high %v1049, %v1049
        %1056 = vrot.lane.b32.xlu0 %v1049, 108
        %v1057 = vpop.permute.xlu0 %1056
        %1058 = vrot.lane.b32.xlu0 %v1055, 108
        %v1059 = vpop.permute.xlu0 %1058
        %1060 = vrot.lane.b32.xlu0 %v1050, 108
        %v1061 = vpop.permute.xlu0 %1060
        %vm1062 = vcmask 883712
        %v1063 = vsel %vm1062, %v1057, %v1059
        %v1064 = vsel %vm1062, %v1059, %v1061
        %v1066 = vsel %vm240, %v1052, 0
        %v1068 = vsel %vm244, %v1063, 0
        %v1070 = vsel %vm244, %v1064, 0
        %v1072 = vsel %vm244, %v1061, 0
        %1074 = vmatprep.subr.mxu0 %v1070
        %1075 = vmatpush1.msra.mxu0 %v1068
        %1076 = vmatprep.subr.mxu0 0.0
        %1077 = vmatpush1.msra.mxu0 0.0
        %1078 = vmatprep.subr.mxu0 0.0
        %1079 = vmatpush1.msra.mxu0 0.0
        %1080 = vmatprep.subr.mxu0 0.0
        %1081 = vmatpush1.msra.mxu0 0.0
        %1082 = vmatprep.subr.mxu0 0.0
        %1083 = vmatpush1.msra.mxu0 0.0
        %1084 = vmatprep.subr.mxu0 0.0
        %1085 = vmatpush1.msra.mxu0 0.0
        %1086 = vmatprep.subr.mxu0 0.0
        %1087 = vmatpush1.msra.mxu0 0.0
        %1088 = vmatprep.subr.mxu0 0.0
        %1089 = vmatpush1.msra.mxu0 0.0
        %1090 = vmatprep.subr.mxu0 0.0
        %1091 = vmatpush1.msra.mxu0 0.0
        %1092 = vmatprep.subr.mxu0 0.0
        %1093 = vmatpush1.msra.mxu0 0.0
        %1094 = vmatprep.subr.mxu0 0.0
        %1095 = vmatpush1.msra.mxu0 0.0
        %1096 = vmatprep.subr.mxu0 0.0
        %1097 = vmatpush1.msra.mxu0 0.0
        %1098 = vmatprep.subr.mxu0 0.0
        %1099 = vmatpush1.msra.mxu0 0.0
        %1100 = vmatprep.subr.mxu0 0.0
        %1101 = vmatpush1.msra.mxu0 0.0
        %1102 = vmatprep.subr.mxu0 0.0
        %1103 = vmatpush1.msra.mxu0 0.0
        %1104 = vmatprep.subr.mxu0 0.0
        %1105 = vmatpush1.msra.mxu0 0.0
        %1106 = vmatprep.subr.mxu0 0.0
        %1107 = vmatpush1.msra.mxu0 0.0
        %1108 = vmatprep.subr.mxu0 0.0
        %1109 = vmatpush1.msra.mxu0 0.0
        %1110 = vmatprep.subr.mxu0 0.0
        %1111 = vmatpush1.msra.mxu0 0.0
        %1112 = vmatprep.subr.mxu0 0.0
        %1113 = vmatpush1.msra.mxu0 0.0
        %1114 = vmatprep.subr.mxu0 0.0
        %1115 = vmatpush1.msra.mxu0 0.0
        %1116 = vmatprep.subr.mxu0 0.0
        %1117 = vmatpush1.msra.mxu0 0.0
        %1118 = vmatprep.subr.mxu0 0.0
        %1119 = vmatpush1.msra.mxu0 0.0
        %1120 = vmatprep.subr.mxu0 0.0
        %1121 = vmatpush1.msra.mxu0 0.0
        %1122 = vmatprep.subr.mxu0 0.0
        %1123 = vmatpush1.msra.mxu0 0.0
        %1124 = vmatprep.subr.mxu0 0.0
        %1125 = vmatpush1.msra.mxu0 0.0
        %1126 = vmatprep.subr.mxu0 0.0
        %1127 = vmatpush1.msra.mxu0 0.0
        %1128 = vmatprep.subr.mxu0 0.0
        %1129 = vmatpush1.msra.mxu0 0.0
        %1130 = vmatprep.subr.mxu0 0.0
        %1131 = vmatpush1.msra.mxu0 0.0
        %1132 = vmatprep.subr.mxu0 0.0
        %1133 = vmatpush1.msra.mxu0 0.0
        %1134 = vmatprep.subr.mxu0 0.0
        %1135 = vmatpush1.msra.mxu0 0.0
        %1136 = vmatprep.subr.mxu0 0.0
        %1137 = vmatpush1.msra.mxu0 0.0
        %1138 = vmatprep.mubr.f32.mxu0 0.0
        %1139 = vmatmul.mubr.f32.gmra.mrb[0].mxu0 %v1066
        %v1140 = vpop.f32.mrb[0].mxu0
        %v1141 = vadd.f32 0.0, %v1140
        %v1142 = vpop.f32.mrb[0].mxu0
        %v1143 = vadd.f32 0.0, %v1142
        %1144 = vdwg.mxu0
        %1145 = vmatprep.subr.mxu0 0.0
        %1146 = vmatpush1.msra.mxu0 %v1072
        %1147 = vmatprep.subr.mxu0 0.0
        %1148 = vmatpush1.msra.mxu0 0.0
        %1149 = vmatprep.subr.mxu0 0.0
        %1150 = vmatpush1.msra.mxu0 0.0
        %1151 = vmatprep.subr.mxu0 0.0
        %1152 = vmatpush1.msra.mxu0 0.0
        %1153 = vmatprep.subr.mxu0 0.0
        %1154 = vmatpush1.msra.mxu0 0.0
        %1155 = vmatprep.subr.mxu0 0.0
        %1156 = vmatpush1.msra.mxu0 0.0
        %1157 = vmatprep.subr.mxu0 0.0
        %1158 = vmatpush1.msra.mxu0 0.0
        %1159 = vmatprep.subr.mxu0 0.0
        %1160 = vmatpush1.msra.mxu0 0.0
        %1161 = vmatprep.subr.mxu0 0.0
        %1162 = vmatpush1.msra.mxu0 0.0
        %1163 = vmatprep.subr.mxu0 0.0
        %1164 = vmatpush1.msra.mxu0 0.0
        %1165 = vmatprep.subr.mxu0 0.0
        %1166 = vmatpush1.msra.mxu0 0.0
        %1167 = vmatprep.subr.mxu0 0.0
        %1168 = vmatpush1.msra.mxu0 0.0
        %1169 = vmatprep.subr.mxu0 0.0
        %1170 = vmatpush1.msra.mxu0 0.0
        %1171 = vmatprep.subr.mxu0 0.0
        %1172 = vmatpush1.msra.mxu0 0.0
        %1173 = vmatprep.subr.mxu0 0.0
        %1174 = vmatpush1.msra.mxu0 0.0
        %1175 = vmatprep.subr.mxu0 0.0
        %1176 = vmatpush1.msra.mxu0 0.0
        %1177 = vmatprep.subr.mxu0 0.0
        %1178 = vmatpush1.msra.mxu0 0.0
        %1179 = vmatprep.subr.mxu0 0.0
        %1180 = vmatpush1.msra.mxu0 0.0
        %1181 = vmatprep.subr.mxu0 0.0
        %1182 = vmatpush1.msra.mxu0 0.0
        %1183 = vmatprep.subr.mxu0 0.0
        %1184 = vmatpush1.msra.mxu0 0.0
        %1185 = vmatprep.subr.mxu0 0.0
        %1186 = vmatpush1.msra.mxu0 0.0
        %1187 = vmatprep.subr.mxu0 0.0
        %1188 = vmatpush1.msra.mxu0 0.0
        %1189 = vmatprep.subr.mxu0 0.0
        %1190 = vmatpush1.msra.mxu0 0.0
        %1191 = vmatprep.subr.mxu0 0.0
        %1192 = vmatpush1.msra.mxu0 0.0
        %1193 = vmatprep.subr.mxu0 0.0
        %1194 = vmatpush1.msra.mxu0 0.0
        %1195 = vmatprep.subr.mxu0 0.0
        %1196 = vmatpush1.msra.mxu0 0.0
        %1197 = vmatprep.subr.mxu0 0.0
        %1198 = vmatpush1.msra.mxu0 0.0
        %1199 = vmatprep.subr.mxu0 0.0
        %1200 = vmatpush1.msra.mxu0 0.0
        %1201 = vmatprep.subr.mxu0 0.0
        %1202 = vmatpush1.msra.mxu0 0.0
        %1203 = vmatprep.subr.mxu0 0.0
        %1204 = vmatpush1.msra.mxu0 0.0
        %1205 = vmatprep.subr.mxu0 0.0
        %1206 = vmatpush1.msra.mxu0 0.0
        %1207 = vmatprep.subr.mxu0 0.0
        %1208 = vmatpush1.msra.mxu0 0.0
        %1209 = vmatprep.mubr.f32.mxu0 0.0
        %1210 = vmatmul.mubr.f32.gmra.mrb[0].mxu0 %v1066
        %v1211 = vpop.f32.mrb[0].mxu0
        %v1212 = vadd.f32 0.0, %v1211
        %v1213 = vpop.f32.mrb[0].mxu0
        %1214 = vdwg.mxu0
        %v1215 = vadd.f32 %v1046, %v1141
        %v1216 = vadd.f32 %v1047, %v1143
        %v1217 = vadd.f32 %v1048, %v1212
        %v1218 = vld [vmem:[%s222] sm:$0xff]
        %v1219 = vld [vmem:[%s222 + $0x8] sm:$0xf]
        %s1220 = scalar_lea.vmem %s1, 48
        %v1221 = vld [vmem:[%s1220] sm:$0xff]
        %v1224 = vcombine.high %v1218, %v1218
        %1225 = vrot.lane.b32.xlu0 %v1218, 92
        %v1226 = vpop.permute.xlu0 %1225
        %1227 = vrot.lane.b32.xlu0 %v1224, 92
        %v1228 = vpop.permute.xlu0 %1227
        %1229 = vrot.lane.b32.xlu0 %v1219, 92
        %v1230 = vpop.permute.xlu0 %1229
        %vm1231 = vcmask 752640
        %v1232 = vsel %vm1231, %v1226, %v1228
        %v1233 = vsel %vm1231, %v1228, %v1230
        %v1235 = vsel %vm240, %v1221, 0
        %v1237 = vsel %vm244, %v1232, 0
        %v1239 = vsel %vm244, %v1233, 0
        %v1241 = vsel %vm244, %v1230, 0
        %1243 = vmatprep.subr.mxu0 %v1239
        %1244 = vmatpush1.msra.mxu0 %v1237
        %1245 = vmatprep.subr.mxu0 0.0
        %1246 = vmatpush1.msra.mxu0 0.0
        %1247 = vmatprep.subr.mxu0 0.0
        %1248 = vmatpush1.msra.mxu0 0.0
        %1249 = vmatprep.subr.mxu0 0.0
        %1250 = vmatpush1.msra.mxu0 0.0
        %1251 = vmatprep.subr.mxu0 0.0
        %1252 = vmatpush1.msra.mxu0 0.0
        %1253 = vmatprep.subr.mxu0 0.0
        %1254 = vmatpush1.msra.mxu0 0.0
        %1255 = vmatprep.subr.mxu0 0.0
        %1256 = vmatpush1.msra.mxu0 0.0
        %1257 = vmatprep.subr.mxu0 0.0
        %1258 = vmatpush1.msra.mxu0 0.0
        %1259 = vmatprep.subr.mxu0 0.0
        %1260 = vmatpush1.msra.mxu0 0.0
        %1261 = vmatprep.subr.mxu0 0.0
        %1262 = vmatpush1.msra.mxu0 0.0
        %1263 = vmatprep.subr.mxu0 0.0
        %1264 = vmatpush1.msra.mxu0 0.0
        %1265 = vmatprep.subr.mxu0 0.0
        %1266 = vmatpush1.msra.mxu0 0.0
        %1267 = vmatprep.subr.mxu0 0.0
        %1268 = vmatpush1.msra.mxu0 0.0
        %1269 = vmatprep.subr.mxu0 0.0
        %1270 = vmatpush1.msra.mxu0 0.0
        %1271 = vmatprep.subr.mxu0 0.0
        %1272 = vmatpush1.msra.mxu0 0.0
        %1273 = vmatprep.subr.mxu0 0.0
        %1274 = vmatpush1.msra.mxu0 0.0
        %1275 = vmatprep.subr.mxu0 0.0
        %1276 = vmatpush1.msra.mxu0 0.0
        %1277 = vmatprep.subr.mxu0 0.0
        %1278 = vmatpush1.msra.mxu0 0.0
        %1279 = vmatprep.subr.mxu0 0.0
        %1280 = vmatpush1.msra.mxu0 0.0
        %1281 = vmatprep.subr.mxu0 0.0
        %1282 = vmatpush1.msra.mxu0 0.0
        %1283 = vmatprep.subr.mxu0 0.0
        %1284 = vmatpush1.msra.mxu0 0.0
        %1285 = vmatprep.subr.mxu0 0.0
        %1286 = vmatpush1.msra.mxu0 0.0
        %1287 = vmatprep.subr.mxu0 0.0
        %1288 = vmatpush1.msra.mxu0 0.0
        %1289 = vmatprep.subr.mxu0 0.0
        %1290 = vmatpush1.msra.mxu0 0.0
        %1291 = vmatprep.subr.mxu0 0.0
        %1292 = vmatpush1.msra.mxu0 0.0
        %1293 = vmatprep.subr.mxu0 0.0
        %1294 = vmatpush1.msra.mxu0 0.0
        %1295 = vmatprep.subr.mxu0 0.0
        %1296 = vmatpush1.msra.mxu0 0.0
        %1297 = vmatprep.subr.mxu0 0.0
        %1298 = vmatpush1.msra.mxu0 0.0
        %1299 = vmatprep.subr.mxu0 0.0
        %1300 = vmatpush1.msra.mxu0 0.0
        %1301 = vmatprep.subr.mxu0 0.0
        %1302 = vmatpush1.msra.mxu0 0.0
        %1303 = vmatprep.subr.mxu0 0.0
        %1304 = vmatpush1.msra.mxu0 0.0
        %1305 = vmatprep.subr.mxu0 0.0
        %1306 = vmatpush1.msra.mxu0 0.0
        %1307 = vmatprep.mubr.f32.mxu0 0.0
        %1308 = vmatmul.mubr.f32.gmra.mrb[0].mxu0 %v1235
        %v1309 = vpop.f32.mrb[0].mxu0
        %v1310 = vadd.f32 0.0, %v1309
        %v1311 = vpop.f32.mrb[0].mxu0
        %v1312 = vadd.f32 0.0, %v1311
        %1313 = vdwg.mxu0
        %1314 = vmatprep.subr.mxu0 0.0
        %1315 = vmatpush1.msra.mxu0 %v1241
        %1316 = vmatprep.subr.mxu0 0.0
        %1317 = vmatpush1.msra.mxu0 0.0
        %1318 = vmatprep.subr.mxu0 0.0
        %1319 = vmatpush1.msra.mxu0 0.0
        %1320 = vmatprep.subr.mxu0 0.0
        %1321 = vmatpush1.msra.mxu0 0.0
        %1322 = vmatprep.subr.mxu0 0.0
        %1323 = vmatpush1.msra.mxu0 0.0
        %1324 = vmatprep.subr.mxu0 0.0
        %1325 = vmatpush1.msra.mxu0 0.0
        %1326 = vmatprep.subr.mxu0 0.0
        %1327 = vmatpush1.msra.mxu0 0.0
        %1328 = vmatprep.subr.mxu0 0.0
        %1329 = vmatpush1.msra.mxu0 0.0
        %1330 = vmatprep.subr.mxu0 0.0
        %1331 = vmatpush1.msra.mxu0 0.0
        %1332 = vmatprep.subr.mxu0 0.0
        %1333 = vmatpush1.msra.mxu0 0.0
        %1334 = vmatprep.subr.mxu0 0.0
        %1335 = vmatpush1.msra.mxu0 0.0
        %1336 = vmatprep.subr.mxu0 0.0
        %1337 = vmatpush1.msra.mxu0 0.0
        %1338 = vmatprep.subr.mxu0 0.0
        %1339 = vmatpush1.msra.mxu0 0.0
        %1340 = vmatprep.subr.mxu0 0.0
        %1341 = vmatpush1.msra.mxu0 0.0
        %1342 = vmatprep.subr.mxu0 0.0
        %1343 = vmatpush1.msra.mxu0 0.0
        %1344 = vmatprep.subr.mxu0 0.0
        %1345 = vmatpush1.msra.mxu0 0.0
        %1346 = vmatprep.subr.mxu0 0.0
        %1347 = vmatpush1.msra.mxu0 0.0
        %1348 = vmatprep.subr.mxu0 0.0
        %1349 = vmatpush1.msra.mxu0 0.0
        %1350 = vmatprep.subr.mxu0 0.0
        %1351 = vmatpush1.msra.mxu0 0.0
        %1352 = vmatprep.subr.mxu0 0.0
        %1353 = vmatpush1.msra.mxu0 0.0
        %1354 = vmatprep.subr.mxu0 0.0
        %1355 = vmatpush1.msra.mxu0 0.0
        %1356 = vmatprep.subr.mxu0 0.0
        %1357 = vmatpush1.msra.mxu0 0.0
        %1358 = vmatprep.subr.mxu0 0.0
        %1359 = vmatpush1.msra.mxu0 0.0
        %1360 = vmatprep.subr.mxu0 0.0
        %1361 = vmatpush1.msra.mxu0 0.0
        %1362 = vmatprep.subr.mxu0 0.0
        %1363 = vmatpush1.msra.mxu0 0.0
        %1364 = vmatprep.subr.mxu0 0.0
        %1365 = vmatpush1.msra.mxu0 0.0
        %1366 = vmatprep.subr.mxu0 0.0
        %1367 = vmatpush1.msra.mxu0 0.0
        %1368 = vmatprep.subr.mxu0 0.0
        %1369 = vmatpush1.msra.mxu0 0.0
        %1370 = vmatprep.subr.mxu0 0.0
        %1371 = vmatpush1.msra.mxu0 0.0
        %1372 = vmatprep.subr.mxu0 0.0
        %1373 = vmatpush1.msra.mxu0 0.0
        %1374 = vmatprep.subr.mxu0 0.0
        %1375 = vmatpush1.msra.mxu0 0.0
        %1376 = vmatprep.subr.mxu0 0.0
        %1377 = vmatpush1.msra.mxu0 0.0
        %1378 = vmatprep.mubr.f32.mxu0 0.0
        %1379 = vmatmul.mubr.f32.gmra.mrb[0].mxu0 %v1235
        %v1380 = vpop.f32.mrb[0].mxu0
        %v1381 = vadd.f32 0.0, %v1380
        %v1382 = vpop.f32.mrb[0].mxu0
        %1383 = vdwg.mxu0
        %v1384 = vadd.f32 %v1215, %v1310
        %v1385 = vadd.f32 %v1216, %v1312
        %v1386 = vadd.f32 %v1217, %v1381
        %v1387 = vld [vmem:[%s222] sm:$0xff]
        %v1388 = vld [vmem:[%s222 + $0x8] sm:$0xf]
        %s1389 = scalar_lea.vmem %s1, 56
        %v1390 = vld [vmem:[%s1389] sm:$0xff]
        %v1393 = vcombine.high %v1387, %v1387
        %1394 = vrot.lane.b32.xlu0 %v1387, 91
        %v1395 = vpop.permute.xlu0 %1394
        %1396 = vrot.lane.b32.xlu0 %v1393, 91
        %v1397 = vpop.permute.xlu0 %1396
        %1398 = vrot.lane.b32.xlu0 %v1388, 91
        %v1399 = vpop.permute.xlu0 %1398
        %vm1400 = vcmask 744448
        %v1401 = vsel %vm1400, %v1395, %v1397
        %v1402 = vsel %vm1400, %v1397, %v1399
        %v1404 = vsel %vm240, %v1390, 0
        %v1406 = vsel %vm244, %v1401, 0
        %v1408 = vsel %vm244, %v1402, 0
        %v1410 = vsel %vm244, %v1399, 0
        %1412 = vmatprep.subr.mxu0 %v1408
        %1413 = vmatpush1.msra.mxu0 %v1406
        %1414 = vmatprep.subr.mxu0 0.0
        %1415 = vmatpush1.msra.mxu0 0.0
        %1416 = vmatprep.subr.mxu0 0.0
        %1417 = vmatpush1.msra.mxu0 0.0
        %1418 = vmatprep.subr.mxu0 0.0
        %1419 = vmatpush1.msra.mxu0 0.0
        %1420 = vmatprep.subr.mxu0 0.0
        %1421 = vmatpush1.msra.mxu0 0.0
        %1422 = vmatprep.subr.mxu0 0.0
        %1423 = vmatpush1.msra.mxu0 0.0
        %1424 = vmatprep.subr.mxu0 0.0
        %1425 = vmatpush1.msra.mxu0 0.0
        %1426 = vmatprep.subr.mxu0 0.0
        %1427 = vmatpush1.msra.mxu0 0.0
        %1428 = vmatprep.subr.mxu0 0.0
        %1429 = vmatpush1.msra.mxu0 0.0
        %1430 = vmatprep.subr.mxu0 0.0
        %1431 = vmatpush1.msra.mxu0 0.0
        %1432 = vmatprep.subr.mxu0 0.0
        %1433 = vmatpush1.msra.mxu0 0.0
        %1434 = vmatprep.subr.mxu0 0.0
        %1435 = vmatpush1.msra.mxu0 0.0
        %1436 = vmatprep.subr.mxu0 0.0
        %1437 = vmatpush1.msra.mxu0 0.0
        %1438 = vmatprep.subr.mxu0 0.0
        %1439 = vmatpush1.msra.mxu0 0.0
        %1440 = vmatprep.subr.mxu0 0.0
        %1441 = vmatpush1.msra.mxu0 0.0
        %1442 = vmatprep.subr.mxu0 0.0
        %1443 = vmatpush1.msra.mxu0 0.0
        %1444 = vmatprep.subr.mxu0 0.0
        %1445 = vmatpush1.msra.mxu0 0.0
        %1446 = vmatprep.subr.mxu0 0.0
        %1447 = vmatpush1.msra.mxu0 0.0
        %1448 = vmatprep.subr.mxu0 0.0
        %1449 = vmatpush1.msra.mxu0 0.0
        %1450 = vmatprep.subr.mxu0 0.0
        %1451 = vmatpush1.msra.mxu0 0.0
        %1452 = vmatprep.subr.mxu0 0.0
        %1453 = vmatpush1.msra.mxu0 0.0
        %1454 = vmatprep.subr.mxu0 0.0
        %1455 = vmatpush1.msra.mxu0 0.0
        %1456 = vmatprep.subr.mxu0 0.0
        %1457 = vmatpush1.msra.mxu0 0.0
        %1458 = vmatprep.subr.mxu0 0.0
        %1459 = vmatpush1.msra.mxu0 0.0
        %1460 = vmatprep.subr.mxu0 0.0
        %1461 = vmatpush1.msra.mxu0 0.0
        %1462 = vmatprep.subr.mxu0 0.0
        %1463 = vmatpush1.msra.mxu0 0.0
        %1464 = vmatprep.subr.mxu0 0.0
        %1465 = vmatpush1.msra.mxu0 0.0
        %1466 = vmatprep.subr.mxu0 0.0
        %1467 = vmatpush1.msra.mxu0 0.0
        %1468 = vmatprep.subr.mxu0 0.0
        %1469 = vmatpush1.msra.mxu0 0.0
        %1470 = vmatprep.subr.mxu0 0.0
        %1471 = vmatpush1.msra.mxu0 0.0
        %1472 = vmatprep.subr.mxu0 0.0
        %1473 = vmatpush1.msra.mxu0 0.0
        %1474 = vmatprep.subr.mxu0 0.0
        %1475 = vmatpush1.msra.mxu0 0.0
        %1476 = vmatprep.mubr.f32.mxu0 0.0
        %1477 = vmatmul.mubr.f32.gmra.mrb[0].mxu0 %v1404
        %v1478 = vpop.f32.mrb[0].mxu0
        %v1479 = vadd.f32 0.0, %v1478
        %v1480 = vpop.f32.mrb[0].mxu0
        %v1481 = vadd.f32 0.0, %v1480
        %1482 = vdwg.mxu0
        %1483 = vmatprep.subr.mxu0 0.0
        %1484 = vmatpush1.msra.mxu0 %v1410
        %1485 = vmatprep.subr.mxu0 0.0
        %1486 = vmatpush1.msra.mxu0 0.0
        %1487 = vmatprep.subr.mxu0 0.0
        %1488 = vmatpush1.msra.mxu0 0.0
        %1489 = vmatprep.subr.mxu0 0.0
        %1490 = vmatpush1.msra.mxu0 0.0
        %1491 = vmatprep.subr.mxu0 0.0
        %1492 = vmatpush1.msra.mxu0 0.0
        %1493 = vmatprep.subr.mxu0 0.0
        %1494 = vmatpush1.msra.mxu0 0.0
        %1495 = vmatprep.subr.mxu0 0.0
        %1496 = vmatpush1.msra.mxu0 0.0
        %1497 = vmatprep.subr.mxu0 0.0
        %1498 = vmatpush1.msra.mxu0 0.0
        %1499 = vmatprep.subr.mxu0 0.0
        %1500 = vmatpush1.msra.mxu0 0.0
        %1501 = vmatprep.subr.mxu0 0.0
        %1502 = vmatpush1.msra.mxu0 0.0
        %1503 = vmatprep.subr.mxu0 0.0
        %1504 = vmatpush1.msra.mxu0 0.0
        %1505 = vmatprep.subr.mxu0 0.0
        %1506 = vmatpush1.msra.mxu0 0.0
        %1507 = vmatprep.subr.mxu0 0.0
        %1508 = vmatpush1.msra.mxu0 0.0
        %1509 = vmatprep.subr.mxu0 0.0
        %1510 = vmatpush1.msra.mxu0 0.0
        %1511 = vmatprep.subr.mxu0 0.0
        %1512 = vmatpush1.msra.mxu0 0.0
        %1513 = vmatprep.subr.mxu0 0.0
        %1514 = vmatpush1.msra.mxu0 0.0
        %1515 = vmatprep.subr.mxu0 0.0
        %1516 = vmatpush1.msra.mxu0 0.0
        %1517 = vmatprep.subr.mxu0 0.0
        %1518 = vmatpush1.msra.mxu0 0.0
        %1519 = vmatprep.subr.mxu0 0.0
        %1520 = vmatpush1.msra.mxu0 0.0
        %1521 = vmatprep.subr.mxu0 0.0
        %1522 = vmatpush1.msra.mxu0 0.0
        %1523 = vmatprep.subr.mxu0 0.0
        %1524 = vmatpush1.msra.mxu0 0.0
        %1525 = vmatprep.subr.mxu0 0.0
        %1526 = vmatpush1.msra.mxu0 0.0
        %1527 = vmatprep.subr.mxu0 0.0
        %1528 = vmatpush1.msra.mxu0 0.0
        %1529 = vmatprep.subr.mxu0 0.0
        %1530 = vmatpush1.msra.mxu0 0.0
        %1531 = vmatprep.subr.mxu0 0.0
        %1532 = vmatpush1.msra.mxu0 0.0
        %1533 = vmatprep.subr.mxu0 0.0
        %1534 = vmatpush1.msra.mxu0 0.0
        %1535 = vmatprep.subr.mxu0 0.0
        %1536 = vmatpush1.msra.mxu0 0.0
        %1537 = vmatprep.subr.mxu0 0.0
        %1538 = vmatpush1.msra.mxu0 0.0
        %1539 = vmatprep.subr.mxu0 0.0
        %1540 = vmatpush1.msra.mxu0 0.0
        %1541 = vmatprep.subr.mxu0 0.0
        %1542 = vmatpush1.msra.mxu0 0.0
        %1543 = vmatprep.subr.mxu0 0.0
        %1544 = vmatpush1.msra.mxu0 0.0
        %1545 = vmatprep.subr.mxu0 0.0
        %1546 = vmatpush1.msra.mxu0 0.0
        %1547 = vmatprep.mubr.f32.mxu0 0.0
        %1548 = vmatmul.mubr.f32.gmra.mrb[0].mxu0 %v1404
        %v1549 = vpop.f32.mrb[0].mxu0
        %v1550 = vadd.f32 0.0, %v1549
        %v1551 = vpop.f32.mrb[0].mxu0
        %1552 = vdwg.mxu0
        %v1553 = vadd.f32 %v1384, %v1479
        %v1554 = vadd.f32 %v1385, %v1481
        %v1555 = vadd.f32 %v1386, %v1550
        %v1556 = vld [vmem:[%s222] sm:$0xff]
        %v1557 = vld [vmem:[%s222 + $0x8] sm:$0xf]
        %s1558 = scalar_lea.vmem %s1, 64
        %v1559 = vld [vmem:[%s1558] sm:$0xff]
        %v1562 = vcombine.high %v1556, %v1556
        %1563 = vrot.lane.b32.xlu0 %v1556, 90
        %v1564 = vpop.permute.xlu0 %1563
        %1565 = vrot.lane.b32.xlu0 %v1562, 90
        %v1566 = vpop.permute.xlu0 %1565
        %1567 = vrot.lane.b32.xlu0 %v1557, 90
        %v1568 = vpop.permute.xlu0 %1567
        %vm1569 = vcmask 736256
        %v1570 = vsel %vm1569, %v1564, %v1566
        %v1571 = vsel %vm1569, %v1566, %v1568
        %v1573 = vsel %vm240, %v1559, 0
        %v1575 = vsel %vm244, %v1570, 0
        %v1577 = vsel %vm244, %v1571, 0
        %v1579 = vsel %vm244, %v1568, 0
        %1581 = vmatprep.subr.mxu0 %v1577
        %1582 = vmatpush1.msra.mxu0 %v1575
        %1583 = vmatprep.subr.mxu0 0.0
        %1584 = vmatpush1.msra.mxu0 0.0
        %1585 = vmatprep.subr.mxu0 0.0
        %1586 = vmatpush1.msra.mxu0 0.0
        %1587 = vmatprep.subr.mxu0 0.0
        %1588 = vmatpush1.msra.mxu0 0.0
        %1589 = vmatprep.subr.mxu0 0.0
        %1590 = vmatpush1.msra.mxu0 0.0
        %1591 = vmatprep.subr.mxu0 0.0
        %1592 = vmatpush1.msra.mxu0 0.0
        %1593 = vmatprep.subr.mxu0 0.0
        %1594 = vmatpush1.msra.mxu0 0.0
        %1595 = vmatprep.subr.mxu0 0.0
        %1596 = vmatpush1.msra.mxu0 0.0
        %1597 = vmatprep.subr.mxu0 0.0
        %1598 = vmatpush1.msra.mxu0 0.0
        %1599 = vmatprep.subr.mxu0 0.0
        %1600 = vmatpush1.msra.mxu0 0.0
        %1601 = vmatprep.subr.mxu0 0.0
        %1602 = vmatpush1.msra.mxu0 0.0
        %1603 = vmatprep.subr.mxu0 0.0
        %1604 = vmatpush1.msra.mxu0 0.0
        %1605 = vmatprep.subr.mxu0 0.0
        %1606 = vmatpush1.msra.mxu0 0.0
        %1607 = vmatprep.subr.mxu0 0.0
        %1608 = vmatpush1.msra.mxu0 0.0
        %1609 = vmatprep.subr.mxu0 0.0
        %1610 = vmatpush1.msra.mxu0 0.0
        %1611 = vmatprep.subr.mxu0 0.0
        %1612 = vmatpush1.msra.mxu0 0.0
        %1613 = vmatprep.subr.mxu0 0.0
        %1614 = vmatpush1.msra.mxu0 0.0
        %1615 = vmatprep.subr.mxu0 0.0
        %1616 = vmatpush1.msra.mxu0 0.0
        %1617 = vmatprep.subr.mxu0 0.0
        %1618 = vmatpush1.msra.mxu0 0.0
        %1619 = vmatprep.subr.mxu0 0.0
        %1620 = vmatpush1.msra.mxu0 0.0
        %1621 = vmatprep.subr.mxu0 0.0
        %1622 = vmatpush1.msra.mxu0 0.0
        %1623 = vmatprep.subr.mxu0 0.0
        %1624 = vmatpush1.msra.mxu0 0.0
        %1625 = vmatprep.subr.mxu0 0.0
        %1626 = vmatpush1.msra.mxu0 0.0
        %1627 = vmatprep.subr.mxu0 0.0
        %1628 = vmatpush1.msra.mxu0 0.0
        %1629 = vmatprep.subr.mxu0 0.0
        %1630 = vmatpush1.msra.mxu0 0.0
        %1631 = vmatprep.subr.mxu0 0.0
        %1632 = vmatpush1.msra.mxu0 0.0
        %1633 = vmatprep.subr.mxu0 0.0
        %1634 = vmatpush1.msra.mxu0 0.0
        %1635 = vmatprep.subr.mxu0 0.0
        %1636 = vmatpush1.msra.mxu0 0.0
        %1637 = vmatprep.subr.mxu0 0.0
        %1638 = vmatpush1.msra.mxu0 0.0
        %1639 = vmatprep.subr.mxu0 0.0
        %1640 = vmatpush1.msra.mxu0 0.0
        %1641 = vmatprep.subr.mxu0 0.0
        %1642 = vmatpush1.msra.mxu0 0.0
        %1643 = vmatprep.subr.mxu0 0.0
        %1644 = vmatpush1.msra.mxu0 0.0
        %1645 = vmatprep.mubr.f32.mxu0 0.0
        %1646 = vmatmul.mubr.f32.gmra.mrb[0].mxu0 %v1573
        %v1647 = vpop.f32.mrb[0].mxu0
        %v1648 = vadd.f32 0.0, %v1647
        %v1649 = vpop.f32.mrb[0].mxu0
        %v1650 = vadd.f32 0.0, %v1649
        %1651 = vdwg.mxu0
        %1652 = vmatprep.subr.mxu0 0.0
        %1653 = vmatpush1.msra.mxu0 %v1579
        %1654 = vmatprep.subr.mxu0 0.0
        %1655 = vmatpush1.msra.mxu0 0.0
        %1656 = vmatprep.subr.mxu0 0.0
        %1657 = vmatpush1.msra.mxu0 0.0
        %1658 = vmatprep.subr.mxu0 0.0
        %1659 = vmatpush1.msra.mxu0 0.0
        %1660 = vmatprep.subr.mxu0 0.0
        %1661 = vmatpush1.msra.mxu0 0.0
        %1662 = vmatprep.subr.mxu0 0.0
        %1663 = vmatpush1.msra.mxu0 0.0
        %1664 = vmatprep.subr.mxu0 0.0
        %1665 = vmatpush1.msra.mxu0 0.0
        %1666 = vmatprep.subr.mxu0 0.0
        %1667 = vmatpush1.msra.mxu0 0.0
        %1668 = vmatprep.subr.mxu0 0.0
        %1669 = vmatpush1.msra.mxu0 0.0
        %1670 = vmatprep.subr.mxu0 0.0
        %1671 = vmatpush1.msra.mxu0 0.0
        %1672 = vmatprep.subr.mxu0 0.0
        %1673 = vmatpush1.msra.mxu0 0.0
        %1674 = vmatprep.subr.mxu0 0.0
        %1675 = vmatpush1.msra.mxu0 0.0
        %1676 = vmatprep.subr.mxu0 0.0
        %1677 = vmatpush1.msra.mxu0 0.0
        %1678 = vmatprep.subr.mxu0 0.0
        %1679 = vmatpush1.msra.mxu0 0.0
        %1680 = vmatprep.subr.mxu0 0.0
        %1681 = vmatpush1.msra.mxu0 0.0
        %1682 = vmatprep.subr.mxu0 0.0
        %1683 = vmatpush1.msra.mxu0 0.0
        %1684 = vmatprep.subr.mxu0 0.0
        %1685 = vmatpush1.msra.mxu0 0.0
        %1686 = vmatprep.subr.mxu0 0.0
        %1687 = vmatpush1.msra.mxu0 0.0
        %1688 = vmatprep.subr.mxu0 0.0
        %1689 = vmatpush1.msra.mxu0 0.0
        %1690 = vmatprep.subr.mxu0 0.0
        %1691 = vmatpush1.msra.mxu0 0.0
        %1692 = vmatprep.subr.mxu0 0.0
        %1693 = vmatpush1.msra.mxu0 0.0
        %1694 = vmatprep.subr.mxu0 0.0
        %1695 = vmatpush1.msra.mxu0 0.0
        %1696 = vmatprep.subr.mxu0 0.0
        %1697 = vmatpush1.msra.mxu0 0.0
        %1698 = vmatprep.subr.mxu0 0.0
        %1699 = vmatpush1.msra.mxu0 0.0
        %1700 = vmatprep.subr.mxu0 0.0
        %1701 = vmatpush1.msra.mxu0 0.0
        %1702 = vmatprep.subr.mxu0 0.0
        %1703 = vmatpush1.msra.mxu0 0.0
        %1704 = vmatprep.subr.mxu0 0.0
        %1705 = vmatpush1.msra.mxu0 0.0
        %1706 = vmatprep.subr.mxu0 0.0
        %1707 = vmatpush1.msra.mxu0 0.0
        %1708 = vmatprep.subr.mxu0 0.0
        %1709 = vmatpush1.msra.mxu0 0.0
        %1710 = vmatprep.subr.mxu0 0.0
        %1711 = vmatpush1.msra.mxu0 0.0
        %1712 = vmatprep.subr.mxu0 0.0
        %1713 = vmatpush1.msra.mxu0 0.0
        %1714 = vmatprep.subr.mxu0 0.0
        %1715 = vmatpush1.msra.mxu0 0.0
        %1716 = vmatprep.mubr.f32.mxu0 0.0
        %1717 = vmatmul.mubr.f32.gmra.mrb[0].mxu0 %v1573
        %v1718 = vpop.f32.mrb[0].mxu0
        %v1719 = vadd.f32 0.0, %v1718
        %v1720 = vpop.f32.mrb[0].mxu0
        %1721 = vdwg.mxu0
        %v1722 = vadd.f32 %v1553, %v1648
        %v1723 = vadd.f32 %v1554, %v1650
        %v1724 = vadd.f32 %v1555, %v1719
        %v1725 = vld [vmem:[%s2] sm:$0xff]
        %1727 = vset.pattern.permute.xlu0 0
        %1728 = vperm.xlu0 %1727, %v1725
        %v1729 = vpop.permute.xlu0 %1728
        %v1731 = vadd.f32 %v1722, %v1729
        %v1732 = vadd.f32 %v1723, %v1729
        %v1733 = vadd.f32 %v1724, %v1729
        %v1734 = vmax.f32 %v1731, 0.0
        %v1735 = vmax.f32 %v1732, 0.0
        %v1736 = vmax.f32 %v1733, 0.0
        %v1737 = vld [vmem:[%s4] sm:$0xff]
        %v1738 = vld [vmem:[%s4 + $0x8] sm:$0xff]
        %v1739 = vld [vmem:[%s4 + $0x10] sm:$0x3]
        %vm1740 = vcmask 146432
        %v1742 = vsel %vm1740, %v1734, 0
        %vm1744 = vcmask 1041408
        %v1746 = vsel %vm1744, %v1739, 0
        %1748 = vmatprep.subr.mxu0 0.0
        %1749 = vmatpush1.msra.mxu0 %v1737
        %1750 = vmatprep.subr.mxu0 0.0
        %1751 = vmatpush1.msra.mxu0 %v1738
        %1752 = vmatprep.subr.mxu0 0.0
        %1753 = vmatpush1.msra.mxu0 %v1746
        %1754 = vmatprep.subr.mxu0 0.0
        %1755 = vmatpush1.msra.mxu0 0.0
        %1756 = vmatprep.subr.mxu0 0.0
        %1757 = vmatpush1.msra.mxu0 0.0
        %1758 = vmatprep.subr.mxu0 0.0
        %1759 = vmatpush1.msra.mxu0 0.0
        %1760 = vmatprep.subr.mxu0 0.0
        %1761 = vmatpush1.msra.mxu0 0.0
        %1762 = vmatprep.subr.mxu0 0.0
        %1763 = vmatpush1.msra.mxu0 0.0
        %1764 = vmatprep.subr.mxu0 0.0
        %1765 = vmatpush1.msra.mxu0 0.0
        %1766 = vmatprep.subr.mxu0 0.0
        %1767 = vmatpush1.msra.mxu0 0.0
        %1768 = vmatprep.subr.mxu0 0.0
        %1769 = vmatpush1.msra.mxu0 0.0
        %1770 = vmatprep.subr.mxu0 0.0
        %1771 = vmatpush1.msra.mxu0 0.0
        %1772 = vmatprep.subr.mxu0 0.0
        %1773 = vmatpush1.msra.mxu0 0.0
        %1774 = vmatprep.subr.mxu0 0.0
        %1775 = vmatpush1.msra.mxu0 0.0
        %1776 = vmatprep.subr.mxu0 0.0
        %1777 = vmatpush1.msra.mxu0 0.0
        %1778 = vmatprep.subr.mxu0 0.0
        %1779 = vmatpush1.msra.mxu0 0.0
        %1780 = vmatprep.subr.mxu0 0.0
        %1781 = vmatpush1.msra.mxu0 0.0
        %1782 = vmatprep.subr.mxu0 0.0
        %1783 = vmatpush1.msra.mxu0 0.0
        %1784 = vmatprep.subr.mxu0 0.0
        %1785 = vmatpush1.msra.mxu0 0.0
        %1786 = vmatprep.subr.mxu0 0.0
        %1787 = vmatpush1.msra.mxu0 0.0
        %1788 = vmatprep.subr.mxu0 0.0
        %1789 = vmatpush1.msra.mxu0 0.0
        %1790 = vmatprep.subr.mxu0 0.0
        %1791 = vmatpush1.msra.mxu0 0.0
        %1792 = vmatprep.subr.mxu0 0.0
        %1793 = vmatpush1.msra.mxu0 0.0
        %1794 = vmatprep.subr.mxu0 0.0
        %1795 = vmatpush1.msra.mxu0 0.0
        %1796 = vmatprep.subr.mxu0 0.0
        %1797 = vmatpush1.msra.mxu0 0.0
        %1798 = vmatprep.subr.mxu0 0.0
        %1799 = vmatpush1.msra.mxu0 0.0
        %1800 = vmatprep.subr.mxu0 0.0
        %1801 = vmatpush1.msra.mxu0 0.0
        %1802 = vmatprep.subr.mxu0 0.0
        %1803 = vmatpush1.msra.mxu0 0.0
        %1804 = vmatprep.subr.mxu0 0.0
        %1805 = vmatpush1.msra.mxu0 0.0
        %1806 = vmatprep.subr.mxu0 0.0
        %1807 = vmatpush1.msra.mxu0 0.0
        %1808 = vmatprep.subr.mxu0 0.0
        %1809 = vmatpush1.msra.mxu0 0.0
        %1810 = vmatprep.subr.mxu0 0.0
        %1811 = vmatpush1.msra.mxu0 0.0
        %1812 = vmatprep.mubr.f32.mxu0 0.0
        %1813 = vmatmul.mubr.f32.gmra.mrb[0].mxu0 %v1742
        %v1814 = vpop.f32.mrb[0].mxu0
        %v1815 = vadd.f32 0.0, %v1814
        %v1816 = vpop.f32.mrb[0].mxu0
        %1817 = vdwg.mxu0
        %1818 = vrot.lane.b32.xlu0 %v1734, 110
        %v1819 = vpop.permute.xlu0 %1818
        %v1820 = vsel %vm1740, %v1819, 0
        %1822 = vmatprep.subr.mxu0 0.0
        %1823 = vmatpush1.msra.mxu0 %v1737
        %1824 = vmatprep.subr.mxu0 0.0
        %1825 = vmatpush1.msra.mxu0 %v1738
        %1826 = vmatprep.subr.mxu0 0.0
        %1827 = vmatpush1.msra.mxu0 %v1746
        %1828 = vmatprep.subr.mxu0 0.0
        %1829 = vmatpush1.msra.mxu0 0.0
        %1830 = vmatprep.subr.mxu0 0.0
        %1831 = vmatpush1.msra.mxu0 0.0
        %1832 = vmatprep.subr.mxu0 0.0
        %1833 = vmatpush1.msra.mxu0 0.0
        %1834 = vmatprep.subr.mxu0 0.0
        %1835 = vmatpush1.msra.mxu0 0.0
        %1836 = vmatprep.subr.mxu0 0.0
        %1837 = vmatpush1.msra.mxu0 0.0
        %1838 = vmatprep.subr.mxu0 0.0
        %1839 = vmatpush1.msra.mxu0 0.0
        %1840 = vmatprep.subr.mxu0 0.0
        %1841 = vmatpush1.msra.mxu0 0.0
        %1842 = vmatprep.subr.mxu0 0.0
        %1843 = vmatpush1.msra.mxu0 0.0
        %1844 = vmatprep.subr.mxu0 0.0
        %1845 = vmatpush1.msra.mxu0 0.0
        %1846 = vmatprep.subr.mxu0 0.0
        %1847 = vmatpush1.msra.mxu0 0.0
        %1848 = vmatprep.subr.mxu0 0.0
        %1849 = vmatpush1.msra.mxu0 0.0
        %1850 = vmatprep.subr.mxu0 0.0
        %1851 = vmatpush1.msra.mxu0 0.0
        %1852 = vmatprep.subr.mxu0 0.0
        %1853 = vmatpush1.msra.mxu0 0.0
        %1854 = vmatprep.subr.mxu0 0.0
        %1855 = vmatpush1.msra.mxu0 0.0
        %1856 = vmatprep.subr.mxu0 0.0
        %1857 = vmatpush1.msra.mxu0 0.0
        %1858 = vmatprep.subr.mxu0 0.0
        %1859 = vmatpush1.msra.mxu0 0.0
        %1860 = vmatprep.subr.mxu0 0.0
        %1861 = vmatpush1.msra.mxu0 0.0
        %1862 = vmatprep.subr.mxu0 0.0
        %1863 = vmatpush1.msra.mxu0 0.0
        %1864 = vmatprep.subr.mxu0 0.0
        %1865 = vmatpush1.msra.mxu0 0.0
        %1866 = vmatprep.subr.mxu0 0.0
        %1867 = vmatpush1.msra.mxu0 0.0
        %1868 = vmatprep.subr.mxu0 0.0
        %1869 = vmatpush1.msra.mxu0 0.0
        %1870 = vmatprep.subr.mxu0 0.0
        %1871 = vmatpush1.msra.mxu0 0.0
        %1872 = vmatprep.subr.mxu0 0.0
        %1873 = vmatpush1.msra.mxu0 0.0
        %1874 = vmatprep.subr.mxu0 0.0
        %1875 = vmatpush1.msra.mxu0 0.0
        %1876 = vmatprep.subr.mxu0 0.0
        %1877 = vmatpush1.msra.mxu0 0.0
        %1878 = vmatprep.subr.mxu0 0.0
        %1879 = vmatpush1.msra.mxu0 0.0
        %1880 = vmatprep.subr.mxu0 0.0
        %1881 = vmatpush1.msra.mxu0 0.0
        %1882 = vmatprep.subr.mxu0 0.0
        %1883 = vmatpush1.msra.mxu0 0.0
        %1884 = vmatprep.subr.mxu0 0.0
        %1885 = vmatpush1.msra.mxu0 0.0
        %1886 = vmatprep.mubr.f32.mxu0 0.0
        %1887 = vmatmul.mubr.f32.gmra.mrb[0].mxu0 %v1820
        %v1888 = vpop.f32.mrb[0].mxu0
        %v1889 = vadd.f32 0.0, %v1888
        %v1890 = vpop.f32.mrb[0].mxu0
        %1891 = vdwg.mxu0
        %1892 = vrot.lane.b32.xlu0 %v1734, 92
        %v1893 = vpop.permute.xlu0 %1892
        %v1894 = vsel %vm1740, %v1893, 0
        %1896 = vmatprep.subr.mxu0 0.0
        %1897 = vmatpush1.msra.mxu0 %v1737
        %1898 = vmatprep.subr.mxu0 0.0
        %1899 = vmatpush1.msra.mxu0 %v1738
        %1900 = vmatprep.subr.mxu0 0.0
        %1901 = vmatpush1.msra.mxu0 %v1746
        %1902 = vmatprep.subr.mxu0 0.0
        %1903 = vmatpush1.msra.mxu0 0.0
        %1904 = vmatprep.subr.mxu0 0.0
        %1905 = vmatpush1.msra.mxu0 0.0
        %1906 = vmatprep.subr.mxu0 0.0
        %1907 = vmatpush1.msra.mxu0 0.0
        %1908 = vmatprep.subr.mxu0 0.0
        %1909 = vmatpush1.msra.mxu0 0.0
        %1910 = vmatprep.subr.mxu0 0.0
        %1911 = vmatpush1.msra.mxu0 0.0
        %1912 = vmatprep.subr.mxu0 0.0
        %1913 = vmatpush1.msra.mxu0 0.0
        %1914 = vmatprep.subr.mxu0 0.0
        %1915 = vmatpush1.msra.mxu0 0.0
        %1916 = vmatprep.subr.mxu0 0.0
        %1917 = vmatpush1.msra.mxu0 0.0
        %1918 = vmatprep.subr.mxu0 0.0
        %1919 = vmatpush1.msra.mxu0 0.0
        %1920 = vmatprep.subr.mxu0 0.0
        %1921 = vmatpush1.msra.mxu0 0.0
        %1922 = vmatprep.subr.mxu0 0.0
        %1923 = vmatpush1.msra.mxu0 0.0
        %1924 = vmatprep.subr.mxu0 0.0
        %1925 = vmatpush1.msra.mxu0 0.0
        %1926 = vmatprep.subr.mxu0 0.0
        %1927 = vmatpush1.msra.mxu0 0.0
        %1928 = vmatprep.subr.mxu0 0.0
        %1929 = vmatpush1.msra.mxu0 0.0
        %1930 = vmatprep.subr.mxu0 0.0
        %1931 = vmatpush1.msra.mxu0 0.0
        %1932 = vmatprep.subr.mxu0 0.0
        %1933 = vmatpush1.msra.mxu0 0.0
        %1934 = vmatprep.subr.mxu0 0.0
        %1935 = vmatpush1.msra.mxu0 0.0
        %1936 = vmatprep.subr.mxu0 0.0
        %1937 = vmatpush1.msra.mxu0 0.0
        %1938 = vmatprep.subr.mxu0 0.0
        %1939 = vmatpush1.msra.mxu0 0.0
        %1940 = vmatprep.subr.mxu0 0.0
        %1941 = vmatpush1.msra.mxu0 0.0
        %1942 = vmatprep.subr.mxu0 0.0
        %1943 = vmatpush1.msra.mxu0 0.0
        %1944 = vmatprep.subr.mxu0 0.0
        %1945 = vmatpush1.msra.mxu0 0.0
        %1946 = vmatprep.subr.mxu0 0.0
        %1947 = vmatpush1.msra.mxu0 0.0
        %1948 = vmatprep.subr.mxu0 0.0
        %1949 = vmatpush1.msra.mxu0 0.0
        %1950 = vmatprep.subr.mxu0 0.0
        %1951 = vmatpush1.msra.mxu0 0.0
        %1952 = vmatprep.subr.mxu0 0.0
        %1953 = vmatpush1.msra.mxu0 0.0
        %1954 = vmatprep.subr.mxu0 0.0
        %1955 = vmatpush1.msra.mxu0 0.0
        %1956 = vmatprep.subr.mxu0 0.0
        %1957 = vmatpush1.msra.mxu0 0.0
        %1958 = vmatprep.subr.mxu0 0.0
        %1959 = vmatpush1.msra.mxu0 0.0
        %1960 = vmatprep.mubr.f32.mxu0 0.0
        %1961 = vmatmul.mubr.f32.gmra.mrb[0].mxu0 %v1894
        %v1962 = vpop.f32.mrb[0].mxu0
        %v1963 = vadd.f32 0.0, %v1962
        %v1964 = vpop.f32.mrb[0].mxu0
        %1965 = vdwg.mxu0
        %1966 = vrot.lane.b32.xlu0 %v1734, 74
        %v1967 = vpop.permute.xlu0 %1966
        %v1968 = vsel %vm1740, %v1967, 0
        %1970 = vmatprep.subr.mxu0 0.0
        %1971 = vmatpush1.msra.mxu0 %v1737
        %1972 = vmatprep.subr.mxu0 0.0
        %1973 = vmatpush1.msra.mxu0 %v1738
        %1974 = vmatprep.subr.mxu0 0.0
        %1975 = vmatpush1.msra.mxu0 %v1746
        %1976 = vmatprep.subr.mxu0 0.0
        %1977 = vmatpush1.msra.mxu0 0.0
        %1978 = vmatprep.subr.mxu0 0.0
        %1979 = vmatpush1.msra.mxu0 0.0
        %1980 = vmatprep.subr.mxu0 0.0
        %1981 = vmatpush1.msra.mxu0 0.0
        %1982 = vmatprep.subr.mxu0 0.0
        %1983 = vmatpush1.msra.mxu0 0.0
        %1984 = vmatprep.subr.mxu0 0.0
        %1985 = vmatpush1.msra.mxu0 0.0
        %1986 = vmatprep.subr.mxu0 0.0
        %1987 = vmatpush1.msra.mxu0 0.0
        %1988 = vmatprep.subr.mxu0 0.0
        %1989 = vmatpush1.msra.mxu0 0.0
        %1990 = vmatprep.subr.mxu0 0.0
        %1991 = vmatpush1.msra.mxu0 0.0
        %1992 = vmatprep.subr.mxu0 0.0
        %1993 = vmatpush1.msra.mxu0 0.0
        %1994 = vmatprep.subr.mxu0 0.0
        %1995 = vmatpush1.msra.mxu0 0.0
        %1996 = vmatprep.subr.mxu0 0.0
        %1997 = vmatpush1.msra.mxu0 0.0
        %1998 = vmatprep.subr.mxu0 0.0
        %1999 = vmatpush1.msra.mxu0 0.0
        %2000 = vmatprep.subr.mxu0 0.0
        %2001 = vmatpush1.msra.mxu0 0.0
        %2002 = vmatprep.subr.mxu0 0.0
        %2003 = vmatpush1.msra.mxu0 0.0
        %2004 = vmatprep.subr.mxu0 0.0
        %2005 = vmatpush1.msra.mxu0 0.0
        %2006 = vmatprep.subr.mxu0 0.0
        %2007 = vmatpush1.msra.mxu0 0.0
        %2008 = vmatprep.subr.mxu0 0.0
        %2009 = vmatpush1.msra.mxu0 0.0
        %2010 = vmatprep.subr.mxu0 0.0
        %2011 = vmatpush1.msra.mxu0 0.0
        %2012 = vmatprep.subr.mxu0 0.0
        %2013 = vmatpush1.msra.mxu0 0.0
        %2014 = vmatprep.subr.mxu0 0.0
        %2015 = vmatpush1.msra.mxu0 0.0
        %2016 = vmatprep.subr.mxu0 0.0
        %2017 = vmatpush1.msra.mxu0 0.0
        %2018 = vmatprep.subr.mxu0 0.0
        %2019 = vmatpush1.msra.mxu0 0.0
        %2020 = vmatprep.subr.mxu0 0.0
        %2021 = vmatpush1.msra.mxu0 0.0
        %2022 = vmatprep.subr.mxu0 0.0
        %2023 = vmatpush1.msra.mxu0 0.0
        %2024 = vmatprep.subr.mxu0 0.0
        %2025 = vmatpush1.msra.mxu0 0.0
        %2026 = vmatprep.subr.mxu0 0.0
        %2027 = vmatpush1.msra.mxu0 0.0
        %2028 = vmatprep.subr.mxu0 0.0
        %2029 = vmatpush1.msra.mxu0 0.0
        %2030 = vmatprep.subr.mxu0 0.0
        %2031 = vmatpush1.msra.mxu0 0.0
        %2032 = vmatprep.subr.mxu0 0.0
        %2033 = vmatpush1.msra.mxu0 0.0
        %2034 = vmatprep.mubr.f32.mxu0 0.0
        %2035 = vmatmul.mubr.f32.gmra.mrb[0].mxu0 %v1968
        %v2036 = vpop.f32.mrb[0].mxu0
        %v2037 = vadd.f32 0.0, %v2036
        %v2038 = vpop.f32.mrb[0].mxu0
        %2039 = vdwg.mxu0
        %2040 = vrot.lane.b32.xlu0 %v1734, 56
        %v2041 = vpop.permute.xlu0 %2040
        %v2042 = vsel %vm1740, %v2041, 0
        %2044 = vmatprep.subr.mxu0 0.0
        %2045 = vmatpush1.msra.mxu0 %v1737
        %2046 = vmatprep.subr.mxu0 0.0
        %2047 = vmatpush1.msra.mxu0 %v1738
        %2048 = vmatprep.subr.mxu0 0.0
        %2049 = vmatpush1.msra.mxu0 %v1746
        %2050 = vmatprep.subr.mxu0 0.0
        %2051 = vmatpush1.msra.mxu0 0.0
        %2052 = vmatprep.subr.mxu0 0.0
        %2053 = vmatpush1.msra.mxu0 0.0
        %2054 = vmatprep.subr.mxu0 0.0
        %2055 = vmatpush1.msra.mxu0 0.0
        %2056 = vmatprep.subr.mxu0 0.0
        %2057 = vmatpush1.msra.mxu0 0.0
        %2058 = vmatprep.subr.mxu0 0.0
        %2059 = vmatpush1.msra.mxu0 0.0
        %2060 = vmatprep.subr.mxu0 0.0
        %2061 = vmatpush1.msra.mxu0 0.0
        %2062 = vmatprep.subr.mxu0 0.0
        %2063 = vmatpush1.msra.mxu0 0.0
        %2064 = vmatprep.subr.mxu0 0.0
        %2065 = vmatpush1.msra.mxu0 0.0
        %2066 = vmatprep.subr.mxu0 0.0
        %2067 = vmatpush1.msra.mxu0 0.0
        %2068 = vmatprep.subr.mxu0 0.0
        %2069 = vmatpush1.msra.mxu0 0.0
        %2070 = vmatprep.subr.mxu0 0.0
        %2071 = vmatpush1.msra.mxu0 0.0
        %2072 = vmatprep.subr.mxu0 0.0
        %2073 = vmatpush1.msra.mxu0 0.0
        %2074 = vmatprep.subr.mxu0 0.0
        %2075 = vmatpush1.msra.mxu0 0.0
        %2076 = vmatprep.subr.mxu0 0.0
        %2077 = vmatpush1.msra.mxu0 0.0
        %2078 = vmatprep.subr.mxu0 0.0
        %2079 = vmatpush1.msra.mxu0 0.0
        %2080 = vmatprep.subr.mxu0 0.0
        %2081 = vmatpush1.msra.mxu0 0.0
        %2082 = vmatprep.subr.mxu0 0.0
        %2083 = vmatpush1.msra.mxu0 0.0
        %2084 = vmatprep.subr.mxu0 0.0
        %2085 = vmatpush1.msra.mxu0 0.0
        %2086 = vmatprep.subr.mxu0 0.0
        %2087 = vmatpush1.msra.mxu0 0.0
        %2088 = vmatprep.subr.mxu0 0.0
        %2089 = vmatpush1.msra.mxu0 0.0
        %2090 = vmatprep.subr.mxu0 0.0
        %2091 = vmatpush1.msra.mxu0 0.0
        %2092 = vmatprep.subr.mxu0 0.0
        %2093 = vmatpush1.msra.mxu0 0.0
        %2094 = vmatprep.subr.mxu0 0.0
        %2095 = vmatpush1.msra.mxu0 0.0
        %2096 = vmatprep.subr.mxu0 0.0
        %2097 = vmatpush1.msra.mxu0 0.0
        %2098 = vmatprep.subr.mxu0 0.0
        %2099 = vmatpush1.msra.mxu0 0.0
        %2100 = vmatprep.subr.mxu0 0.0
        %2101 = vmatpush1.msra.mxu0 0.0
        %2102 = vmatprep.subr.mxu0 0.0
        %2103 = vmatpush1.msra.mxu0 0.0
        %2104 = vmatprep.subr.mxu0 0.0
        %2105 = vmatpush1.msra.mxu0 0.0
        %2106 = vmatprep.subr.mxu0 0.0
        %2107 = vmatpush1.msra.mxu0 0.0
        %2108 = vmatprep.mubr.f32.mxu0 0.0
        %2109 = vmatmul.mubr.f32.gmra.mrb[0].mxu0 %v2042
        %v2110 = vpop.f32.mrb[0].mxu0
        %v2111 = vadd.f32 0.0, %v2110
        %v2112 = vpop.f32.mrb[0].mxu0
        %2113 = vdwg.mxu0
        %2114 = vrot.lane.b32.xlu0 %v1734, 38
        %v2115 = vpop.permute.xlu0 %2114
        %v2116 = vsel %vm1740, %v2115, 0
        %2118 = vmatprep.subr.mxu0 0.0
        %2119 = vmatpush1.msra.mxu0 %v1737
        %2120 = vmatprep.subr.mxu0 0.0
        %2121 = vmatpush1.msra.mxu0 %v1738
        %2122 = vmatprep.subr.mxu0 0.0
        %2123 = vmatpush1.msra.mxu0 %v1746
        %2124 = vmatprep.subr.mxu0 0.0
        %2125 = vmatpush1.msra.mxu0 0.0
        %2126 = vmatprep.subr.mxu0 0.0
        %2127 = vmatpush1.msra.mxu0 0.0
        %2128 = vmatprep.subr.mxu0 0.0
        %2129 = vmatpush1.msra.mxu0 0.0
        %2130 = vmatprep.subr.mxu0 0.0
        %2131 = vmatpush1.msra.mxu0 0.0
        %2132 = vmatprep.subr.mxu0 0.0
        %2133 = vmatpush1.msra.mxu0 0.0
        %2134 = vmatprep.subr.mxu0 0.0
        %2135 = vmatpush1.msra.mxu0 0.0
        %2136 = vmatprep.subr.mxu0 0.0
        %2137 = vmatpush1.msra.mxu0 0.0
        %2138 = vmatprep.subr.mxu0 0.0
        %2139 = vmatpush1.msra.mxu0 0.0
        %2140 = vmatprep.subr.mxu0 0.0
        %2141 = vmatpush1.msra.mxu0 0.0
        %2142 = vmatprep.subr.mxu0 0.0
        %2143 = vmatpush1.msra.mxu0 0.0
        %2144 = vmatprep.subr.mxu0 0.0
        %2145 = vmatpush1.msra.mxu0 0.0
        %2146 = vmatprep.subr.mxu0 0.0
        %2147 = vmatpush1.msra.mxu0 0.0
        %2148 = vmatprep.subr.mxu0 0.0
        %2149 = vmatpush1.msra.mxu0 0.0
        %2150 = vmatprep.subr.mxu0 0.0
        %2151 = vmatpush1.msra.mxu0 0.0
        %2152 = vmatprep.subr.mxu0 0.0
        %2153 = vmatpush1.msra.mxu0 0.0
        %2154 = vmatprep.subr.mxu0 0.0
        %2155 = vmatpush1.msra.mxu0 0.0
        %2156 = vmatprep.subr.mxu0 0.0
        %2157 = vmatpush1.msra.mxu0 0.0
        %2158 = vmatprep.subr.mxu0 0.0
        %2159 = vmatpush1.msra.mxu0 0.0
        %2160 = vmatprep.subr.mxu0 0.0
        %2161 = vmatpush1.msra.mxu0 0.0
        %2162 = vmatprep.subr.mxu0 0.0
        %2163 = vmatpush1.msra.mxu0 0.0
        %2164 = vmatprep.subr.mxu0 0.0
        %2165 = vmatpush1.msra.mxu0 0.0
        %2166 = vmatprep.subr.mxu0 0.0
        %2167 = vmatpush1.msra.mxu0 0.0
        %2168 = vmatprep.subr.mxu0 0.0
        %2169 = vmatpush1.msra.mxu0 0.0
        %2170 = vmatprep.subr.mxu0 0.0
        %2171 = vmatpush1.msra.mxu0 0.0
        %2172 = vmatprep.subr.mxu0 0.0
        %2173 = vmatpush1.msra.mxu0 0.0
        %2174 = vmatprep.subr.mxu0 0.0
        %2175 = vmatpush1.msra.mxu0 0.0
        %2176 = vmatprep.subr.mxu0 0.0
        %2177 = vmatpush1.msra.mxu0 0.0
        %2178 = vmatprep.subr.mxu0 0.0
        %2179 = vmatpush1.msra.mxu0 0.0
        %2180 = vmatprep.subr.mxu0 0.0
        %2181 = vmatpush1.msra.mxu0 0.0
        %2182 = vmatprep.mubr.f32.mxu0 0.0
        %2183 = vmatmul.mubr.f32.gmra.mrb[0].mxu0 %v2116
        %v2184 = vpop.f32.mrb[0].mxu0
        %v2185 = vadd.f32 0.0, %v2184
        %v2186 = vpop.f32.mrb[0].mxu0
        %2187 = vdwg.mxu0
        %2188 = vrot.lane.b32.xlu0 %v1734, 20
        %v2189 = vpop.permute.xlu0 %2188
        %v2190 = vsel %vm1740, %v2189, 0
        %2192 = vmatprep.subr.mxu0 0.0
        %2193 = vmatpush1.msra.mxu0 %v1737
        %2194 = vmatprep.subr.mxu0 0.0
        %2195 = vmatpush1.msra.mxu0 %v1738
        %2196 = vmatprep.subr.mxu0 0.0
        %2197 = vmatpush1.msra.mxu0 %v1746
        %2198 = vmatprep.subr.mxu0 0.0
        %2199 = vmatpush1.msra.mxu0 0.0
        %2200 = vmatprep.subr.mxu0 0.0
        %2201 = vmatpush1.msra.mxu0 0.0
        %2202 = vmatprep.subr.mxu0 0.0
        %2203 = vmatpush1.msra.mxu0 0.0
        %2204 = vmatprep.subr.mxu0 0.0
        %2205 = vmatpush1.msra.mxu0 0.0
        %2206 = vmatprep.subr.mxu0 0.0
        %2207 = vmatpush1.msra.mxu0 0.0
        %2208 = vmatprep.subr.mxu0 0.0
        %2209 = vmatpush1.msra.mxu0 0.0
        %2210 = vmatprep.subr.mxu0 0.0
        %2211 = vmatpush1.msra.mxu0 0.0
        %2212 = vmatprep.subr.mxu0 0.0
        %2213 = vmatpush1.msra.mxu0 0.0
        %2214 = vmatprep.subr.mxu0 0.0
        %2215 = vmatpush1.msra.mxu0 0.0
        %2216 = vmatprep.subr.mxu0 0.0
        %2217 = vmatpush1.msra.mxu0 0.0
        %2218 = vmatprep.subr.mxu0 0.0
        %2219 = vmatpush1.msra.mxu0 0.0
        %2220 = vmatprep.subr.mxu0 0.0
        %2221 = vmatpush1.msra.mxu0 0.0
        %2222 = vmatprep.subr.mxu0 0.0
        %2223 = vmatpush1.msra.mxu0 0.0
        %2224 = vmatprep.subr.mxu0 0.0
        %2225 = vmatpush1.msra.mxu0 0.0
        %2226 = vmatprep.subr.mxu0 0.0
        %2227 = vmatpush1.msra.mxu0 0.0
        %2228 = vmatprep.subr.mxu0 0.0
        %2229 = vmatpush1.msra.mxu0 0.0
        %2230 = vmatprep.subr.mxu0 0.0
        %2231 = vmatpush1.msra.mxu0 0.0
        %2232 = vmatprep.subr.mxu0 0.0
        %2233 = vmatpush1.msra.mxu0 0.0
        %2234 = vmatprep.subr.mxu0 0.0
        %2235 = vmatpush1.msra.mxu0 0.0
        %2236 = vmatprep.subr.mxu0 0.0
        %2237 = vmatpush1.msra.mxu0 0.0
        %2238 = vmatprep.subr.mxu0 0.0
        %2239 = vmatpush1.msra.mxu0 0.0
        %2240 = vmatprep.subr.mxu0 0.0
        %2241 = vmatpush1.msra.mxu0 0.0
        %2242 = vmatprep.subr.mxu0 0.0
        %2243 = vmatpush1.msra.mxu0 0.0
        %2244 = vmatprep.subr.mxu0 0.0
        %2245 = vmatpush1.msra.mxu0 0.0
        %2246 = vmatprep.subr.mxu0 0.0
        %2247 = vmatpush1.msra.mxu0 0.0
        %2248 = vmatprep.subr.mxu0 0.0
        %2249 = vmatpush1.msra.mxu0 0.0
        %2250 = vmatprep.subr.mxu0 0.0
        %2251 = vmatpush1.msra.mxu0 0.0
        %2252 = vmatprep.subr.mxu0 0.0
        %2253 = vmatpush1.msra.mxu0 0.0
        %2254 = vmatprep.subr.mxu0 0.0
        %2255 = vmatpush1.msra.mxu0 0.0
        %2256 = vmatprep.mubr.f32.mxu0 0.0
        %2257 = vmatmul.mubr.f32.gmra.mrb[0].mxu0 %v2190
        %v2258 = vpop.f32.mrb[0].mxu0
        %v2259 = vadd.f32 0.0, %v2258
        %v2260 = vpop.f32.mrb[0].mxu0
        %2261 = vdwg.mxu0
        %2263 = vrot.lane.b32.xlu0 %v1734, 2
        %v2264 = vpop.permute.xlu0 %2263
        %2265 = vrot.lane.b32.xlu0 %v1735, 2
        %v2266 = vpop.permute.xlu0 %2265
        %vm2267 = vcmask 15360
        %v2268 = vsel %vm2267, %v2264, %v2266
        %v2269 = vsel %vm1740, %v2268, 0
        %2271 = vmatprep.subr.mxu0 0.0
        %2272 = vmatpush1.msra.mxu0 %v1737
        %2273 = vmatprep.subr.mxu0 0.0
        %2274 = vmatpush1.msra.mxu0 %v1738
        %2275 = vmatprep.subr.mxu0 0.0
        %2276 = vmatpush1.msra.mxu0 %v1746
        %2277 = vmatprep.subr.mxu0 0.0
        %2278 = vmatpush1.msra.mxu0 0.0
        %2279 = vmatprep.subr.mxu0 0.0
        %2280 = vmatpush1.msra.mxu0 0.0
        %2281 = vmatprep.subr.mxu0 0.0
        %2282 = vmatpush1.msra.mxu0 0.0
        %2283 = vmatprep.subr.mxu0 0.0
        %2284 = vmatpush1.msra.mxu0 0.0
        %2285 = vmatprep.subr.mxu0 0.0
        %2286 = vmatpush1.msra.mxu0 0.0
        %2287 = vmatprep.subr.mxu0 0.0
        %2288 = vmatpush1.msra.mxu0 0.0
        %2289 = vmatprep.subr.mxu0 0.0
        %2290 = vmatpush1.msra.mxu0 0.0
        %2291 = vmatprep.subr.mxu0 0.0
        %2292 = vmatpush1.msra.mxu0 0.0
        %2293 = vmatprep.subr.mxu0 0.0
        %2294 = vmatpush1.msra.mxu0 0.0
        %2295 = vmatprep.subr.mxu0 0.0
        %2296 = vmatpush1.msra.mxu0 0.0
        %2297 = vmatprep.subr.mxu0 0.0
        %2298 = vmatpush1.msra.mxu0 0.0
        %2299 = vmatprep.subr.mxu0 0.0
        %2300 = vmatpush1.msra.mxu0 0.0
        %2301 = vmatprep.subr.mxu0 0.0
        %2302 = vmatpush1.msra.mxu0 0.0
        %2303 = vmatprep.subr.mxu0 0.0
        %2304 = vmatpush1.msra.mxu0 0.0
        %2305 = vmatprep.subr.mxu0 0.0
        %2306 = vmatpush1.msra.mxu0 0.0
        %2307 = vmatprep.subr.mxu0 0.0
        %2308 = vmatpush1.msra.mxu0 0.0
        %2309 = vmatprep.subr.mxu0 0.0
        %2310 = vmatpush1.msra.mxu0 0.0
        %2311 = vmatprep.subr.mxu0 0.0
        %2312 = vmatpush1.msra.mxu0 0.0
        %2313 = vmatprep.subr.mxu0 0.0
        %2314 = vmatpush1.msra.mxu0 0.0
        %2315 = vmatprep.subr.mxu0 0.0
        %2316 = vmatpush1.msra.mxu0 0.0
        %2317 = vmatprep.subr.mxu0 0.0
        %2318 = vmatpush1.msra.mxu0 0.0
        %2319 = vmatprep.subr.mxu0 0.0
        %2320 = vmatpush1.msra.mxu0 0.0
        %2321 = vmatprep.subr.mxu0 0.0
        %2322 = vmatpush1.msra.mxu0 0.0
        %2323 = vmatprep.subr.mxu0 0.0
        %2324 = vmatpush1.msra.mxu0 0.0
        %2325 = vmatprep.subr.mxu0 0.0
        %2326 = vmatpush1.msra.mxu0 0.0
        %2327 = vmatprep.subr.mxu0 0.0
        %2328 = vmatpush1.msra.mxu0 0.0
        %2329 = vmatprep.subr.mxu0 0.0
        %2330 = vmatpush1.msra.mxu0 0.0
        %2331 = vmatprep.subr.mxu0 0.0
        %2332 = vmatpush1.msra.mxu0 0.0
        %2333 = vmatprep.subr.mxu0 0.0
        %2334 = vmatpush1.msra.mxu0 0.0
        %2335 = vmatprep.mubr.f32.mxu0 0.0
        %2336 = vmatmul.mubr.f32.gmra.mrb[0].mxu0 %v2269
        %v2337 = vpop.f32.mrb[0].mxu0
        %v2338 = vadd.f32 0.0, %v2337
        %v2339 = vpop.f32.mrb[0].mxu0
        %2340 = vdwg.mxu0
        %2341 = vrot.lane.b32.xlu0 %v1735, 112
        %v2342 = vpop.permute.xlu0 %2341
        %v2343 = vsel %vm1740, %v2342, 0
        %2345 = vmatprep.subr.mxu0 0.0
        %2346 = vmatpush1.msra.mxu0 %v1737
        %2347 = vmatprep.subr.mxu0 0.0
        %2348 = vmatpush1.msra.mxu0 %v1738
        %2349 = vmatprep.subr.mxu0 0.0
        %2350 = vmatpush1.msra.mxu0 %v1746
        %2351 = vmatprep.subr.mxu0 0.0
        %2352 = vmatpush1.msra.mxu0 0.0
        %2353 = vmatprep.subr.mxu0 0.0
        %2354 = vmatpush1.msra.mxu0 0.0
        %2355 = vmatprep.subr.mxu0 0.0
        %2356 = vmatpush1.msra.mxu0 0.0
        %2357 = vmatprep.subr.mxu0 0.0
        %2358 = vmatpush1.msra.mxu0 0.0
        %2359 = vmatprep.subr.mxu0 0.0
        %2360 = vmatpush1.msra.mxu0 0.0
        %2361 = vmatprep.subr.mxu0 0.0
        %2362 = vmatpush1.msra.mxu0 0.0
        %2363 = vmatprep.subr.mxu0 0.0
        %2364 = vmatpush1.msra.mxu0 0.0
        %2365 = vmatprep.subr.mxu0 0.0
        %2366 = vmatpush1.msra.mxu0 0.0
        %2367 = vmatprep.subr.mxu0 0.0
        %2368 = vmatpush1.msra.mxu0 0.0
        %2369 = vmatprep.subr.mxu0 0.0
        %2370 = vmatpush1.msra.mxu0 0.0
        %2371 = vmatprep.subr.mxu0 0.0
        %2372 = vmatpush1.msra.mxu0 0.0
        %2373 = vmatprep.subr.mxu0 0.0
        %2374 = vmatpush1.msra.mxu0 0.0
        %2375 = vmatprep.subr.mxu0 0.0
        %2376 = vmatpush1.msra.mxu0 0.0
        %2377 = vmatprep.subr.mxu0 0.0
        %2378 = vmatpush1.msra.mxu0 0.0
        %2379 = vmatprep.subr.mxu0 0.0
        %2380 = vmatpush1.msra.mxu0 0.0
        %2381 = vmatprep.subr.mxu0 0.0
        %2382 = vmatpush1.msra.mxu0 0.0
        %2383 = vmatprep.subr.mxu0 0.0
        %2384 = vmatpush1.msra.mxu0 0.0
        %2385 = vmatprep.subr.mxu0 0.0
        %2386 = vmatpush1.msra.mxu0 0.0
        %2387 = vmatprep.subr.mxu0 0.0
        %2388 = vmatpush1.msra.mxu0 0.0
        %2389 = vmatprep.subr.mxu0 0.0
        %2390 = vmatpush1.msra.mxu0 0.0
        %2391 = vmatprep.subr.mxu0 0.0
        %2392 = vmatpush1.msra.mxu0 0.0
        %2393 = vmatprep.subr.mxu0 0.0
        %2394 = vmatpush1.msra.mxu0 0.0
        %2395 = vmatprep.subr.mxu0 0.0
        %2396 = vmatpush1.msra.mxu0 0.0
        %2397 = vmatprep.subr.mxu0 0.0
        %2398 = vmatpush1.msra.mxu0 0.0
        %2399 = vmatprep.subr.mxu0 0.0
        %2400 = vmatpush1.msra.mxu0 0.0
        %2401 = vmatprep.subr.mxu0 0.0
        %2402 = vmatpush1.msra.mxu0 0.0
        %2403 = vmatprep.subr.mxu0 0.0
        %2404 = vmatpush1.msra.mxu0 0.0
        %2405 = vmatprep.subr.mxu0 0.0
        %2406 = vmatpush1.msra.mxu0 0.0
        %2407 = vmatprep.subr.mxu0 0.0
        %2408 = vmatpush1.msra.mxu0 0.0
        %2409 = vmatprep.mubr.f32.mxu0 0.0
        %2410 = vmatmul.mubr.f32.gmra.mrb[0].mxu0 %v2343
        %v2411 = vpop.f32.mrb[0].mxu0
        %v2412 = vadd.f32 0.0, %v2411
        %v2413 = vpop.f32.mrb[0].mxu0
        %2414 = vdwg.mxu0
        %2415 = vrot.lane.b32.xlu0 %v1735, 94
        %v2416 = vpop.permute.xlu0 %2415
        %v2417 = vsel %vm1740, %v2416, 0
        %2419 = vmatprep.subr.mxu0 0.0
        %2420 = vmatpush1.msra.mxu0 %v1737
        %2421 = vmatprep.subr.mxu0 0.0
        %2422 = vmatpush1.msra.mxu0 %v1738
        %2423 = vmatprep.subr.mxu0 0.0
        %2424 = vmatpush1.msra.mxu0 %v1746
        %2425 = vmatprep.subr.mxu0 0.0
        %2426 = vmatpush1.msra.mxu0 0.0
        %2427 = vmatprep.subr.mxu0 0.0
        %2428 = vmatpush1.msra.mxu0 0.0
        %2429 = vmatprep.subr.mxu0 0.0
        %2430 = vmatpush1.msra.mxu0 0.0
        %2431 = vmatprep.subr.mxu0 0.0
        %2432 = vmatpush1.msra.mxu0 0.0
        %2433 = vmatprep.subr.mxu0 0.0
        %2434 = vmatpush1.msra.mxu0 0.0
        %2435 = vmatprep.subr.mxu0 0.0
        %2436 = vmatpush1.msra.mxu0 0.0
        %2437 = vmatprep.subr.mxu0 0.0
        %2438 = vmatpush1.msra.mxu0 0.0
        %2439 = vmatprep.subr.mxu0 0.0
        %2440 = vmatpush1.msra.mxu0 0.0
        %2441 = vmatprep.subr.mxu0 0.0
        %2442 = vmatpush1.msra.mxu0 0.0
        %2443 = vmatprep.subr.mxu0 0.0
        %2444 = vmatpush1.msra.mxu0 0.0
        %2445 = vmatprep.subr.mxu0 0.0
        %2446 = vmatpush1.msra.mxu0 0.0
        %2447 = vmatprep.subr.mxu0 0.0
        %2448 = vmatpush1.msra.mxu0 0.0
        %2449 = vmatprep.subr.mxu0 0.0
        %2450 = vmatpush1.msra.mxu0 0.0
        %2451 = vmatprep.subr.mxu0 0.0
        %2452 = vmatpush1.msra.mxu0 0.0
        %2453 = vmatprep.subr.mxu0 0.0
        %2454 = vmatpush1.msra.mxu0 0.0
        %2455 = vmatprep.subr.mxu0 0.0
        %2456 = vmatpush1.msra.mxu0 0.0
        %2457 = vmatprep.subr.mxu0 0.0
        %2458 = vmatpush1.msra.mxu0 0.0
        %2459 = vmatprep.subr.mxu0 0.0
        %2460 = vmatpush1.msra.mxu0 0.0
        %2461 = vmatprep.subr.mxu0 0.0
        %2462 = vmatpush1.msra.mxu0 0.0
        %2463 = vmatprep.subr.mxu0 0.0
        %2464 = vmatpush1.msra.mxu0 0.0
        %2465 = vmatprep.subr.mxu0 0.0
        %2466 = vmatpush1.msra.mxu0 0.0
        %2467 = vmatprep.subr.mxu0 0.0
        %2468 = vmatpush1.msra.mxu0 0.0
        %2469 = vmatprep.subr.mxu0 0.0
        %2470 = vmatpush1.msra.mxu0 0.0
        %2471 = vmatprep.subr.mxu0 0.0
        %2472 = vmatpush1.msra.mxu0 0.0
        %2473 = vmatprep.subr.mxu0 0.0
        %2474 = vmatpush1.msra.mxu0 0.0
        %2475 = vmatprep.subr.mxu0 0.0
        %2476 = vmatpush1.msra.mxu0 0.0
        %2477 = vmatprep.subr.mxu0 0.0
        %2478 = vmatpush1.msra.mxu0 0.0
        %2479 = vmatprep.subr.mxu0 0.0
        %2480 = vmatpush1.msra.mxu0 0.0
        %2481 = vmatprep.subr.mxu0 0.0
        %2482 = vmatpush1.msra.mxu0 0.0
        %2483 = vmatprep.mubr.f32.mxu0 0.0
        %2484 = vmatmul.mubr.f32.gmra.mrb[0].mxu0 %v2417
        %v2485 = vpop.f32.mrb[0].mxu0
        %v2486 = vadd.f32 0.0, %v2485
        %v2487 = vpop.f32.mrb[0].mxu0
        %2488 = vdwg.mxu0
        %2489 = vrot.lane.b32.xlu0 %v1735, 76
        %v2490 = vpop.permute.xlu0 %2489
        %v2491 = vsel %vm1740, %v2490, 0
        %2493 = vmatprep.subr.mxu0 0.0
        %2494 = vmatpush1.msra.mxu0 %v1737
        %2495 = vmatprep.subr.mxu0 0.0
        %2496 = vmatpush1.msra.mxu0 %v1738
        %2497 = vmatprep.subr.mxu0 0.0
        %2498 = vmatpush1.msra.mxu0 %v1746
        %2499 = vmatprep.subr.mxu0 0.0
        %2500 = vmatpush1.msra.mxu0 0.0
        %2501 = vmatprep.subr.mxu0 0.0
        %2502 = vmatpush1.msra.mxu0 0.0
        %2503 = vmatprep.subr.mxu0 0.0
        %2504 = vmatpush1.msra.mxu0 0.0
        %2505 = vmatprep.subr.mxu0 0.0
        %2506 = vmatpush1.msra.mxu0 0.0
        %2507 = vmatprep.subr.mxu0 0.0
        %2508 = vmatpush1.msra.mxu0 0.0
        %2509 = vmatprep.subr.mxu0 0.0
        %2510 = vmatpush1.msra.mxu0 0.0
        %2511 = vmatprep.subr.mxu0 0.0
        %2512 = vmatpush1.msra.mxu0 0.0
        %2513 = vmatprep.subr.mxu0 0.0
        %2514 = vmatpush1.msra.mxu0 0.0
        %2515 = vmatprep.subr.mxu0 0.0
        %2516 = vmatpush1.msra.mxu0 0.0
        %2517 = vmatprep.subr.mxu0 0.0
        %2518 = vmatpush1.msra.mxu0 0.0
        %2519 = vmatprep.subr.mxu0 0.0
        %2520 = vmatpush1.msra.mxu0 0.0
        %2521 = vmatprep.subr.mxu0 0.0
        %2522 = vmatpush1.msra.mxu0 0.0
        %2523 = vmatprep.subr.mxu0 0.0
        %2524 = vmatpush1.msra.mxu0 0.0
        %2525 = vmatprep.subr.mxu0 0.0
        %2526 = vmatpush1.msra.mxu0 0.0
        %2527 = vmatprep.subr.mxu0 0.0
        %2528 = vmatpush1.msra.mxu0 0.0
        %2529 = vmatprep.subr.mxu0 0.0
        %2530 = vmatpush1.msra.mxu0 0.0
        %2531 = vmatprep.subr.mxu0 0.0
        %2532 = vmatpush1.msra.mxu0 0.0
        %2533 = vmatprep.subr.mxu0 0.0
        %2534 = vmatpush1.msra.mxu0 0.0
        %2535 = vmatprep.subr.mxu0 0.0
        %2536 = vmatpush1.msra.mxu0 0.0
        %2537 = vmatprep.subr.mxu0 0.0
        %2538 = vmatpush1.msra.mxu0 0.0
        %2539 = vmatprep.subr.mxu0 0.0
        %2540 = vmatpush1.msra.mxu0 0.0
        %2541 = vmatprep.subr.mxu0 0.0
        %2542 = vmatpush1.msra.mxu0 0.0
        %2543 = vmatprep.subr.mxu0 0.0
        %2544 = vmatpush1.msra.mxu0 0.0
        %2545 = vmatprep.subr.mxu0 0.0
        %2546 = vmatpush1.msra.mxu0 0.0
        %2547 = vmatprep.subr.mxu0 0.0
        %2548 = vmatpush1.msra.mxu0 0.0
        %2549 = vmatprep.subr.mxu0 0.0
        %2550 = vmatpush1.msra.mxu0 0.0
        %2551 = vmatprep.subr.mxu0 0.0
        %2552 = vmatpush1.msra.mxu0 0.0
        %2553 = vmatprep.subr.mxu0 0.0
        %2554 = vmatpush1.msra.mxu0 0.0
        %2555 = vmatprep.subr.mxu0 0.0
        %2556 = vmatpush1.msra.mxu0 0.0
        %2557 = vmatprep.mubr.f32.mxu0 0.0
        %2558 = vmatmul.mubr.f32.gmra.mrb[0].mxu0 %v2491
        %v2559 = vpop.f32.mrb[0].mxu0
        %v2560 = vadd.f32 0.0, %v2559
        %v2561 = vpop.f32.mrb[0].mxu0
        %2562 = vdwg.mxu0
        %2563 = vrot.lane.b32.xlu0 %v1735, 58
        %v2564 = vpop.permute.xlu0 %2563
        %v2565 = vsel %vm1740, %v2564, 0
        %2567 = vmatprep.subr.mxu0 0.0
        %2568 = vmatpush1.msra.mxu0 %v1737
        %2569 = vmatprep.subr.mxu0 0.0
        %2570 = vmatpush1.msra.mxu0 %v1738
        %2571 = vmatprep.subr.mxu0 0.0
        %2572 = vmatpush1.msra.mxu0 %v1746
        %2573 = vmatprep.subr.mxu0 0.0
        %2574 = vmatpush1.msra.mxu0 0.0
        %2575 = vmatprep.subr.mxu0 0.0
        %2576 = vmatpush1.msra.mxu0 0.0
        %2577 = vmatprep.subr.mxu0 0.0
        %2578 = vmatpush1.msra.mxu0 0.0
        %2579 = vmatprep.subr.mxu0 0.0
        %2580 = vmatpush1.msra.mxu0 0.0
        %2581 = vmatprep.subr.mxu0 0.0
        %2582 = vmatpush1.msra.mxu0 0.0
        %2583 = vmatprep.subr.mxu0 0.0
        %2584 = vmatpush1.msra.mxu0 0.0
        %2585 = vmatprep.subr.mxu0 0.0
        %2586 = vmatpush1.msra.mxu0 0.0
        %2587 = vmatprep.subr.mxu0 0.0
        %2588 = vmatpush1.msra.mxu0 0.0
        %2589 = vmatprep.subr.mxu0 0.0
        %2590 = vmatpush1.msra.mxu0 0.0
        %2591 = vmatprep.subr.mxu0 0.0
        %2592 = vmatpush1.msra.mxu0 0.0
        %2593 = vmatprep.subr.mxu0 0.0
        %2594 = vmatpush1.msra.mxu0 0.0
        %2595 = vmatprep.subr.mxu0 0.0
        %2596 = vmatpush1.msra.mxu0 0.0
        %2597 = vmatprep.subr.mxu0 0.0
        %2598 = vmatpush1.msra.mxu0 0.0
        %2599 = vmatprep.subr.mxu0 0.0
        %2600 = vmatpush1.msra.mxu0 0.0
        %2601 = vmatprep.subr.mxu0 0.0
        %2602 = vmatpush1.msra.mxu0 0.0
        %2603 = vmatprep.subr.mxu0 0.0
        %2604 = vmatpush1.msra.mxu0 0.0
        %2605 = vmatprep.subr.mxu0 0.0
        %2606 = vmatpush1.msra.mxu0 0.0
        %2607 = vmatprep.subr.mxu0 0.0
        %2608 = vmatpush1.msra.mxu0 0.0
        %2609 = vmatprep.subr.mxu0 0.0
        %2610 = vmatpush1.msra.mxu0 0.0
        %2611 = vmatprep.subr.mxu0 0.0
        %2612 = vmatpush1.msra.mxu0 0.0
        %2613 = vmatprep.subr.mxu0 0.0
        %2614 = vmatpush1.msra.mxu0 0.0
        %2615 = vmatprep.subr.mxu0 0.0
        %2616 = vmatpush1.msra.mxu0 0.0
        %2617 = vmatprep.subr.mxu0 0.0
        %2618 = vmatpush1.msra.mxu0 0.0
        %2619 = vmatprep.subr.mxu0 0.0
        %2620 = vmatpush1.msra.mxu0 0.0
        %2621 = vmatprep.subr.mxu0 0.0
        %2622 = vmatpush1.msra.mxu0 0.0
        %2623 = vmatprep.subr.mxu0 0.0
        %2624 = vmatpush1.msra.mxu0 0.0
        %2625 = vmatprep.subr.mxu0 0.0
        %2626 = vmatpush1.msra.mxu0 0.0
        %2627 = vmatprep.subr.mxu0 0.0
        %2628 = vmatpush1.msra.mxu0 0.0
        %2629 = vmatprep.subr.mxu0 0.0
        %2630 = vmatpush1.msra.mxu0 0.0
        %2631 = vmatprep.mubr.f32.mxu0 0.0
        %2632 = vmatmul.mubr.f32.gmra.mrb[0].mxu0 %v2565
        %v2633 = vpop.f32.mrb[0].mxu0
        %v2634 = vadd.f32 0.0, %v2633
        %v2635 = vpop.f32.mrb[0].mxu0
        %2636 = vdwg.mxu0
        %2637 = vrot.lane.b32.xlu0 %v1735, 40
        %v2638 = vpop.permute.xlu0 %2637
        %v2639 = vsel %vm1740, %v2638, 0
        %2641 = vmatprep.subr.mxu0 0.0
        %2642 = vmatpush1.msra.mxu0 %v1737
        %2643 = vmatprep.subr.mxu0 0.0
        %2644 = vmatpush1.msra.mxu0 %v1738
        %2645 = vmatprep.subr.mxu0 0.0
        %2646 = vmatpush1.msra.mxu0 %v1746
        %2647 = vmatprep.subr.mxu0 0.0
        %2648 = vmatpush1.msra.mxu0 0.0
        %2649 = vmatprep.subr.mxu0 0.0
        %2650 = vmatpush1.msra.mxu0 0.0
        %2651 = vmatprep.subr.mxu0 0.0
        %2652 = vmatpush1.msra.mxu0 0.0
        %2653 = vmatprep.subr.mxu0 0.0
        %2654 = vmatpush1.msra.mxu0 0.0
        %2655 = vmatprep.subr.mxu0 0.0
        %2656 = vmatpush1.msra.mxu0 0.0
        %2657 = vmatprep.subr.mxu0 0.0
        %2658 = vmatpush1.msra.mxu0 0.0
        %2659 = vmatprep.subr.mxu0 0.0
        %2660 = vmatpush1.msra.mxu0 0.0
        %2661 = vmatprep.subr.mxu0 0.0
        %2662 = vmatpush1.msra.mxu0 0.0
        %2663 = vmatprep.subr.mxu0 0.0
        %2664 = vmatpush1.msra.mxu0 0.0
        %2665 = vmatprep.subr.mxu0 0.0
        %2666 = vmatpush1.msra.mxu0 0.0
        %2667 = vmatprep.subr.mxu0 0.0
        %2668 = vmatpush1.msra.mxu0 0.0
        %2669 = vmatprep.subr.mxu0 0.0
        %2670 = vmatpush1.msra.mxu0 0.0
        %2671 = vmatprep.subr.mxu0 0.0
        %2672 = vmatpush1.msra.mxu0 0.0
        %2673 = vmatprep.subr.mxu0 0.0
        %2674 = vmatpush1.msra.mxu0 0.0
        %2675 = vmatprep.subr.mxu0 0.0
        %2676 = vmatpush1.msra.mxu0 0.0
        %2677 = vmatprep.subr.mxu0 0.0
        %2678 = vmatpush1.msra.mxu0 0.0
        %2679 = vmatprep.subr.mxu0 0.0
        %2680 = vmatpush1.msra.mxu0 0.0
        %2681 = vmatprep.subr.mxu0 0.0
        %2682 = vmatpush1.msra.mxu0 0.0
        %2683 = vmatprep.subr.mxu0 0.0
        %2684 = vmatpush1.msra.mxu0 0.0
        %2685 = vmatprep.subr.mxu0 0.0
        %2686 = vmatpush1.msra.mxu0 0.0
        %2687 = vmatprep.subr.mxu0 0.0
        %2688 = vmatpush1.msra.mxu0 0.0
        %2689 = vmatprep.subr.mxu0 0.0
        %2690 = vmatpush1.msra.mxu0 0.0
        %2691 = vmatprep.subr.mxu0 0.0
        %2692 = vmatpush1.msra.mxu0 0.0
        %2693 = vmatprep.subr.mxu0 0.0
        %2694 = vmatpush1.msra.mxu0 0.0
        %2695 = vmatprep.subr.mxu0 0.0
        %2696 = vmatpush1.msra.mxu0 0.0
        %2697 = vmatprep.subr.mxu0 0.0
        %2698 = vmatpush1.msra.mxu0 0.0
        %2699 = vmatprep.subr.mxu0 0.0
        %2700 = vmatpush1.msra.mxu0 0.0
        %2701 = vmatprep.subr.mxu0 0.0
        %2702 = vmatpush1.msra.mxu0 0.0
        %2703 = vmatprep.subr.mxu0 0.0
        %2704 = vmatpush1.msra.mxu0 0.0
        %2705 = vmatprep.mubr.f32.mxu0 0.0
        %2706 = vmatmul.mubr.f32.gmra.mrb[0].mxu0 %v2639
        %v2707 = vpop.f32.mrb[0].mxu0
        %v2708 = vadd.f32 0.0, %v2707
        %v2709 = vpop.f32.mrb[0].mxu0
        %2710 = vdwg.mxu0
        %2711 = vrot.lane.b32.xlu0 %v1735, 22
        %v2712 = vpop.permute.xlu0 %2711
        %v2713 = vsel %vm1740, %v2712, 0
        %2715 = vmatprep.subr.mxu0 0.0
        %2716 = vmatpush1.msra.mxu0 %v1737
        %2717 = vmatprep.subr.mxu0 0.0
        %2718 = vmatpush1.msra.mxu0 %v1738
        %2719 = vmatprep.subr.mxu0 0.0
        %2720 = vmatpush1.msra.mxu0 %v1746
        %2721 = vmatprep.subr.mxu0 0.0
        %2722 = vmatpush1.msra.mxu0 0.0
        %2723 = vmatprep.subr.mxu0 0.0
        %2724 = vmatpush1.msra.mxu0 0.0
        %2725 = vmatprep.subr.mxu0 0.0
        %2726 = vmatpush1.msra.mxu0 0.0
        %2727 = vmatprep.subr.mxu0 0.0
        %2728 = vmatpush1.msra.mxu0 0.0
        %2729 = vmatprep.subr.mxu0 0.0
        %2730 = vmatpush1.msra.mxu0 0.0
        %2731 = vmatprep.subr.mxu0 0.0
        %2732 = vmatpush1.msra.mxu0 0.0
        %2733 = vmatprep.subr.mxu0 0.0
        %2734 = vmatpush1.msra.mxu0 0.0
        %2735 = vmatprep.subr.mxu0 0.0
        %2736 = vmatpush1.msra.mxu0 0.0
        %2737 = vmatprep.subr.mxu0 0.0
        %2738 = vmatpush1.msra.mxu0 0.0
        %2739 = vmatprep.subr.mxu0 0.0
        %2740 = vmatpush1.msra.mxu0 0.0
        %2741 = vmatprep.subr.mxu0 0.0
        %2742 = vmatpush1.msra.mxu0 0.0
        %2743 = vmatprep.subr.mxu0 0.0
        %2744 = vmatpush1.msra.mxu0 0.0
        %2745 = vmatprep.subr.mxu0 0.0
        %2746 = vmatpush1.msra.mxu0 0.0
        %2747 = vmatprep.subr.mxu0 0.0
        %2748 = vmatpush1.msra.mxu0 0.0
        %2749 = vmatprep.subr.mxu0 0.0
        %2750 = vmatpush1.msra.mxu0 0.0
        %2751 = vmatprep.subr.mxu0 0.0
        %2752 = vmatpush1.msra.mxu0 0.0
        %2753 = vmatprep.subr.mxu0 0.0
        %2754 = vmatpush1.msra.mxu0 0.0
        %2755 = vmatprep.subr.mxu0 0.0
        %2756 = vmatpush1.msra.mxu0 0.0
        %2757 = vmatprep.subr.mxu0 0.0
        %2758 = vmatpush1.msra.mxu0 0.0
        %2759 = vmatprep.subr.mxu0 0.0
        %2760 = vmatpush1.msra.mxu0 0.0
        %2761 = vmatprep.subr.mxu0 0.0
        %2762 = vmatpush1.msra.mxu0 0.0
        %2763 = vmatprep.subr.mxu0 0.0
        %2764 = vmatpush1.msra.mxu0 0.0
        %2765 = vmatprep.subr.mxu0 0.0
        %2766 = vmatpush1.msra.mxu0 0.0
        %2767 = vmatprep.subr.mxu0 0.0
        %2768 = vmatpush1.msra.mxu0 0.0
        %2769 = vmatprep.subr.mxu0 0.0
        %2770 = vmatpush1.msra.mxu0 0.0
        %2771 = vmatprep.subr.mxu0 0.0
        %2772 = vmatpush1.msra.mxu0 0.0
        %2773 = vmatprep.subr.mxu0 0.0
        %2774 = vmatpush1.msra.mxu0 0.0
        %2775 = vmatprep.subr.mxu0 0.0
        %2776 = vmatpush1.msra.mxu0 0.0
        %2777 = vmatprep.subr.mxu0 0.0
        %2778 = vmatpush1.msra.mxu0 0.0
        %2779 = vmatprep.mubr.f32.mxu0 0.0
        %2780 = vmatmul.mubr.f32.gmra.mrb[0].mxu0 %v2713
        %v2781 = vpop.f32.mrb[0].mxu0
        %v2782 = vadd.f32 0.0, %v2781
        %v2783 = vpop.f32.mrb[0].mxu0
        %2784 = vdwg.mxu0
        %2786 = vrot.lane.b32.xlu0 %v1735, 4
        %v2787 = vpop.permute.xlu0 %2786
        %2788 = vrot.lane.b32.xlu0 %v1736, 4
        %v2789 = vpop.permute.xlu0 %2788
        %v2790 = vsel %vm240, %v2787, %v2789
        %v2791 = vsel %vm1740, %v2790, 0
        %2793 = vmatprep.subr.mxu0 0.0
        %2794 = vmatpush1.msra.mxu0 %v1737
        %2795 = vmatprep.subr.mxu0 0.0
        %2796 = vmatpush1.msra.mxu0 %v1738
        %2797 = vmatprep.subr.mxu0 0.0
        %2798 = vmatpush1.msra.mxu0 %v1746
        %2799 = vmatprep.subr.mxu0 0.0
        %2800 = vmatpush1.msra.mxu0 0.0
        %2801 = vmatprep.subr.mxu0 0.0
        %2802 = vmatpush1.msra.mxu0 0.0
        %2803 = vmatprep.subr.mxu0 0.0
        %2804 = vmatpush1.msra.mxu0 0.0
        %2805 = vmatprep.subr.mxu0 0.0
        %2806 = vmatpush1.msra.mxu0 0.0
        %2807 = vmatprep.subr.mxu0 0.0
        %2808 = vmatpush1.msra.mxu0 0.0
        %2809 = vmatprep.subr.mxu0 0.0
        %2810 = vmatpush1.msra.mxu0 0.0
        %2811 = vmatprep.subr.mxu0 0.0
        %2812 = vmatpush1.msra.mxu0 0.0
        %2813 = vmatprep.subr.mxu0 0.0
        %2814 = vmatpush1.msra.mxu0 0.0
        %2815 = vmatprep.subr.mxu0 0.0
        %2816 = vmatpush1.msra.mxu0 0.0
        %2817 = vmatprep.subr.mxu0 0.0
        %2818 = vmatpush1.msra.mxu0 0.0
        %2819 = vmatprep.subr.mxu0 0.0
        %2820 = vmatpush1.msra.mxu0 0.0
        %2821 = vmatprep.subr.mxu0 0.0
        %2822 = vmatpush1.msra.mxu0 0.0
        %2823 = vmatprep.subr.mxu0 0.0
        %2824 = vmatpush1.msra.mxu0 0.0
        %2825 = vmatprep.subr.mxu0 0.0
        %2826 = vmatpush1.msra.mxu0 0.0
        %2827 = vmatprep.subr.mxu0 0.0
        %2828 = vmatpush1.msra.mxu0 0.0
        %2829 = vmatprep.subr.mxu0 0.0
        %2830 = vmatpush1.msra.mxu0 0.0
        %2831 = vmatprep.subr.mxu0 0.0
        %2832 = vmatpush1.msra.mxu0 0.0
        %2833 = vmatprep.subr.mxu0 0.0
        %2834 = vmatpush1.msra.mxu0 0.0
        %2835 = vmatprep.subr.mxu0 0.0
        %2836 = vmatpush1.msra.mxu0 0.0
        %2837 = vmatprep.subr.mxu0 0.0
        %2838 = vmatpush1.msra.mxu0 0.0
        %2839 = vmatprep.subr.mxu0 0.0
        %2840 = vmatpush1.msra.mxu0 0.0
        %2841 = vmatprep.subr.mxu0 0.0
        %2842 = vmatpush1.msra.mxu0 0.0
        %2843 = vmatprep.subr.mxu0 0.0
        %2844 = vmatpush1.msra.mxu0 0.0
        %2845 = vmatprep.subr.mxu0 0.0
        %2846 = vmatpush1.msra.mxu0 0.0
        %2847 = vmatprep.subr.mxu0 0.0
        %2848 = vmatpush1.msra.mxu0 0.0
        %2849 = vmatprep.subr.mxu0 0.0
        %2850 = vmatpush1.msra.mxu0 0.0
        %2851 = vmatprep.subr.mxu0 0.0
        %2852 = vmatpush1.msra.mxu0 0.0
        %2853 = vmatprep.subr.mxu0 0.0
        %2854 = vmatpush1.msra.mxu0 0.0
        %2855 = vmatprep.subr.mxu0 0.0
        %2856 = vmatpush1.msra.mxu0 0.0
        %2857 = vmatprep.mubr.f32.mxu0 0.0
        %2858 = vmatmul.mubr.f32.gmra.mrb[0].mxu0 %v2791
        %v2859 = vpop.f32.mrb[0].mxu0
        %v2860 = vadd.f32 0.0, %v2859
        %v2861 = vpop.f32.mrb[0].mxu0
        %2862 = vdwg.mxu0
        %2863 = vrot.lane.b32.xlu0 %v1736, 114
        %v2864 = vpop.permute.xlu0 %2863
        %v2865 = vsel %vm1740, %v2864, 0
        %2867 = vmatprep.subr.mxu0 0.0
        %2868 = vmatpush1.msra.mxu0 %v1737
        %2869 = vmatprep.subr.mxu0 0.0
        %2870 = vmatpush1.msra.mxu0 %v1738
        %2871 = vmatprep.subr.mxu0 0.0
        %2872 = vmatpush1.msra.mxu0 %v1746
        %2873 = vmatprep.subr.mxu0 0.0
        %2874 = vmatpush1.msra.mxu0 0.0
        %2875 = vmatprep.subr.mxu0 0.0
        %2876 = vmatpush1.msra.mxu0 0.0
        %2877 = vmatprep.subr.mxu0 0.0
        %2878 = vmatpush1.msra.mxu0 0.0
        %2879 = vmatprep.subr.mxu0 0.0
        %2880 = vmatpush1.msra.mxu0 0.0
        %2881 = vmatprep.subr.mxu0 0.0
        %2882 = vmatpush1.msra.mxu0 0.0
        %2883 = vmatprep.subr.mxu0 0.0
        %2884 = vmatpush1.msra.mxu0 0.0
        %2885 = vmatprep.subr.mxu0 0.0
        %2886 = vmatpush1.msra.mxu0 0.0
        %2887 = vmatprep.subr.mxu0 0.0
        %2888 = vmatpush1.msra.mxu0 0.0
        %2889 = vmatprep.subr.mxu0 0.0
        %2890 = vmatpush1.msra.mxu0 0.0
        %2891 = vmatprep.subr.mxu0 0.0
        %2892 = vmatpush1.msra.mxu0 0.0
        %2893 = vmatprep.subr.mxu0 0.0
        %2894 = vmatpush1.msra.mxu0 0.0
        %2895 = vmatprep.subr.mxu0 0.0
        %2896 = vmatpush1.msra.mxu0 0.0
        %2897 = vmatprep.subr.mxu0 0.0
        %2898 = vmatpush1.msra.mxu0 0.0
        %2899 = vmatprep.subr.mxu0 0.0
        %2900 = vmatpush1.msra.mxu0 0.0
        %2901 = vmatprep.subr.mxu0 0.0
        %2902 = vmatpush1.msra.mxu0 0.0
        %2903 = vmatprep.subr.mxu0 0.0
        %2904 = vmatpush1.msra.mxu0 0.0
        %2905 = vmatprep.subr.mxu0 0.0
        %2906 = vmatpush1.msra.mxu0 0.0
        %2907 = vmatprep.subr.mxu0 0.0
        %2908 = vmatpush1.msra.mxu0 0.0
        %2909 = vmatprep.subr.mxu0 0.0
        %2910 = vmatpush1.msra.mxu0 0.0
        %2911 = vmatprep.subr.mxu0 0.0
        %2912 = vmatpush1.msra.mxu0 0.0
        %2913 = vmatprep.subr.mxu0 0.0
        %2914 = vmatpush1.msra.mxu0 0.0
        %2915 = vmatprep.subr.mxu0 0.0
        %2916 = vmatpush1.msra.mxu0 0.0
        %2917 = vmatprep.subr.mxu0 0.0
        %2918 = vmatpush1.msra.mxu0 0.0
        %2919 = vmatprep.subr.mxu0 0.0
        %2920 = vmatpush1.msra.mxu0 0.0
        %2921 = vmatprep.subr.mxu0 0.0
        %2922 = vmatpush1.msra.mxu0 0.0
        %2923 = vmatprep.subr.mxu0 0.0
        %2924 = vmatpush1.msra.mxu0 0.0
        %2925 = vmatprep.subr.mxu0 0.0
        %2926 = vmatpush1.msra.mxu0 0.0
        %2927 = vmatprep.subr.mxu0 0.0
        %2928 = vmatpush1.msra.mxu0 0.0
        %2929 = vmatprep.subr.mxu0 0.0
        %2930 = vmatpush1.msra.mxu0 0.0
        %2931 = vmatprep.mubr.f32.mxu0 0.0
        %2932 = vmatmul.mubr.f32.gmra.mrb[0].mxu0 %v2865
        %v2933 = vpop.f32.mrb[0].mxu0
        %v2934 = vadd.f32 0.0, %v2933
        %v2935 = vpop.f32.mrb[0].mxu0
        %2936 = vdwg.mxu0
        %v2937 = vld [vmem:[%s3] sm:$0xff]
        %v2938 = vld [vmem:[%s3 + $0x8] sm:$0xff]
        %v2939 = vld [vmem:[%s3 + $0x10] sm:$0xff]
        %v2940 = vld [vmem:[%s3 + $0x18] sm:$0xff]
        %v2957 = vrot.slane %v1889, 7
        %vm2958 = vcmask 1041409
        %v2959 = vsel %vm2958, %v2957, %v1815
        %v2960 = vrot.slane %v1963, 6
        %vm2961 = vcmask 1042434
        %v2962 = vsel %vm2961, %v2960, %v2959
        %v2963 = vrot.slane %v2037, 5
        %vm2964 = vcmask 1043459
        %v2965 = vsel %vm2964, %v2963, %v2962
        %v2966 = vrot.slane %v2111, 4
        %vm2967 = vcmask 1044484
        %v2968 = vsel %vm2967, %v2966, %v2965
        %v2969 = vrot.slane %v2185, 3
        %vm2970 = vcmask 1045509
        %v2971 = vsel %vm2970, %v2969, %v2968
        %v2972 = vrot.slane %v2259, 2
        %vm2973 = vcmask 1046534
        %v2974 = vsel %vm2973, %v2972, %v2971
        %v2975 = vrot.slane %v2338, 1
        %vm2976 = vcmask 1047559
        %v2977 = vsel %vm2976, %v2975, %v2974
        %v2978 = vrot.slane %v2486, 7
        %v2979 = vsel %vm2958, %v2978, %v2412
        %v2980 = vrot.slane %v2560, 6
        %v2981 = vsel %vm2961, %v2980, %v2979
        %v2982 = vrot.slane %v2634, 5
        %v2983 = vsel %vm2964, %v2982, %v2981
        %v2984 = vrot.slane %v2708, 4
        %v2985 = vsel %vm2967, %v2984, %v2983
        %v2986 = vrot.slane %v2782, 3
        %v2987 = vsel %vm2970, %v2986, %v2985
        %v2988 = vrot.slane %v2860, 2
        %v2989 = vsel %vm2973, %v2988, %v2987
        %v2990 = vrot.slane %v2934, 1
        %v2991 = vsel %vm2976, %v2990, %v2989
        %vm2994 = vcmask 130048
        %v2996 = vsel %vm2994, %v2937, 0
        %v2999 = vsel %vm2994, %v2938, 0
        %v3002 = vsel %vm2994, %v2939, 0
        %v3005 = vsel %vm2994, %v2940, 0
        %3007 = vmatprep.subr.mxu0 0.0
        %3008 = vmatpush1.msra.mxu0 %v2977
        %3009 = vmatprep.subr.mxu0 0.0
        %3010 = vmatpush1.msra.mxu0 %v2991
        %3011 = vmatprep.subr.mxu0 0.0
        %3012 = vmatpush1.msra.mxu0 0.0
        %3013 = vmatprep.subr.mxu0 0.0
        %3014 = vmatpush1.msra.mxu0 0.0
        %3015 = vmatprep.subr.mxu0 0.0
        %3016 = vmatpush1.msra.mxu0 0.0
        %3017 = vmatprep.subr.mxu0 0.0
        %3018 = vmatpush1.msra.mxu0 0.0
        %3019 = vmatprep.subr.mxu0 0.0
        %3020 = vmatpush1.msra.mxu0 0.0
        %3021 = vmatprep.subr.mxu0 0.0
        %3022 = vmatpush1.msra.mxu0 0.0
        %3023 = vmatprep.subr.mxu0 0.0
        %3024 = vmatpush1.msra.mxu0 0.0
        %3025 = vmatprep.subr.mxu0 0.0
        %3026 = vmatpush1.msra.mxu0 0.0
        %3027 = vmatprep.subr.mxu0 0.0
        %3028 = vmatpush1.msra.mxu0 0.0
        %3029 = vmatprep.subr.mxu0 0.0
        %3030 = vmatpush1.msra.mxu0 0.0
        %3031 = vmatprep.subr.mxu0 0.0
        %3032 = vmatpush1.msra.mxu0 0.0
        %3033 = vmatprep.subr.mxu0 0.0
        %3034 = vmatpush1.msra.mxu0 0.0
        %3035 = vmatprep.subr.mxu0 0.0
        %3036 = vmatpush1.msra.mxu0 0.0
        %3037 = vmatprep.subr.mxu0 0.0
        %3038 = vmatpush1.msra.mxu0 0.0
        %3039 = vmatprep.subr.mxu0 0.0
        %3040 = vmatpush1.msra.mxu0 0.0
        %3041 = vmatprep.subr.mxu0 0.0
        %3042 = vmatpush1.msra.mxu0 0.0
        %3043 = vmatprep.subr.mxu0 0.0
        %3044 = vmatpush1.msra.mxu0 0.0
        %3045 = vmatprep.subr.mxu0 0.0
        %3046 = vmatpush1.msra.mxu0 0.0
        %3047 = vmatprep.subr.mxu0 0.0
        %3048 = vmatpush1.msra.mxu0 0.0
        %3049 = vmatprep.subr.mxu0 0.0
        %3050 = vmatpush1.msra.mxu0 0.0
        %3051 = vmatprep.subr.mxu0 0.0
        %3052 = vmatpush1.msra.mxu0 0.0
        %3053 = vmatprep.subr.mxu0 0.0
        %3054 = vmatpush1.msra.mxu0 0.0
        %3055 = vmatprep.subr.mxu0 0.0
        %3056 = vmatpush1.msra.mxu0 0.0
        %3057 = vmatprep.subr.mxu0 0.0
        %3058 = vmatpush1.msra.mxu0 0.0
        %3059 = vmatprep.subr.mxu0 0.0
        %3060 = vmatpush1.msra.mxu0 0.0
        %3061 = vmatprep.subr.mxu0 0.0
        %3062 = vmatpush1.msra.mxu0 0.0
        %3063 = vmatprep.subr.mxu0 0.0
        %3064 = vmatpush1.msra.mxu0 0.0
        %3065 = vmatprep.subr.mxu0 0.0
        %3066 = vmatpush1.msra.mxu0 0.0
        %3067 = vmatprep.subr.mxu0 0.0
        %3068 = vmatpush1.msra.mxu0 0.0
        %3069 = vmatprep.subr.mxu0 0.0
        %3070 = vmatpush1.msra.mxu0 0.0
        %3071 = vmatprep.mubr.f32.mxu0 0.0
        %3072 = vmatmul.mubr.f32.gmra.mrb[0].mxu0 %v2996
        %v3073 = vpop.f32.mrb[0].mxu0
        %v3074 = vadd.f32 0.0, %v3073
        %v3075 = vpop.f32.mrb[0].mxu0
        %3076 = vmatprep.mubr.f32.mxu0 0.0
        %3077 = vmatmul.mubr.f32.gmra.mrb[0].mxu0 %v2999
        %v3078 = vpop.f32.mrb[0].mxu0
        %v3079 = vadd.f32 0.0, %v3078
        %v3080 = vpop.f32.mrb[0].mxu0
        %3081 = vmatprep.mubr.f32.mxu0 0.0
        %3082 = vmatmul.mubr.f32.gmra.mrb[0].mxu0 %v3002
        %v3083 = vpop.f32.mrb[0].mxu0
        %v3084 = vadd.f32 0.0, %v3083
        %v3085 = vpop.f32.mrb[0].mxu0
        %3086 = vmatprep.mubr.f32.mxu0 0.0
        %3087 = vmatmul.mubr.f32.gmra.mrb[0].mxu0 %v3005
        %v3088 = vpop.f32.mrb[0].mxu0
        %v3089 = vadd.f32 0.0, %v3088
        %v3090 = vpop.f32.mrb[0].mxu0
        %3091 = vdwg.mxu0
        %vm3092 = vcmask 261120
        %3093 = vst.msk [vmem:[%s217] sm:$0xff] %vm3092, %v3074
        %3094 = vst.msk [vmem:[%s217 + $0x8] sm:$0xff] %vm3092, %v3079
        %3095 = vst.msk [vmem:[%s217 + $0x10] sm:$0xff] %vm3092, %v3084
        %3096 = vst.msk [vmem:[%s217 + $0x18] sm:$0xff] %vm3092, %v3089
        %v3097 = vrot.slane %v1815, 1
        %v3098 = vsel %vm2958, %v1889, %v3097
        %v3099 = vrot.slane %v1963, 7
        %v3100 = vsel %vm2961, %v3099, %v3098
        %v3101 = vrot.slane %v2037, 6
        %v3102 = vsel %vm2964, %v3101, %v3100
        %v3103 = vrot.slane %v2111, 5
        %v3104 = vsel %vm2967, %v3103, %v3102
        %v3105 = vrot.slane %v2185, 4
        %v3106 = vsel %vm2970, %v3105, %v3104
        %v3107 = vrot.slane %v2259, 3
        %v3108 = vsel %vm2973, %v3107, %v3106
        %v3109 = vrot.slane %v2338, 2
        %v3110 = vsel %vm2976, %v3109, %v3108
        %v3111 = vrot.slane %v2412, 1
        %v3112 = vsel %vm2958, %v2486, %v3111
        %v3113 = vrot.slane %v2560, 7
        %v3114 = vsel %vm2961, %v3113, %v3112
        %v3115 = vrot.slane %v2634, 6
        %v3116 = vsel %vm2964, %v3115, %v3114
        %v3117 = vrot.slane %v2708, 5
        %v3118 = vsel %vm2967, %v3117, %v3116
        %v3119 = vrot.slane %v2782, 4
        %v3120 = vsel %vm2970, %v3119, %v3118
        %v3121 = vrot.slane %v2860, 3
        %v3122 = vsel %vm2973, %v3121, %v3120
        %v3123 = vrot.slane %v2934, 2
        %v3124 = vsel %vm2976, %v3123, %v3122
        %3127 = vmatprep.subr.mxu0 0.0
        %3128 = vmatpush1.msra.mxu0 %v3110
        %3129 = vmatprep.subr.mxu0 0.0
        %3130 = vmatpush1.msra.mxu0 %v3124
        %3131 = vmatprep.subr.mxu0 0.0
        %3132 = vmatpush1.msra.mxu0 0.0
        %3133 = vmatprep.subr.mxu0 0.0
        %3134 = vmatpush1.msra.mxu0 0.0
        %3135 = vmatprep.subr.mxu0 0.0
        %3136 = vmatpush1.msra.mxu0 0.0
        %3137 = vmatprep.subr.mxu0 0.0
        %3138 = vmatpush1.msra.mxu0 0.0
        %3139 = vmatprep.subr.mxu0 0.0
        %3140 = vmatpush1.msra.mxu0 0.0
        %3141 = vmatprep.subr.mxu0 0.0
        %3142 = vmatpush1.msra.mxu0 0.0
        %3143 = vmatprep.subr.mxu0 0.0
        %3144 = vmatpush1.msra.mxu0 0.0
        %3145 = vmatprep.subr.mxu0 0.0
        %3146 = vmatpush1.msra.mxu0 0.0
        %3147 = vmatprep.subr.mxu0 0.0
        %3148 = vmatpush1.msra.mxu0 0.0
        %3149 = vmatprep.subr.mxu0 0.0
        %3150 = vmatpush1.msra.mxu0 0.0
        %3151 = vmatprep.subr.mxu0 0.0
        %3152 = vmatpush1.msra.mxu0 0.0
        %3153 = vmatprep.subr.mxu0 0.0
        %3154 = vmatpush1.msra.mxu0 0.0
        %3155 = vmatprep.subr.mxu0 0.0
        %3156 = vmatpush1.msra.mxu0 0.0
        %3157 = vmatprep.subr.mxu0 0.0
        %3158 = vmatpush1.msra.mxu0 0.0
        %3159 = vmatprep.subr.mxu0 0.0
        %3160 = vmatpush1.msra.mxu0 0.0
        %3161 = vmatprep.subr.mxu0 0.0
        %3162 = vmatpush1.msra.mxu0 0.0
        %3163 = vmatprep.subr.mxu0 0.0
        %3164 = vmatpush1.msra.mxu0 0.0
        %3165 = vmatprep.subr.mxu0 0.0
        %3166 = vmatpush1.msra.mxu0 0.0
        %3167 = vmatprep.subr.mxu0 0.0
        %3168 = vmatpush1.msra.mxu0 0.0
        %3169 = vmatprep.subr.mxu0 0.0
        %3170 = vmatpush1.msra.mxu0 0.0
        %3171 = vmatprep.subr.mxu0 0.0
        %3172 = vmatpush1.msra.mxu0 0.0
        %3173 = vmatprep.subr.mxu0 0.0
        %3174 = vmatpush1.msra.mxu0 0.0
        %3175 = vmatprep.subr.mxu0 0.0
        %3176 = vmatpush1.msra.mxu0 0.0
        %3177 = vmatprep.subr.mxu0 0.0
        %3178 = vmatpush1.msra.mxu0 0.0
        %3179 = vmatprep.subr.mxu0 0.0
        %3180 = vmatpush1.msra.mxu0 0.0
        %3181 = vmatprep.subr.mxu0 0.0
        %3182 = vmatpush1.msra.mxu0 0.0
        %3183 = vmatprep.subr.mxu0 0.0
        %3184 = vmatpush1.msra.mxu0 0.0
        %3185 = vmatprep.subr.mxu0 0.0
        %3186 = vmatpush1.msra.mxu0 0.0
        %3187 = vmatprep.subr.mxu0 0.0
        %3188 = vmatpush1.msra.mxu0 0.0
        %3189 = vmatprep.subr.mxu0 0.0
        %3190 = vmatpush1.msra.mxu0 0.0
        %3191 = vmatprep.mubr.f32.mxu0 0.0
        %3192 = vmatmul.mubr.f32.gmra.mrb[0].mxu0 %v2996
        %v3193 = vpop.f32.mrb[0].mxu0
        %v3194 = vadd.f32 0.0, %v3193
        %v3195 = vpop.f32.mrb[0].mxu0
        %3196 = vmatprep.mubr.f32.mxu0 0.0
        %3197 = vmatmul.mubr.f32.gmra.mrb[0].mxu0 %v2999
        %v3198 = vpop.f32.mrb[0].mxu0
        %v3199 = vadd.f32 0.0, %v3198
        %v3200 = vpop.f32.mrb[0].mxu0
        %3201 = vmatprep.mubr.f32.mxu0 0.0
        %3202 = vmatmul.mubr.f32.gmra.mrb[0].mxu0 %v3002
        %v3203 = vpop.f32.mrb[0].mxu0
        %v3204 = vadd.f32 0.0, %v3203
        %v3205 = vpop.f32.mrb[0].mxu0
        %3206 = vmatprep.mubr.f32.mxu0 0.0
        %3207 = vmatmul.mubr.f32.gmra.mrb[0].mxu0 %v3005
        %v3208 = vpop.f32.mrb[0].mxu0
        %v3209 = vadd.f32 0.0, %v3208
        %v3210 = vpop.f32.mrb[0].mxu0
        %3211 = vdwg.mxu0
        %s3212 = scalar_lea.vmem %s217, 32 [#allocation2]
        %3213 = vst.msk [vmem:[%s3212] sm:$0xff] %vm3092, %v3194
        %3214 = vst.msk [vmem:[%s3212 + $0x8] sm:$0xff] %vm3092, %v3199
        %3215 = vst.msk [vmem:[%s3212 + $0x10] sm:$0xff] %vm3092, %v3204
        %3216 = vst.msk [vmem:[%s3212 + $0x18] sm:$0xff] %vm3092, %v3209
        %v3217 = vrot.slane %v1815, 2
        %v3218 = vrot.slane %v1889, 1
        %v3219 = vsel %vm2958, %v3218, %v3217
        %v3220 = vsel %vm2961, %v1963, %v3219
        %v3221 = vrot.slane %v2037, 7
        %v3222 = vsel %vm2964, %v3221, %v3220
        %v3223 = vrot.slane %v2111, 6
        %v3224 = vsel %vm2967, %v3223, %v3222
        %v3225 = vrot.slane %v2185, 5
        %v3226 = vsel %vm2970, %v3225, %v3224
        %v3227 = vrot.slane %v2259, 4
        %v3228 = vsel %vm2973, %v3227, %v3226
        %v3229 = vrot.slane %v2338, 3
        %v3230 = vsel %vm2976, %v3229, %v3228
        %v3231 = vrot.slane %v2412, 2
        %v3232 = vrot.slane %v2486, 1
        %v3233 = vsel %vm2958, %v3232, %v3231
        %v3234 = vsel %vm2961, %v2560, %v3233
        %v3235 = vrot.slane %v2634, 7
        %v3236 = vsel %vm2964, %v3235, %v3234
        %v3237 = vrot.slane %v2708, 6
        %v3238 = vsel %vm2967, %v3237, %v3236
        %v3239 = vrot.slane %v2782, 5
        %v3240 = vsel %vm2970, %v3239, %v3238
        %v3241 = vrot.slane %v2860, 4
        %v3242 = vsel %vm2973, %v3241, %v3240
        %v3243 = vrot.slane %v2934, 3
        %v3244 = vsel %vm2976, %v3243, %v3242
        %3247 = vmatprep.subr.mxu0 0.0
        %3248 = vmatpush1.msra.mxu0 %v3230
        %3249 = vmatprep.subr.mxu0 0.0
        %3250 = vmatpush1.msra.mxu0 %v3244
        %3251 = vmatprep.subr.mxu0 0.0
        %3252 = vmatpush1.msra.mxu0 0.0
        %3253 = vmatprep.subr.mxu0 0.0
        %3254 = vmatpush1.msra.mxu0 0.0
        %3255 = vmatprep.subr.mxu0 0.0
        %3256 = vmatpush1.msra.mxu0 0.0
        %3257 = vmatprep.subr.mxu0 0.0
        %3258 = vmatpush1.msra.mxu0 0.0
        %3259 = vmatprep.subr.mxu0 0.0
        %3260 = vmatpush1.msra.mxu0 0.0
        %3261 = vmatprep.subr.mxu0 0.0
        %3262 = vmatpush1.msra.mxu0 0.0
        %3263 = vmatprep.subr.mxu0 0.0
        %3264 = vmatpush1.msra.mxu0 0.0
        %3265 = vmatprep.subr.mxu0 0.0
        %3266 = vmatpush1.msra.mxu0 0.0
        %3267 = vmatprep.subr.mxu0 0.0
        %3268 = vmatpush1.msra.mxu0 0.0
        %3269 = vmatprep.subr.mxu0 0.0
        %3270 = vmatpush1.msra.mxu0 0.0
        %3271 = vmatprep.subr.mxu0 0.0
        %3272 = vmatpush1.msra.mxu0 0.0
        %3273 = vmatprep.subr.mxu0 0.0
        %3274 = vmatpush1.msra.mxu0 0.0
        %3275 = vmatprep.subr.mxu0 0.0
        %3276 = vmatpush1.msra.mxu0 0.0
        %3277 = vmatprep.subr.mxu0 0.0
        %3278 = vmatpush1.msra.mxu0 0.0
        %3279 = vmatprep.subr.mxu0 0.0
        %3280 = vmatpush1.msra.mxu0 0.0
        %3281 = vmatprep.subr.mxu0 0.0
        %3282 = vmatpush1.msra.mxu0 0.0
        %3283 = vmatprep.subr.mxu0 0.0
        %3284 = vmatpush1.msra.mxu0 0.0
        %3285 = vmatprep.subr.mxu0 0.0
        %3286 = vmatpush1.msra.mxu0 0.0
        %3287 = vmatprep.subr.mxu0 0.0
        %3288 = vmatpush1.msra.mxu0 0.0
        %3289 = vmatprep.subr.mxu0 0.0
        %3290 = vmatpush1.msra.mxu0 0.0
        %3291 = vmatprep.subr.mxu0 0.0
        %3292 = vmatpush1.msra.mxu0 0.0
        %3293 = vmatprep.subr.mxu0 0.0
        %3294 = vmatpush1.msra.mxu0 0.0
        %3295 = vmatprep.subr.mxu0 0.0
        %3296 = vmatpush1.msra.mxu0 0.0
        %3297 = vmatprep.subr.mxu0 0.0
        %3298 = vmatpush1.msra.mxu0 0.0
        %3299 = vmatprep.subr.mxu0 0.0
        %3300 = vmatpush1.msra.mxu0 0.0
        %3301 = vmatprep.subr.mxu0 0.0
        %3302 = vmatpush1.msra.mxu0 0.0
        %3303 = vmatprep.subr.mxu0 0.0
        %3304 = vmatpush1.msra.mxu0 0.0
        %3305 = vmatprep.subr.mxu0 0.0
        %3306 = vmatpush1.msra.mxu0 0.0
        %3307 = vmatprep.subr.mxu0 0.0
        %3308 = vmatpush1.msra.mxu0 0.0
        %3309 = vmatprep.subr.mxu0 0.0
        %3310 = vmatpush1.msra.mxu0 0.0
        %3311 = vmatprep.mubr.f32.mxu0 0.0
        %3312 = vmatmul.mubr.f32.gmra.mrb[0].mxu0 %v2996
        %v3313 = vpop.f32.mrb[0].mxu0
        %v3314 = vadd.f32 0.0, %v3313
        %v3315 = vpop.f32.mrb[0].mxu0
        %3316 = vmatprep.mubr.f32.mxu0 0.0
        %3317 = vmatmul.mubr.f32.gmra.mrb[0].mxu0 %v2999
        %v3318 = vpop.f32.mrb[0].mxu0
        %v3319 = vadd.f32 0.0, %v3318
        %v3320 = vpop.f32.mrb[0].mxu0
        %3321 = vmatprep.mubr.f32.mxu0 0.0
        %3322 = vmatmul.mubr.f32.gmra.mrb[0].mxu0 %v3002
        %v3323 = vpop.f32.mrb[0].mxu0
        %v3324 = vadd.f32 0.0, %v3323
        %v3325 = vpop.f32.mrb[0].mxu0
        %3326 = vmatprep.mubr.f32.mxu0 0.0
        %3327 = vmatmul.mubr.f32.gmra.mrb[0].mxu0 %v3005
        %v3328 = vpop.f32.mrb[0].mxu0
        %v3329 = vadd.f32 0.0, %v3328
        %v3330 = vpop.f32.mrb[0].mxu0
        %3331 = vdwg.mxu0
        %s3332 = scalar_lea.vmem %s217, 64 [#allocation2]
        %3333 = vst.msk [vmem:[%s3332] sm:$0xff] %vm3092, %v3314
        %3334 = vst.msk [vmem:[%s3332 + $0x8] sm:$0xff] %vm3092, %v3319
        %3335 = vst.msk [vmem:[%s3332 + $0x10] sm:$0xff] %vm3092, %v3324
        %3336 = vst.msk [vmem:[%s3332 + $0x18] sm:$0xff] %vm3092, %v3329
        %v3337 = vrot.slane %v1815, 3
        %v3338 = vrot.slane %v1889, 2
        %v3339 = vsel %vm2958, %v3338, %v3337
        %v3340 = vrot.slane %v1963, 1
        %v3341 = vsel %vm2961, %v3340, %v3339
        %v3342 = vsel %vm2964, %v2037, %v3341
        %v3343 = vrot.slane %v2111, 7
        %v3344 = vsel %vm2967, %v3343, %v3342
        %v3345 = vrot.slane %v2185, 6
        %v3346 = vsel %vm2970, %v3345, %v3344
        %v3347 = vrot.slane %v2259, 5
        %v3348 = vsel %vm2973, %v3347, %v3346
        %v3349 = vrot.slane %v2338, 4
        %v3350 = vsel %vm2976, %v3349, %v3348
        %v3351 = vrot.slane %v2412, 3
        %v3352 = vrot.slane %v2486, 2
        %v3353 = vsel %vm2958, %v3352, %v3351
        %v3354 = vrot.slane %v2560, 1
        %v3355 = vsel %vm2961, %v3354, %v3353
        %v3356 = vsel %vm2964, %v2634, %v3355
        %v3357 = vrot.slane %v2708, 7
        %v3358 = vsel %vm2967, %v3357, %v3356
        %v3359 = vrot.slane %v2782, 6
        %v3360 = vsel %vm2970, %v3359, %v3358
        %v3361 = vrot.slane %v2860, 5
        %v3362 = vsel %vm2973, %v3361, %v3360
        %v3363 = vrot.slane %v2934, 4
        %v3364 = vsel %vm2976, %v3363, %v3362
        %3367 = vmatprep.subr.mxu0 0.0
        %3368 = vmatpush1.msra.mxu0 %v3350
        %3369 = vmatprep.subr.mxu0 0.0
        %3370 = vmatpush1.msra.mxu0 %v3364
        %3371 = vmatprep.subr.mxu0 0.0
        %3372 = vmatpush1.msra.mxu0 0.0
        %3373 = vmatprep.subr.mxu0 0.0
        %3374 = vmatpush1.msra.mxu0 0.0
        %3375 = vmatprep.subr.mxu0 0.0
        %3376 = vmatpush1.msra.mxu0 0.0
        %3377 = vmatprep.subr.mxu0 0.0
        %3378 = vmatpush1.msra.mxu0 0.0
        %3379 = vmatprep.subr.mxu0 0.0
        %3380 = vmatpush1.msra.mxu0 0.0
        %3381 = vmatprep.subr.mxu0 0.0
        %3382 = vmatpush1.msra.mxu0 0.0
        %3383 = vmatprep.subr.mxu0 0.0
        %3384 = vmatpush1.msra.mxu0 0.0
        %3385 = vmatprep.subr.mxu0 0.0
        %3386 = vmatpush1.msra.mxu0 0.0
        %3387 = vmatprep.subr.mxu0 0.0
        %3388 = vmatpush1.msra.mxu0 0.0
        %3389 = vmatprep.subr.mxu0 0.0
        %3390 = vmatpush1.msra.mxu0 0.0
        %3391 = vmatprep.subr.mxu0 0.0
        %3392 = vmatpush1.msra.mxu0 0.0
        %3393 = vmatprep.subr.mxu0 0.0
        %3394 = vmatpush1.msra.mxu0 0.0
        %3395 = vmatprep.subr.mxu0 0.0
        %3396 = vmatpush1.msra.mxu0 0.0
        %3397 = vmatprep.subr.mxu0 0.0
        %3398 = vmatpush1.msra.mxu0 0.0
        %3399 = vmatprep.subr.mxu0 0.0
        %3400 = vmatpush1.msra.mxu0 0.0
        %3401 = vmatprep.subr.mxu0 0.0
        %3402 = vmatpush1.msra.mxu0 0.0
        %3403 = vmatprep.subr.mxu0 0.0
        %3404 = vmatpush1.msra.mxu0 0.0
        %3405 = vmatprep.subr.mxu0 0.0
        %3406 = vmatpush1.msra.mxu0 0.0
        %3407 = vmatprep.subr.mxu0 0.0
        %3408 = vmatpush1.msra.mxu0 0.0
        %3409 = vmatprep.subr.mxu0 0.0
        %3410 = vmatpush1.msra.mxu0 0.0
        %3411 = vmatprep.subr.mxu0 0.0
        %3412 = vmatpush1.msra.mxu0 0.0
        %3413 = vmatprep.subr.mxu0 0.0
        %3414 = vmatpush1.msra.mxu0 0.0
        %3415 = vmatprep.subr.mxu0 0.0
        %3416 = vmatpush1.msra.mxu0 0.0
        %3417 = vmatprep.subr.mxu0 0.0
        %3418 = vmatpush1.msra.mxu0 0.0
        %3419 = vmatprep.subr.mxu0 0.0
        %3420 = vmatpush1.msra.mxu0 0.0
        %3421 = vmatprep.subr.mxu0 0.0
        %3422 = vmatpush1.msra.mxu0 0.0
        %3423 = vmatprep.subr.mxu0 0.0
        %3424 = vmatpush1.msra.mxu0 0.0
        %3425 = vmatprep.subr.mxu0 0.0
        %3426 = vmatpush1.msra.mxu0 0.0
        %3427 = vmatprep.subr.mxu0 0.0
        %3428 = vmatpush1.msra.mxu0 0.0
        %3429 = vmatprep.subr.mxu0 0.0
        %3430 = vmatpush1.msra.mxu0 0.0
        %3431 = vmatprep.mubr.f32.mxu0 0.0
        %3432 = vmatmul.mubr.f32.gmra.mrb[0].mxu0 %v2996
        %v3433 = vpop.f32.mrb[0].mxu0
        %v3434 = vadd.f32 0.0, %v3433
        %v3435 = vpop.f32.mrb[0].mxu0
        %3436 = vmatprep.mubr.f32.mxu0 0.0
        %3437 = vmatmul.mubr.f32.gmra.mrb[0].mxu0 %v2999
        %v3438 = vpop.f32.mrb[0].mxu0
        %v3439 = vadd.f32 0.0, %v3438
        %v3440 = vpop.f32.mrb[0].mxu0
        %3441 = vmatprep.mubr.f32.mxu0 0.0
        %3442 = vmatmul.mubr.f32.gmra.mrb[0].mxu0 %v3002
        %v3443 = vpop.f32.mrb[0].mxu0
        %v3444 = vadd.f32 0.0, %v3443
        %v3445 = vpop.f32.mrb[0].mxu0
        %3446 = vmatprep.mubr.f32.mxu0 0.0
        %3447 = vmatmul.mubr.f32.gmra.mrb[0].mxu0 %v3005
        %v3448 = vpop.f32.mrb[0].mxu0
        %v3449 = vadd.f32 0.0, %v3448
        %v3450 = vpop.f32.mrb[0].mxu0
        %3451 = vdwg.mxu0
        %s3452 = scalar_lea.vmem %s217, 96 [#allocation2]
        %3453 = vst.msk [vmem:[%s3452] sm:$0xff] %vm3092, %v3434
        %3454 = vst.msk [vmem:[%s3452 + $0x8] sm:$0xff] %vm3092, %v3439
        %3455 = vst.msk [vmem:[%s3452 + $0x10] sm:$0xff] %vm3092, %v3444
        %3456 = vst.msk [vmem:[%s3452 + $0x18] sm:$0xff] %vm3092, %v3449
        %v3457 = vrot.slane %v1815, 4
        %v3458 = vrot.slane %v1889, 3
        %v3459 = vsel %vm2958, %v3458, %v3457
        %v3460 = vrot.slane %v1963, 2
        %v3461 = vsel %vm2961, %v3460, %v3459
        %v3462 = vrot.slane %v2037, 1
        %v3463 = vsel %vm2964, %v3462, %v3461
        %v3464 = vsel %vm2967, %v2111, %v3463
        %v3465 = vrot.slane %v2185, 7
        %v3466 = vsel %vm2970, %v3465, %v3464
        %v3467 = vrot.slane %v2259, 6
        %v3468 = vsel %vm2973, %v3467, %v3466
        %v3469 = vrot.slane %v2338, 5
        %v3470 = vsel %vm2976, %v3469, %v3468
        %v3471 = vrot.slane %v2412, 4
        %v3472 = vrot.slane %v2486, 3
        %v3473 = vsel %vm2958, %v3472, %v3471
        %v3474 = vrot.slane %v2560, 2
        %v3475 = vsel %vm2961, %v3474, %v3473
        %v3476 = vrot.slane %v2634, 1
        %v3477 = vsel %vm2964, %v3476, %v3475
        %v3478 = vsel %vm2967, %v2708, %v3477
        %v3479 = vrot.slane %v2782, 7
        %v3480 = vsel %vm2970, %v3479, %v3478
        %v3481 = vrot.slane %v2860, 6
        %v3482 = vsel %vm2973, %v3481, %v3480
        %v3483 = vrot.slane %v2934, 5
        %v3484 = vsel %vm2976, %v3483, %v3482
        %3487 = vmatprep.subr.mxu0 0.0
        %3488 = vmatpush1.msra.mxu0 %v3470
        %3489 = vmatprep.subr.mxu0 0.0
        %3490 = vmatpush1.msra.mxu0 %v3484
        %3491 = vmatprep.subr.mxu0 0.0
        %3492 = vmatpush1.msra.mxu0 0.0
        %3493 = vmatprep.subr.mxu0 0.0
        %3494 = vmatpush1.msra.mxu0 0.0
        %3495 = vmatprep.subr.mxu0 0.0
        %3496 = vmatpush1.msra.mxu0 0.0
        %3497 = vmatprep.subr.mxu0 0.0
        %3498 = vmatpush1.msra.mxu0 0.0
        %3499 = vmatprep.subr.mxu0 0.0
        %3500 = vmatpush1.msra.mxu0 0.0
        %3501 = vmatprep.subr.mxu0 0.0
        %3502 = vmatpush1.msra.mxu0 0.0
        %3503 = vmatprep.subr.mxu0 0.0
        %3504 = vmatpush1.msra.mxu0 0.0
        %3505 = vmatprep.subr.mxu0 0.0
        %3506 = vmatpush1.msra.mxu0 0.0
        %3507 = vmatprep.subr.mxu0 0.0
        %3508 = vmatpush1.msra.mxu0 0.0
        %3509 = vmatprep.subr.mxu0 0.0
        %3510 = vmatpush1.msra.mxu0 0.0
        %3511 = vmatprep.subr.mxu0 0.0
        %3512 = vmatpush1.msra.mxu0 0.0
        %3513 = vmatprep.subr.mxu0 0.0
        %3514 = vmatpush1.msra.mxu0 0.0
        %3515 = vmatprep.subr.mxu0 0.0
        %3516 = vmatpush1.msra.mxu0 0.0
        %3517 = vmatprep.subr.mxu0 0.0
        %3518 = vmatpush1.msra.mxu0 0.0
        %3519 = vmatprep.subr.mxu0 0.0
        %3520 = vmatpush1.msra.mxu0 0.0
        %3521 = vmatprep.subr.mxu0 0.0
        %3522 = vmatpush1.msra.mxu0 0.0
        %3523 = vmatprep.subr.mxu0 0.0
        %3524 = vmatpush1.msra.mxu0 0.0
        %3525 = vmatprep.subr.mxu0 0.0
        %3526 = vmatpush1.msra.mxu0 0.0
        %3527 = vmatprep.subr.mxu0 0.0
        %3528 = vmatpush1.msra.mxu0 0.0
        %3529 = vmatprep.subr.mxu0 0.0
        %3530 = vmatpush1.msra.mxu0 0.0
        %3531 = vmatprep.subr.mxu0 0.0
        %3532 = vmatpush1.msra.mxu0 0.0
        %3533 = vmatprep.subr.mxu0 0.0
        %3534 = vmatpush1.msra.mxu0 0.0
        %3535 = vmatprep.subr.mxu0 0.0
        %3536 = vmatpush1.msra.mxu0 0.0
        %3537 = vmatprep.subr.mxu0 0.0
        %3538 = vmatpush1.msra.mxu0 0.0
        %3539 = vmatprep.subr.mxu0 0.0
        %3540 = vmatpush1.msra.mxu0 0.0
        %3541 = vmatprep.subr.mxu0 0.0
        %3542 = vmatpush1.msra.mxu0 0.0
        %3543 = vmatprep.subr.mxu0 0.0
        %3544 = vmatpush1.msra.mxu0 0.0
        %3545 = vmatprep.subr.mxu0 0.0
        %3546 = vmatpush1.msra.mxu0 0.0
        %3547 = vmatprep.subr.mxu0 0.0
        %3548 = vmatpush1.msra.mxu0 0.0
        %3549 = vmatprep.subr.mxu0 0.0
        %3550 = vmatpush1.msra.mxu0 0.0
        %3551 = vmatprep.mubr.f32.mxu0 0.0
        %3552 = vmatmul.mubr.f32.gmra.mrb[0].mxu0 %v2996
        %v3553 = vpop.f32.mrb[0].mxu0
        %v3554 = vadd.f32 0.0, %v3553
        %v3555 = vpop.f32.mrb[0].mxu0
        %3556 = vmatprep.mubr.f32.mxu0 0.0
        %3557 = vmatmul.mubr.f32.gmra.mrb[0].mxu0 %v2999
        %v3558 = vpop.f32.mrb[0].mxu0
        %v3559 = vadd.f32 0.0, %v3558
        %v3560 = vpop.f32.mrb[0].mxu0
        %3561 = vmatprep.mubr.f32.mxu0 0.0
        %3562 = vmatmul.mubr.f32.gmra.mrb[0].mxu0 %v3002
        %v3563 = vpop.f32.mrb[0].mxu0
        %v3564 = vadd.f32 0.0, %v3563
        %v3565 = vpop.f32.mrb[0].mxu0
        %3566 = vmatprep.mubr.f32.mxu0 0.0
        %3567 = vmatmul.mubr.f32.gmra.mrb[0].mxu0 %v3005
        %v3568 = vpop.f32.mrb[0].mxu0
        %v3569 = vadd.f32 0.0, %v3568
        %v3570 = vpop.f32.mrb[0].mxu0
        %3571 = vdwg.mxu0
        %s3572 = scalar_lea.vmem %s217, 128 [#allocation2]
        %3573 = vst.msk [vmem:[%s3572] sm:$0xff] %vm3092, %v3554
        %3574 = vst.msk [vmem:[%s3572 + $0x8] sm:$0xff] %vm3092, %v3559
        %3575 = vst.msk [vmem:[%s3572 + $0x10] sm:$0xff] %vm3092, %v3564
        %3576 = vst.msk [vmem:[%s3572 + $0x18] sm:$0xff] %vm3092, %v3569
        %v3577 = vrot.slane %v1815, 5
        %v3578 = vrot.slane %v1889, 4
        %v3579 = vsel %vm2958, %v3578, %v3577
        %v3580 = vrot.slane %v1963, 3
        %v3581 = vsel %vm2961, %v3580, %v3579
        %v3582 = vrot.slane %v2037, 2
        %v3583 = vsel %vm2964, %v3582, %v3581
        %v3584 = vrot.slane %v2111, 1
        %v3585 = vsel %vm2967, %v3584, %v3583
        %v3586 = vsel %vm2970, %v2185, %v3585
        %v3587 = vrot.slane %v2259, 7
        %v3588 = vsel %vm2973, %v3587, %v3586
        %v3589 = vrot.slane %v2338, 6
        %v3590 = vsel %vm2976, %v3589, %v3588
        %v3591 = vrot.slane %v2412, 5
        %v3592 = vrot.slane %v2486, 4
        %v3593 = vsel %vm2958, %v3592, %v3591
        %v3594 = vrot.slane %v2560, 3
        %v3595 = vsel %vm2961, %v3594, %v3593
        %v3596 = vrot.slane %v2634, 2
        %v3597 = vsel %vm2964, %v3596, %v3595
        %v3598 = vrot.slane %v2708, 1
        %v3599 = vsel %vm2967, %v3598, %v3597
        %v3600 = vsel %vm2970, %v2782, %v3599
        %v3601 = vrot.slane %v2860, 7
        %v3602 = vsel %vm2973, %v3601, %v3600
        %v3603 = vrot.slane %v2934, 6
        %v3604 = vsel %vm2976, %v3603, %v3602
        %3607 = vmatprep.subr.mxu0 0.0
        %3608 = vmatpush1.msra.mxu0 %v3590
        %3609 = vmatprep.subr.mxu0 0.0
        %3610 = vmatpush1.msra.mxu0 %v3604
        %3611 = vmatprep.subr.mxu0 0.0
        %3612 = vmatpush1.msra.mxu0 0.0
        %3613 = vmatprep.subr.mxu0 0.0
        %3614 = vmatpush1.msra.mxu0 0.0
        %3615 = vmatprep.subr.mxu0 0.0
        %3616 = vmatpush1.msra.mxu0 0.0
        %3617 = vmatprep.subr.mxu0 0.0
        %3618 = vmatpush1.msra.mxu0 0.0
        %3619 = vmatprep.subr.mxu0 0.0
        %3620 = vmatpush1.msra.mxu0 0.0
        %3621 = vmatprep.subr.mxu0 0.0
        %3622 = vmatpush1.msra.mxu0 0.0
        %3623 = vmatprep.subr.mxu0 0.0
        %3624 = vmatpush1.msra.mxu0 0.0
        %3625 = vmatprep.subr.mxu0 0.0
        %3626 = vmatpush1.msra.mxu0 0.0
        %3627 = vmatprep.subr.mxu0 0.0
        %3628 = vmatpush1.msra.mxu0 0.0
        %3629 = vmatprep.subr.mxu0 0.0
        %3630 = vmatpush1.msra.mxu0 0.0
        %3631 = vmatprep.subr.mxu0 0.0
        %3632 = vmatpush1.msra.mxu0 0.0
        %3633 = vmatprep.subr.mxu0 0.0
        %3634 = vmatpush1.msra.mxu0 0.0
        %3635 = vmatprep.subr.mxu0 0.0
        %3636 = vmatpush1.msra.mxu0 0.0
        %3637 = vmatprep.subr.mxu0 0.0
        %3638 = vmatpush1.msra.mxu0 0.0
        %3639 = vmatprep.subr.mxu0 0.0
        %3640 = vmatpush1.msra.mxu0 0.0
        %3641 = vmatprep.subr.mxu0 0.0
        %3642 = vmatpush1.msra.mxu0 0.0
        %3643 = vmatprep.subr.mxu0 0.0
        %3644 = vmatpush1.msra.mxu0 0.0
        %3645 = vmatprep.subr.mxu0 0.0
        %3646 = vmatpush1.msra.mxu0 0.0
        %3647 = vmatprep.subr.mxu0 0.0
        %3648 = vmatpush1.msra.mxu0 0.0
        %3649 = vmatprep.subr.mxu0 0.0
        %3650 = vmatpush1.msra.mxu0 0.0
        %3651 = vmatprep.subr.mxu0 0.0
        %3652 = vmatpush1.msra.mxu0 0.0
        %3653 = vmatprep.subr.mxu0 0.0
        %3654 = vmatpush1.msra.mxu0 0.0
        %3655 = vmatprep.subr.mxu0 0.0
        %3656 = vmatpush1.msra.mxu0 0.0
        %3657 = vmatprep.subr.mxu0 0.0
        %3658 = vmatpush1.msra.mxu0 0.0
        %3659 = vmatprep.subr.mxu0 0.0
        %3660 = vmatpush1.msra.mxu0 0.0
        %3661 = vmatprep.subr.mxu0 0.0
        %3662 = vmatpush1.msra.mxu0 0.0
        %3663 = vmatprep.subr.mxu0 0.0
        %3664 = vmatpush1.msra.mxu0 0.0
        %3665 = vmatprep.subr.mxu0 0.0
        %3666 = vmatpush1.msra.mxu0 0.0
        %3667 = vmatprep.subr.mxu0 0.0
        %3668 = vmatpush1.msra.mxu0 0.0
        %3669 = vmatprep.subr.mxu0 0.0
        %3670 = vmatpush1.msra.mxu0 0.0
        %3671 = vmatprep.mubr.f32.mxu0 0.0
        %3672 = vmatmul.mubr.f32.gmra.mrb[0].mxu0 %v2996
        %v3673 = vpop.f32.mrb[0].mxu0
        %v3674 = vadd.f32 0.0, %v3673
        %v3675 = vpop.f32.mrb[0].mxu0
        %3676 = vmatprep.mubr.f32.mxu0 0.0
        %3677 = vmatmul.mubr.f32.gmra.mrb[0].mxu0 %v2999
        %v3678 = vpop.f32.mrb[0].mxu0
        %v3679 = vadd.f32 0.0, %v3678
        %v3680 = vpop.f32.mrb[0].mxu0
        %3681 = vmatprep.mubr.f32.mxu0 0.0
        %3682 = vmatmul.mubr.f32.gmra.mrb[0].mxu0 %v3002
        %v3683 = vpop.f32.mrb[0].mxu0
        %v3684 = vadd.f32 0.0, %v3683
        %v3685 = vpop.f32.mrb[0].mxu0
        %3686 = vmatprep.mubr.f32.mxu0 0.0
        %3687 = vmatmul.mubr.f32.gmra.mrb[0].mxu0 %v3005
        %v3688 = vpop.f32.mrb[0].mxu0
        %v3689 = vadd.f32 0.0, %v3688
        %v3690 = vpop.f32.mrb[0].mxu0
        %3691 = vdwg.mxu0
        %s3692 = scalar_lea.vmem %s217, 160 [#allocation2]
        %3693 = vst.msk [vmem:[%s3692] sm:$0xff] %vm3092, %v3674
        %3694 = vst.msk [vmem:[%s3692 + $0x8] sm:$0xff] %vm3092, %v3679
        %3695 = vst.msk [vmem:[%s3692 + $0x10] sm:$0xff] %vm3092, %v3684
        %3696 = vst.msk [vmem:[%s3692 + $0x18] sm:$0xff] %vm3092, %v3689
        %v3697 = vrot.slane %v1815, 6
        %v3698 = vrot.slane %v1889, 5
        %v3699 = vsel %vm2958, %v3698, %v3697
        %v3700 = vrot.slane %v1963, 4
        %v3701 = vsel %vm2961, %v3700, %v3699
        %v3702 = vrot.slane %v2037, 3
        %v3703 = vsel %vm2964, %v3702, %v3701
        %v3704 = vrot.slane %v2111, 2
        %v3705 = vsel %vm2967, %v3704, %v3703
        %v3706 = vrot.slane %v2185, 1
        %v3707 = vsel %vm2970, %v3706, %v3705
        %v3708 = vsel %vm2973, %v2259, %v3707
        %v3709 = vrot.slane %v2338, 7
        %v3710 = vsel %vm2976, %v3709, %v3708
        %v3711 = vrot.slane %v2412, 6
        %v3712 = vrot.slane %v2486, 5
        %v3713 = vsel %vm2958, %v3712, %v3711
        %v3714 = vrot.slane %v2560, 4
        %v3715 = vsel %vm2961, %v3714, %v3713
        %v3716 = vrot.slane %v2634, 3
        %v3717 = vsel %vm2964, %v3716, %v3715
        %v3718 = vrot.slane %v2708, 2
        %v3719 = vsel %vm2967, %v3718, %v3717
        %v3720 = vrot.slane %v2782, 1
        %v3721 = vsel %vm2970, %v3720, %v3719
        %v3722 = vsel %vm2973, %v2860, %v3721
        %v3723 = vrot.slane %v2934, 7
        %v3724 = vsel %vm2976, %v3723, %v3722
        %3727 = vmatprep.subr.mxu0 0.0
        %3728 = vmatpush1.msra.mxu0 %v3710
        %3729 = vmatprep.subr.mxu0 0.0
        %3730 = vmatpush1.msra.mxu0 %v3724
        %3731 = vmatprep.subr.mxu0 0.0
        %3732 = vmatpush1.msra.mxu0 0.0
        %3733 = vmatprep.subr.mxu0 0.0
        %3734 = vmatpush1.msra.mxu0 0.0
        %3735 = vmatprep.subr.mxu0 0.0
        %3736 = vmatpush1.msra.mxu0 0.0
        %3737 = vmatprep.subr.mxu0 0.0
        %3738 = vmatpush1.msra.mxu0 0.0
        %3739 = vmatprep.subr.mxu0 0.0
        %3740 = vmatpush1.msra.mxu0 0.0
        %3741 = vmatprep.subr.mxu0 0.0
        %3742 = vmatpush1.msra.mxu0 0.0
        %3743 = vmatprep.subr.mxu0 0.0
        %3744 = vmatpush1.msra.mxu0 0.0
        %3745 = vmatprep.subr.mxu0 0.0
        %3746 = vmatpush1.msra.mxu0 0.0
        %3747 = vmatprep.subr.mxu0 0.0
        %3748 = vmatpush1.msra.mxu0 0.0
        %3749 = vmatprep.subr.mxu0 0.0
        %3750 = vmatpush1.msra.mxu0 0.0
        %3751 = vmatprep.subr.mxu0 0.0
        %3752 = vmatpush1.msra.mxu0 0.0
        %3753 = vmatprep.subr.mxu0 0.0
        %3754 = vmatpush1.msra.mxu0 0.0
        %3755 = vmatprep.subr.mxu0 0.0
        %3756 = vmatpush1.msra.mxu0 0.0
        %3757 = vmatprep.subr.mxu0 0.0
        %3758 = vmatpush1.msra.mxu0 0.0
        %3759 = vmatprep.subr.mxu0 0.0
        %3760 = vmatpush1.msra.mxu0 0.0
        %3761 = vmatprep.subr.mxu0 0.0
        %3762 = vmatpush1.msra.mxu0 0.0
        %3763 = vmatprep.subr.mxu0 0.0
        %3764 = vmatpush1.msra.mxu0 0.0
        %3765 = vmatprep.subr.mxu0 0.0
        %3766 = vmatpush1.msra.mxu0 0.0
        %3767 = vmatprep.subr.mxu0 0.0
        %3768 = vmatpush1.msra.mxu0 0.0
        %3769 = vmatprep.subr.mxu0 0.0
        %3770 = vmatpush1.msra.mxu0 0.0
        %3771 = vmatprep.subr.mxu0 0.0
        %3772 = vmatpush1.msra.mxu0 0.0
        %3773 = vmatprep.subr.mxu0 0.0
        %3774 = vmatpush1.msra.mxu0 0.0
        %3775 = vmatprep.subr.mxu0 0.0
        %3776 = vmatpush1.msra.mxu0 0.0
        %3777 = vmatprep.subr.mxu0 0.0
        %3778 = vmatpush1.msra.mxu0 0.0
        %3779 = vmatprep.subr.mxu0 0.0
        %3780 = vmatpush1.msra.mxu0 0.0
        %3781 = vmatprep.subr.mxu0 0.0
        %3782 = vmatpush1.msra.mxu0 0.0
        %3783 = vmatprep.subr.mxu0 0.0
        %3784 = vmatpush1.msra.mxu0 0.0
        %3785 = vmatprep.subr.mxu0 0.0
        %3786 = vmatpush1.msra.mxu0 0.0
        %3787 = vmatprep.subr.mxu0 0.0
        %3788 = vmatpush1.msra.mxu0 0.0
        %3789 = vmatprep.subr.mxu0 0.0
        %3790 = vmatpush1.msra.mxu0 0.0
        %3791 = vmatprep.mubr.f32.mxu0 0.0
        %3792 = vmatmul.mubr.f32.gmra.mrb[0].mxu0 %v2996
        %v3793 = vpop.f32.mrb[0].mxu0
        %v3794 = vadd.f32 0.0, %v3793
        %v3795 = vpop.f32.mrb[0].mxu0
        %3796 = vmatprep.mubr.f32.mxu0 0.0
        %3797 = vmatmul.mubr.f32.gmra.mrb[0].mxu0 %v2999
        %v3798 = vpop.f32.mrb[0].mxu0
        %v3799 = vadd.f32 0.0, %v3798
        %v3800 = vpop.f32.mrb[0].mxu0
        %3801 = vmatprep.mubr.f32.mxu0 0.0
        %3802 = vmatmul.mubr.f32.gmra.mrb[0].mxu0 %v3002
        %v3803 = vpop.f32.mrb[0].mxu0
        %v3804 = vadd.f32 0.0, %v3803
        %v3805 = vpop.f32.mrb[0].mxu0
        %3806 = vmatprep.mubr.f32.mxu0 0.0
        %3807 = vmatmul.mubr.f32.gmra.mrb[0].mxu0 %v3005
        %v3808 = vpop.f32.mrb[0].mxu0
        %v3809 = vadd.f32 0.0, %v3808
        %v3810 = vpop.f32.mrb[0].mxu0
        %3811 = vdwg.mxu0
        %s3812 = scalar_lea.vmem %s217, 192 [#allocation2]
        %3813 = vst.msk [vmem:[%s3812] sm:$0xff] %vm3092, %v3794
        %3814 = vst.msk [vmem:[%s3812 + $0x8] sm:$0xff] %vm3092, %v3799
        %3815 = vst.msk [vmem:[%s3812 + $0x10] sm:$0xff] %vm3092, %v3804
        %3816 = vst.msk [vmem:[%s3812 + $0x18] sm:$0xff] %vm3092, %v3809
        %v3817 = vrot.slane %v1815, 7
        %v3818 = vrot.slane %v1889, 6
        %v3819 = vsel %vm2958, %v3818, %v3817
        %v3820 = vrot.slane %v1963, 5
        %v3821 = vsel %vm2961, %v3820, %v3819
        %v3822 = vrot.slane %v2037, 4
        %v3823 = vsel %vm2964, %v3822, %v3821
        %v3824 = vrot.slane %v2111, 3
        %v3825 = vsel %vm2967, %v3824, %v3823
        %v3826 = vrot.slane %v2185, 2
        %v3827 = vsel %vm2970, %v3826, %v3825
        %v3828 = vrot.slane %v2259, 1
        %v3829 = vsel %vm2973, %v3828, %v3827
        %v3830 = vsel %vm2976, %v2338, %v3829
        %v3831 = vrot.slane %v2412, 7
        %v3832 = vrot.slane %v2486, 6
        %v3833 = vsel %vm2958, %v3832, %v3831
        %v3834 = vrot.slane %v2560, 5
        %v3835 = vsel %vm2961, %v3834, %v3833
        %v3836 = vrot.slane %v2634, 4
        %v3837 = vsel %vm2964, %v3836, %v3835
        %v3838 = vrot.slane %v2708, 3
        %v3839 = vsel %vm2967, %v3838, %v3837
        %v3840 = vrot.slane %v2782, 2
        %v3841 = vsel %vm2970, %v3840, %v3839
        %v3842 = vrot.slane %v2860, 1
        %v3843 = vsel %vm2973, %v3842, %v3841
        %v3844 = vsel %vm2976, %v2934, %v3843
        %3847 = vmatprep.subr.mxu0 0.0
        %3848 = vmatpush1.msra.mxu0 %v3830
        %3849 = vmatprep.subr.mxu0 0.0
        %3850 = vmatpush1.msra.mxu0 %v3844
        %3851 = vmatprep.subr.mxu0 0.0
        %3852 = vmatpush1.msra.mxu0 0.0
        %3853 = vmatprep.subr.mxu0 0.0
        %3854 = vmatpush1.msra.mxu0 0.0
        %3855 = vmatprep.subr.mxu0 0.0
        %3856 = vmatpush1.msra.mxu0 0.0
        %3857 = vmatprep.subr.mxu0 0.0
        %3858 = vmatpush1.msra.mxu0 0.0
        %3859 = vmatprep.subr.mxu0 0.0
        %3860 = vmatpush1.msra.mxu0 0.0
        %3861 = vmatprep.subr.mxu0 0.0
        %3862 = vmatpush1.msra.mxu0 0.0
        %3863 = vmatprep.subr.mxu0 0.0
        %3864 = vmatpush1.msra.mxu0 0.0
        %3865 = vmatprep.subr.mxu0 0.0
        %3866 = vmatpush1.msra.mxu0 0.0
        %3867 = vmatprep.subr.mxu0 0.0
        %3868 = vmatpush1.msra.mxu0 0.0
        %3869 = vmatprep.subr.mxu0 0.0
        %3870 = vmatpush1.msra.mxu0 0.0
        %3871 = vmatprep.subr.mxu0 0.0
        %3872 = vmatpush1.msra.mxu0 0.0
        %3873 = vmatprep.subr.mxu0 0.0
        %3874 = vmatpush1.msra.mxu0 0.0
        %3875 = vmatprep.subr.mxu0 0.0
        %3876 = vmatpush1.msra.mxu0 0.0
        %3877 = vmatprep.subr.mxu0 0.0
        %3878 = vmatpush1.msra.mxu0 0.0
        %3879 = vmatprep.subr.mxu0 0.0
        %3880 = vmatpush1.msra.mxu0 0.0
        %3881 = vmatprep.subr.mxu0 0.0
        %3882 = vmatpush1.msra.mxu0 0.0
        %3883 = vmatprep.subr.mxu0 0.0
        %3884 = vmatpush1.msra.mxu0 0.0
        %3885 = vmatprep.subr.mxu0 0.0
        %3886 = vmatpush1.msra.mxu0 0.0
        %3887 = vmatprep.subr.mxu0 0.0
        %3888 = vmatpush1.msra.mxu0 0.0
        %3889 = vmatprep.subr.mxu0 0.0
        %3890 = vmatpush1.msra.mxu0 0.0
        %3891 = vmatprep.subr.mxu0 0.0
        %3892 = vmatpush1.msra.mxu0 0.0
        %3893 = vmatprep.subr.mxu0 0.0
        %3894 = vmatpush1.msra.mxu0 0.0
        %3895 = vmatprep.subr.mxu0 0.0
        %3896 = vmatpush1.msra.mxu0 0.0
        %3897 = vmatprep.subr.mxu0 0.0
        %3898 = vmatpush1.msra.mxu0 0.0
        %3899 = vmatprep.subr.mxu0 0.0
        %3900 = vmatpush1.msra.mxu0 0.0
        %3901 = vmatprep.subr.mxu0 0.0
        %3902 = vmatpush1.msra.mxu0 0.0
        %3903 = vmatprep.subr.mxu0 0.0
        %3904 = vmatpush1.msra.mxu0 0.0
        %3905 = vmatprep.subr.mxu0 0.0
        %3906 = vmatpush1.msra.mxu0 0.0
        %3907 = vmatprep.subr.mxu0 0.0
        %3908 = vmatpush1.msra.mxu0 0.0
        %3909 = vmatprep.subr.mxu0 0.0
        %3910 = vmatpush1.msra.mxu0 0.0
        %3911 = vmatprep.mubr.f32.mxu0 0.0
        %3912 = vmatmul.mubr.f32.gmra.mrb[0].mxu0 %v2996
        %v3913 = vpop.f32.mrb[0].mxu0
        %v3914 = vadd.f32 0.0, %v3913
        %v3915 = vpop.f32.mrb[0].mxu0
        %3916 = vmatprep.mubr.f32.mxu0 0.0
        %3917 = vmatmul.mubr.f32.gmra.mrb[0].mxu0 %v2999
        %v3918 = vpop.f32.mrb[0].mxu0
        %v3919 = vadd.f32 0.0, %v3918
        %v3920 = vpop.f32.mrb[0].mxu0
        %3921 = vmatprep.mubr.f32.mxu0 0.0
        %3922 = vmatmul.mubr.f32.gmra.mrb[0].mxu0 %v3002
        %v3923 = vpop.f32.mrb[0].mxu0
        %v3924 = vadd.f32 0.0, %v3923
        %v3925 = vpop.f32.mrb[0].mxu0
        %3926 = vmatprep.mubr.f32.mxu0 0.0
        %3927 = vmatmul.mubr.f32.gmra.mrb[0].mxu0 %v3005
        %v3928 = vpop.f32.mrb[0].mxu0
        %v3929 = vadd.f32 0.0, %v3928
        %v3930 = vpop.f32.mrb[0].mxu0
        %3931 = vdwg.mxu0
        %s3932 = scalar_lea.vmem %s217, 224 [#allocation2]
        %3933 = vst.msk [vmem:[%s3932] sm:$0xff] %vm3092, %v3914
        %3934 = vst.msk [vmem:[%s3932 + $0x8] sm:$0xff] %vm3092, %v3919
        %3935 = vst.msk [vmem:[%s3932 + $0x10] sm:$0xff] %vm3092, %v3924
        %3936 = vst.msk [vmem:[%s3932 + $0x18] sm:$0xff] %vm3092, %v3929
        %s3937 = sand.u32 %s137, 1
        %s3938 = scalar_lea.sflag [#allocation3], %s3937
        %s3939 = sand.u32 %s137, 1
        %s3940 = smul.addr %s3939, 256
        %s3941 = scalar_lea.vmem [#allocation2], %s3940
        // Predicated region
        $region41: #{up_sampling_forward.1} parent=39 // pred_check
          %p3942 = pneg %p147
        $region42: #{up_sampling_forward.1} parent=39 // pred_check_branch
          %3944 = sbr.rel (%p3942) target = $region44
        $region43: #{up_sampling_forward.1} parent=39 // pred_region
          %s3946 = ssub.s32 4096, 4096
          %3947 = vsyncadd %s3938, %s3946
          %s3948 = smul.addr %s19, 32
          %s3949 = smul.addr %s3948, 128
          %s3950 = scalar_lea.hbm %s5, %s3949
          %s3951 = sshll.u32 %s3941, 4
          %s3952 = int_to_ptr.vmem [resolvable:$true] %s3951
          %3957 = dma.vmem_to_hbm [thread:$0]  %s3952, 4096, %s3950, %s3938, 128, 128, 8
        $region44: #{up_sampling_forward.1} parent=39 // pred_fallthru
          _
      $region40: #{up_sampling_forward.1} parent=5 // pred_fallthru
        _
      %p3958 = scmp.le.s32.totalorder 2, %s14
      // Predicated region
      $region45: #{up_sampling_forward.1} parent=5 // pred_check
        %p3959 = pneg %p3958
      $region46: #{up_sampling_forward.1} parent=5 // pred_check_branch
        %3961 = sbr.rel (%p3959) target = $region48
      $region47: #{up_sampling_forward.1} parent=5 // pred_region
        %s3962 = ssub.s32 %s14, 2
        // Predicated region
        $region49: #{up_sampling_forward.1} parent=47 // pred_check
          %p3963 = pneg %p153
        $region50: #{up_sampling_forward.1} parent=47 // pred_check_branch
          %3965 = sbr.rel (%p3963) target = $region52
        $region51: #{up_sampling_forward.1} parent=47 // pred_region
          %s3966 = sand.u32 %s138, 1
          %s3967 = scalar_lea.sflag [#allocation3], %s3966
          %s3968 = sand.u32 %s138, 1
          %s3969 = smul.addr %s3968, 256
          %s3970 = scalar_lea.vmem [#allocation2], %s3969
          %3971 = dma.done %s3967, 4096
        $region52: #{up_sampling_forward.1} parent=47 // pred_fallthru
          _
      $region48: #{up_sampling_forward.1} parent=5 // pred_fallthru
        _
    $region6: #{up_sampling_forward.1} parent=1 // loop_footer
      %s18 = sadd.s32 1, %s14
    $region7: #{up_sampling_forward.1} parent=1 // loop_footer_branch
      %13 = sbr.rel target = $region3
    $region8: #{up_sampling_forward.1} parent=1 // loop_exit
      _
    %3972 = vsyncpa [#allocation3], 1
    %s3973 = scalar_lea.sflag [#allocation3], 1
    %3974 = vsyncpa %s3973, 1

</llo_original>
